<compile_context>
chip_gen: v7x
topology: tpu7x:2x2x1
jax: 0.10.0
libtpu: 0.0.40
codegen_flags: <defaults>
</compile_context>

<pallas_src>
import functools

import jax
import jax.numpy as jnp
from jax.experimental import pallas as pl
from jax.experimental.pallas import tpu as pltpu


# ------------------------------------------------------------------ utilities
def _round_up(x, m):
    return ((x + m - 1) // m) * m


def _m_tiling(M):
    """Pick (tile_m, padded_M) for the lane (M = N*Ho*Wo) axis.

    Prefer >=4 pipelined grid steps with 128..2048-wide lane tiles (DMA/compute
    overlap; feeds both v7x TensorCores on the 'parallel' kernels), falling back
    to a single full-extent block (always legal) so small / unaligned M needs no
    padding copy at all.
    """
    if M % 128 == 0:
        for tm in (2048, 1024, 512, 256, 128):
            if M % tm == 0 and M // tm >= 4:
                return tm, M
        for tm in (512, 256, 128):
            if M % tm == 0 and M // tm >= 2:
                return tm, M
        return M, M
    if M <= 1024:
        return M, M                       # single block, no copy
    Mp = _round_up(M, 512)                # large, awkward M: pad once, tile at 512
    return 512, Mp


# ------------------------------------------------------------------ GEMM kernels
def _gemm_stats_kernel(w_ref, x_ref, o_ref, sum_ref, ssq_ref, *, out_rows):
    """y = W @ x (bf16 in, f32 acc, bf16 out) + fused per-row BN statistics."""
    @pl.when(pl.program_id(0) == 0)
    def _():
        sum_ref[...] = jnp.zeros_like(sum_ref)
        ssq_ref[...] = jnp.zeros_like(ssq_ref)

    y = jnp.dot(w_ref[...], x_ref[...], preferred_element_type=jnp.float32)
    if out_rows != w_ref.shape[0]:        # drop weight-padding rows (16-row bf16 tile)
        y = y[:out_rows]
    o_ref[...] = y.astype(o_ref.dtype)
    # f32 statistics accumulated across the (arbitrary) M grid axis.
    sum_ref[...] += jnp.sum(y, axis=1, keepdims=True)
    ssq_ref[...] += jnp.sum(y * y, axis=1, keepdims=True)


def _gemm_bias_act_kernel(w_ref, x_ref, b_ref, o_ref, *, out_rows, act):
    y = jnp.dot(w_ref[...], x_ref[...], preferred_element_type=jnp.float32)
    if out_rows != w_ref.shape[0]:
        y = y[:out_rows]
    y = y + b_ref[...]
    if act == "relu":
        y = jnp.maximum(y, 0.0)
    elif act == "tanh":
        y = jnp.tanh(y)
    o_ref[...] = y.astype(o_ref.dtype)


def _maybe_pad_cols(cols, Kp, Mp):
    K, M = cols.shape
    if K != Kp or M != Mp:
        cols = jnp.pad(cols, ((0, Kp - K), (0, Mp - M)))
    return cols


def conv_gemm_stats(w_mat, cols, out_rows):
    """Returns (y bf16 (out_rows, Mp), row_sum f32, row_sumsq f32, M, Mp).

    w_mat: (rows16, Kp) bf16 pre-laid-out at init; cols: (K, M) bf16 im2col^T.
    The M grid axis is 'arbitrary' because the statistics accumulate across it.
    """
    rows_w, Kp = w_mat.shape
    K, M = cols.shape
    tm, Mp = _m_tiling(M)
    x = _maybe_pad_cols(cols, Kp, Mp)     # no-op for this network's shapes

    cost = pl.CostEstimate(
        flops=2 * rows_w * Kp * Mp, transcendentals=0,
        bytes_accessed=x.size * 2 + w_mat.size * 2 + out_rows * Mp * 2
        + out_rows * 8)

    y, s, ss = pl.pallas_call(
        functools.partial(_gemm_stats_kernel, out_rows=out_rows),
        out_shape=(jax.ShapeDtypeStruct((out_rows, Mp), jnp.bfloat16),
                   jax.ShapeDtypeStruct((out_rows, 1), jnp.float32),
                   jax.ShapeDtypeStruct((out_rows, 1), jnp.float32)),
        grid=(Mp // tm,),
        in_specs=[
            pl.BlockSpec((rows_w, Kp), lambda i: (0, 0)),   # resident weights
            pl.BlockSpec((Kp, tm), lambda i: (0, i)),       # lane-dense activations
        ],
        out_specs=(
            pl.BlockSpec((out_rows, tm), lambda i: (0, i)),
            pl.BlockSpec((out_rows, 1), lambda i: (0, 0)),  # resident accumulators
            pl.BlockSpec((out_rows, 1), lambda i: (0, 0)),
        ),
        compiler_params=pltpu.CompilerParams(
            dimension_semantics=("arbitrary",)),
        cost_estimate=cost,
    )(w_mat, x)
    return y, s[:, 0], ss[:, 0], M, Mp


def conv_gemm_bias_act(w_mat, cols, out_rows, bias, act="tanh",
                       out_dtype=jnp.float32):
    """Final-conv GEMM with fused bias + activation (no BN statistics)."""
    rows_w, Kp = w_mat.shape
    K, M = cols.shape
    tm, Mp = _m_tiling(M)
    x = _maybe_pad_cols(cols, Kp, Mp)
    b = jnp.zeros((out_rows, 1), jnp.float32).at[:bias.shape[0], 0].set(
        bias.astype(jnp.float32))

    cost = pl.CostEstimate(
        flops=2 * rows_w * Kp * Mp,
        transcendentals=out_rows * Mp if act == "tanh" else 0,
        bytes_accessed=x.size * 2 + w_mat.size * 2
        + out_rows * Mp * jnp.dtype(out_dtype).itemsize)

    y = pl.pallas_call(
        functools.partial(_gemm_bias_act_kernel, out_rows=out_rows, act=act),
        out_shape=jax.ShapeDtypeStruct((out_rows, Mp), out_dtype),
        grid=(Mp // tm,),
        in_specs=[
            pl.BlockSpec((rows_w, Kp), lambda i: (0, 0)),
            pl.BlockSpec((Kp, tm), lambda i: (0, i)),
            pl.BlockSpec((out_rows, 1), lambda i: (0, 0)),
        ],
        out_specs=pl.BlockSpec((out_rows, tm), lambda i: (0, i)),
        compiler_params=pltpu.CompilerParams(
            dimension_semantics=("parallel",)),
        cost_estimate=cost,
    )(w_mat, x, b)
    return y, M, Mp


# ------------------------------------------------------------------ BN-affine kernel
def _affine_act_kernel(*refs, act, has_res):
    if has_res:
        x_ref, s_ref, t_ref, r_ref, o_ref = refs
    else:
        x_ref, s_ref, t_ref, o_ref = refs
    # f32 math in vregs (v5e has no bf16 VALU); bf16 only at the store.
    y = x_ref[...].astype(jnp.float32) * s_ref[...] + t_ref[...]
    if has_res:
        y = y + r_ref[...].astype(jnp.float32)       # fused residual skip-add
    if act == "relu":
        y = jnp.maximum(y, 0.0)
    o_ref[...] = y.astype(o_ref.dtype)


def affine_act(x2d, scale, shift, act="none", residual=None,
               out_dtype=jnp.bfloat16):
    """y = act(x * scale + shift [+ residual]); x2d (C, M) bf16, per-row scale/shift."""
    C, M = x2d.shape
    tm, Mp = _m_tiling(M)
    xp = x2d if Mp == M else jnp.pad(x2d, ((0, 0), (0, Mp - M)))
    s = scale.astype(jnp.float32).reshape(C, 1)
    t = shift.astype(jnp.float32).reshape(C, 1)

    args = [xp, s, t]
    in_specs = [
        pl.BlockSpec((C, tm), lambda i: (0, i)),
        pl.BlockSpec((C, 1), lambda i: (0, 0)),
        pl.BlockSpec((C, 1), lambda i: (0, 0)),
    ]
    if residual is not None:
        r = residual.astype(jnp.bfloat16)
        if r.shape[1] != Mp:
            r = jnp.pad(r, ((0, 0), (0, Mp - r.shape[1])))
        args.append(r)
        in_specs.append(pl.BlockSpec((C, tm), lambda i: (0, i)))

    return pl.pallas_call(
        functools.partial(_affine_act_kernel, act=act,
                          has_res=residual is not None),
        out_shape=jax.ShapeDtypeStruct((C, Mp), out_dtype),
        grid=(Mp // tm,),
        in_specs=in_specs,
        out_specs=pl.BlockSpec((C, tm), lambda i: (0, i)),
        compiler_params=pltpu.CompilerParams(
            dimension_semantics=("parallel",)),
    )(*args)


def _bn_scale_shift(row_sum, row_ssq, count, gamma, beta, eps=1e-5):
    """Fold batch statistics (training-mode BN, biased variance) into scale/shift."""
    rows = row_sum.shape[0]
    if gamma.shape[0] != rows:                       # generic guard (unused here)
        gamma = jnp.pad(gamma, (0, rows - gamma.shape[0]))
        beta = jnp.pad(beta, (0, rows - beta.shape[0]))
    mean = row_sum / count
    var = jnp.maximum(row_ssq / count - mean * mean, 0.0)
    scale = gamma / jnp.sqrt(var + eps)
    shift = beta - mean * scale
    return scale, shift


# ------------------------------------------------------------------ conv glue (XLA)
def _reflect_pad(x, p):       # x: (C, N, H, W)
    return jnp.pad(x, ((0, 0), (0, 0), (p, p), (p, p)), mode="reflect")


def _zero_pad(x, p):
    return jnp.pad(x, ((0, 0), (0, 0), (p, p), (p, p)))


def _im2col_T(x, kh, kw, stride):
    """x: (C, N, Hp, Wp) padded bf16 -> cols^T (Kp, M), K order (ki,kj,ic), K padded
    to 16 inside the concat (zero rows appended; no separate pad pass)."""
    C, N, Hp, Wp = x.shape
    Ho = (Hp - kh) // stride + 1
    Wo = (Wp - kw) // stride + 1
    M = N * Ho * Wo
    slices = []
    for i in range(kh):
        for j in range(kw):
            s = x[:, :, i:i + stride * (Ho - 1) + 1:stride,
                        j:j + stride * (Wo - 1) + 1:stride]
            slices.append(s.reshape(C, M))
    K = kh * kw * C
    Kp = _round_up(K, 16)
    if Kp > K:
        slices.append(jnp.zeros((Kp - K, M), x.dtype))
    return jnp.concatenate(slices, axis=0), (N, Ho, Wo)


def _to_spatial(y2d, C, N, H, W, M):
    if y2d.shape[0] != C or y2d.shape[1] != M:
        y2d = y2d[:C, :M]
    return y2d.reshape(C, N, H, W)


# ------------------------------------------------------------------ weight layout (init)
def _pad_mat_bf16(m):
    """(Co, K) -> (round16(Co), round16(K)) zero-padded bf16 (bf16 sublane tile = 16)."""
    Co, K = m.shape
    Cop, Kp = _round_up(Co, 16), _round_up(K, 16)
    if (Cop, Kp) != (Co, K):
        m = jnp.pad(m, ((0, Cop - Co), (0, Kp - K)))
    return m.astype(jnp.bfloat16)


def _conv_w_to_mat(w):
    """PyTorch Conv2d weight (out_c, in_c, kh, kw) -> GEMM matrix (out_c, kh*kw*in_c)."""
    out_c = w.shape[0]
    return _pad_mat_bf16(jnp.transpose(w, (0, 2, 3, 1)).reshape(out_c, -1))


def _convt_w_to_mat(w_t):
    """ConvTranspose2d(k=3, s=2, p=1, op=1) weight (in_c, out_c, 3, 3) -> equivalent
    sub-pixel 2x2-tap GEMM matrix (4*out_c, 4*in_c); rows (phase_r, phase_c, oc),
    cols (tap_r, tap_c, ic)."""
    in_c, out_c = w_t.shape[0], w_t.shape[1]
    W = jnp.zeros((2, 2, out_c, 2, 2, in_c), jnp.float32)
    for pr in range(2):
        for pc in range(2):
            for ti in range(2):
                for tj in range(2):
                    ki, kj = pr - 2 * ti + 1, pc - 2 * tj + 1
                    if 0 <= ki <= 2 and 0 <= kj <= 2:
                        W = W.at[pr, pc, :, ti, tj, :].set(
                            jnp.transpose(w_t[:, :, ki, kj]))
    return _pad_mat_bf16(W.reshape(4 * out_c, 4 * in_c))


# ------------------------------------------------------------------ ResnetGenerator
def init_resnet_generator_params(key, input_nc, output_nc, ngf=8, n_blocks=2):
    """Deterministic init (conv weights ~ N(0, 0.02), BN gamma=1 beta=0); all weight
    reshape/flip/pad/bf16 transforms hoisted here."""
    params = {}

    def nrm(k, shape):
        return 0.02 * jax.random.normal(k, shape, jnp.float32)

    keys = iter(jax.random.split(key, 64))

    params["c0_w"] = _conv_w_to_mat(nrm(next(keys), (ngf, input_nc, 7, 7)))
    params["bn0"] = (jnp.ones(ngf), jnp.zeros(ngf))
    for i in range(2):
        mult = 2 ** i
        params[f"down{i}_w"] = _conv_w_to_mat(
            nrm(next(keys), (ngf * mult * 2, ngf * mult, 3, 3)))
        params[f"bn_down{i}"] = (jnp.ones(ngf * mult * 2), jnp.zeros(ngf * mult * 2))
    dim = ngf * 4
    for i in range(n_blocks):
        params[f"blk{i}_w1"] = _conv_w_to_mat(nrm(next(keys), (dim, dim, 3, 3)))
        params[f"blk{i}_bn1"] = (jnp.ones(dim), jnp.zeros(dim))
        params[f"blk{i}_w2"] = _conv_w_to_mat(nrm(next(keys), (dim, dim, 3, 3)))
        params[f"blk{i}_bn2"] = (jnp.ones(dim), jnp.zeros(dim))
    for i in range(2):
        mult = 2 ** (2 - i)
        # PyTorch ConvTranspose2d weight layout: (in_c, out_c, kh, kw)
        params[f"up{i}_w"] = _convt_w_to_mat(
            nrm(next(keys), (ngf * mult, ngf * mult // 2, 3, 3)))
        params[f"bn_up{i}"] = (jnp.ones(ngf * mult // 2), jnp.zeros(ngf * mult // 2))
    params["cf_w"] = _conv_w_to_mat(nrm(next(keys), (output_nc, ngf, 7, 7)))
    params["cf_b"] = nrm(next(keys), (output_nc,))
    return params


def resnet_generator_forward(x_nchw, params, *, n_blocks):
    """PyTorch ResnetGenerator forward (norm_layer=BatchNorm2d (training-mode batch
    stats), padding_type='reflect', use_dropout=False). NCHW in / NCHW out."""
    # NCHW -> channel-major (C, N, H, W), bf16 inter-layer activations.
    h = jnp.transpose(x_nchw, (1, 0, 2, 3)).astype(jnp.bfloat16)

    def conv_bn(w_key, bn_key, x, kh, kw, stride, pad_fn, pad, act,
                residual=None):
        g, b = params[bn_key]
        C_out = g.shape[0]
        rows = _round_up(C_out, 8)
        cols, (N, Ho, Wo) = _im2col_T(pad_fn(x, pad), kh, kw, stride)
        y, s, ss, M, _ = conv_gemm_stats(params[w_key], cols, out_rows=rows)
        scale, shift = _bn_scale_shift(s, ss, M, g, b)
        y = affine_act(y, scale, shift, act=act, residual=residual)
        return _to_spatial(y, C_out, N, Ho, Wo, M), y, M

    # initial 7x7 reflect-padded conv + BN + ReLU
    h, _, _ = conv_bn("c0_w", "bn0", h, 7, 7, 1, _reflect_pad, 3, "relu")

    # 2x downsampling (stride-2 conv, zero pad 1)
    for i in range(2):
        h, _, _ = conv_bn(f"down{i}_w", f"bn_down{i}", h, 3, 3, 2,
                          _zero_pad, 1, "relu")

    # resnet blocks: reflect1 conv3 BN ReLU, reflect1 conv3 BN, + skip (fused)
    for i in range(n_blocks):
        C, N, H, W = h.shape
        h2d = h.reshape(C, -1)                                   # bf16 residual
        r, _, _ = conv_bn(f"blk{i}_w1", f"blk{i}_bn1", h, 3, 3, 1,
                          _reflect_pad, 1, "relu")
        _, y2d, M = conv_bn(f"blk{i}_w2", f"blk{i}_bn2", r, 3, 3, 1,
                            _reflect_pad, 1, "none", residual=h2d)
        h = _to_spatial(y2d, C, N, H, W, M)

    # 2x upsampling: ConvTranspose2d(k=3,s=2,p=1,op=1) == 2x2-tap GEMM + pixel shuffle
    for i in range(2):
        C, N, H, W = h.shape
        g, b = params[f"bn_up{i}"]
        out_c = g.shape[0]
        xp = jnp.pad(h, ((0, 0), (0, 0), (0, 1), (0, 1)))        # bottom/right zero pad
        taps = [xp[:, :, ti:ti + H, tj:tj + W].reshape(C, N * H * W)
                for ti in range(2) for tj in range(2)]
        cols = jnp.concatenate(taps, axis=0)                     # (4*C, N*H*W) bf16
        y, s, ss, M, Mp = conv_gemm_stats(params[f"up{i}_w"], cols,
                                          out_rows=4 * out_c)
        # BN is per output channel -> merge stats over the 4 (phase_r, phase_c) rows
        scale, shift = _bn_scale_shift(s.reshape(4, out_c).sum(0),
                                       ss.reshape(4, out_c).sum(0),
                                       4 * M, g, b)
        # BN + ReLU applied in the pre-shuffle layout (row-broadcast scale/shift),
        # so the pixel-shuffle relayout below runs on bf16.
        y = affine_act(y, jnp.tile(scale, 4), jnp.tile(shift, 4), act="relu")
        y = y[:, :M] if Mp > M else y
        # TODO(synk): fold this relayout into the affine kernel's strided store.
        h = (y.reshape(2, 2, out_c, N, H, W)
               .transpose(2, 3, 4, 0, 5, 1)
               .reshape(out_c, N, 2 * H, 2 * W))

    # final 7x7 reflect-padded conv; bias + tanh fused into the GEMM epilogue
    out_nc = params["cf_b"].shape[0]
    rows = _round_up(out_nc, 8)
    cols, (N, Ho, Wo) = _im2col_T(_reflect_pad(h, 3), 7, 7, 1)
    y, M, _ = conv_gemm_bias_act(params["cf_w"], cols, out_rows=rows,
                                 bias=params["cf_b"], act="tanh",
                                 out_dtype=jnp.float32)
    y = _to_spatial(y, out_nc, N, Ho, Wo, M)
    return jnp.transpose(y, (1, 0, 2, 3))                        # -> NCHW


# ------------------------------------------------------------------ main
if __name__ == "__main__":
    key = jax.random.PRNGKey(0)
    k_in, k_par = jax.random.split(key)

    batch, input_nc, output_nc, ngf, n_blocks, spatial = 2, 3, 3, 8, 2, 16
    x = jax.random.normal(k_in, (batch, input_nc, spatial, spatial), jnp.float32)

    params = init_resnet_generator_params(k_par, input_nc, output_nc,
                                          ngf=ngf, n_blocks=n_blocks)

    fwd = jax.jit(functools.partial(resnet_generator_forward, n_blocks=n_blocks))
    y = fwd(x, params)
    y = jax.block_until_ready(y)

    assert y.shape == (batch, output_nc, spatial, spatial)
    assert bool(jnp.all(jnp.isfinite(y)))
    assert bool(jnp.all(jnp.abs(y) <= 1.0 + 1e-5))   # tanh output range
    print("KERNEL_OK")
</pallas_src>

<mosaic_0001>
module attributes {stable_mosaic.version = 11 : i64} {
  func.func @_gemm_stats_kernel(%arg0: i32, %arg1: memref<16x160xbf16, #tpu.memory_space<vmem>>, %arg2: memref<160x128xbf16, #tpu.memory_space<vmem>>, %arg3: memref<8x128xbf16, #tpu.memory_space<vmem>>, %arg4: memref<8x1xf32, #tpu.memory_space<vmem>>, %arg5: memref<8x1xf32, #tpu.memory_space<vmem>>) attributes {dimension_semantics = [#tpu.dimension_semantics<arbitrary>], iteration_bounds = array<i64: 4>, scalar_prefetch = 0 : i64, scratch_operands = 0 : i64, tpu.core_type = #tpu.core_type<tc>, window_params = [{pipeline_mode = #tpu.pipeline_mode<synchronous>, transform_indices = @transform_0, window_bounds = array<i64: 16, 160>}, {transform_indices = @transform_1, window_bounds = array<i64: 160, 128>}, {transform_indices = @transform_2, window_bounds = array<i64: 8, 128>}, {pipeline_mode = #tpu.pipeline_mode<synchronous>, transform_indices = @transform_3, window_bounds = array<i64: 8, 1>}, {pipeline_mode = #tpu.pipeline_mode<synchronous>, transform_indices = @transform_4, window_bounds = array<i64: 8, 1>}]} {
    %c0_i32 = arith.constant 0 : i32
    %0 = arith.cmpi eq, %arg0, %c0_i32 : i32
    %1 = arith.extui %0 : i1 to i32
    %c0_i32_0 = arith.constant 0 : i32
    %2 = arith.cmpi ne, %1, %c0_i32_0 : i32
    scf.if %2 {
      %cst_16 = arith.constant 0.000000e+00 : f32
      %20 = vector.broadcast %cst_16 : f32 to vector<8x1xf32>
      %c0_17 = arith.constant 0 : index
      %c0_18 = arith.constant 0 : index
      %21 = vector.load %arg4[%c0_17, %c0_18] : memref<8x1xf32, #tpu.memory_space<vmem>>, vector<8x1xf32>
      tpu.vector_store %arg4[%c0_17, %c0_18], %20 {strides = array<i32>} : memref<8x1xf32, #tpu.memory_space<vmem>>, vector<8x1xf32>,
      %cst_19 = arith.constant 0.000000e+00 : f32
      %22 = vector.broadcast %cst_19 : f32 to vector<8x1xf32>
      %c0_20 = arith.constant 0 : index
      %c0_21 = arith.constant 0 : index
      %23 = vector.load %arg5[%c0_20, %c0_21] : memref<8x1xf32, #tpu.memory_space<vmem>>, vector<8x1xf32>
      tpu.vector_store %arg5[%c0_20, %c0_21], %22 {strides = array<i32>} : memref<8x1xf32, #tpu.memory_space<vmem>>, vector<8x1xf32>,
    } else {
    }
    %c0 = arith.constant 0 : index
    %c0_1 = arith.constant 0 : index
    %3 = vector.load %arg1[%c0, %c0_1] : memref<16x160xbf16, #tpu.memory_space<vmem>>, vector<16x160xbf16>
    %c0_2 = arith.constant 0 : index
    %c0_3 = arith.constant 0 : index
    %4 = vector.load %arg2[%c0_2, %c0_3] : memref<160x128xbf16, #tpu.memory_space<vmem>>, vector<160x128xbf16>
    %cst = arith.constant dense<0.000000e+00> : vector<16x128xf32>
    %5 = tpu.matmul %3, %4, %cst {dimension_numbers = #tpu.dot_dimension_numbers<[1], [0], [0], [1], [0, 0, 1, 1], [], []>} : vector<16x160xbf16>, vector<160x128xbf16>, vector<16x128xf32> -> vector<16x128xf32>
    %6 = vector.extract_strided_slice %5 {offsets = [0, 0], sizes = [8, 128], strides = [1, 1]} : vector<16x128xf32> to vector<8x128xf32>
    %7 = arith.truncf %6 : vector<8x128xf32> to vector<8x128xbf16>
    %c0_4 = arith.constant 0 : index
    %c0_5 = arith.constant 0 : index
    %8 = vector.load %arg3[%c0_4, %c0_5] : memref<8x128xbf16, #tpu.memory_space<vmem>>, vector<8x128xbf16>
    tpu.vector_store %arg3[%c0_4, %c0_5], %7 {strides = array<i32>} : memref<8x128xbf16, #tpu.memory_space<vmem>>, vector<8x128xbf16>,
    %c0_6 = arith.constant 0 : index
    %c0_7 = arith.constant 0 : index
    %9 = vector.load %arg4[%c0_6, %c0_7] : memref<8x1xf32, #tpu.memory_space<vmem>>, vector<8x1xf32>
    %cst_8 = arith.constant dense<0.000000e+00> : vector<8xf32>
    %10 = vector.multi_reduction <add>, %6, %cst_8 [1] : vector<8x128xf32> to vector<8xf32>
    %11 = vector.shape_cast %10 : vector<8xf32> to vector<8x1xf32>
    %12 = arith.addf %9, %11 : vector<8x1xf32>
    %c0_9 = arith.constant 0 : index
    %c0_10 = arith.constant 0 : index
    %13 = vector.load %arg4[%c0_9, %c0_10] : memref<8x1xf32, #tpu.memory_space<vmem>>, vector<8x1xf32>
    tpu.vector_store %arg4[%c0_9, %c0_10], %12 {strides = array<i32>} : memref<8x1xf32, #tpu.memory_space<vmem>>, vector<8x1xf32>,
    %c0_11 = arith.constant 0 : index
    %c0_12 = arith.constant 0 : index
    %14 = vector.load %arg5[%c0_11, %c0_12] : memref<8x1xf32, #tpu.memory_space<vmem>>, vector<8x1xf32>
    %15 = arith.mulf %6, %6 : vector<8x128xf32>
    %cst_13 = arith.constant dense<0.000000e+00> : vector<8xf32>
    %16 = vector.multi_reduction <add>, %15, %cst_13 [1] : vector<8x128xf32> to vector<8xf32>
    %17 = vector.shape_cast %16 : vector<8xf32> to vector<8x1xf32>
    %18 = arith.addf %14, %17 : vector<8x1xf32>
    %c0_14 = arith.constant 0 : index
    %c0_15 = arith.constant 0 : index
    %19 = vector.load %arg5[%c0_14, %c0_15] : memref<8x1xf32, #tpu.memory_space<vmem>>, vector<8x1xf32>
    tpu.vector_store %arg5[%c0_14, %c0_15], %18 {strides = array<i32>} : memref<8x1xf32, #tpu.memory_space<vmem>>, vector<8x1xf32>,
    return
  }
  func.func @transform_0(%arg0: i32) -> (i32, i32) {
    %c0_i32 = arith.constant 0 : i32
    %c0_i32_0 = arith.constant 0 : i32
    %c0_i32_1 = arith.constant 0 : i32
    return %c0_i32, %c0_i32_0 : i32, i32
  }
  func.func @transform_1(%arg0: i32) -> (i32, i32) {
    %c0_i32 = arith.constant 0 : i32
    %c0_i32_0 = arith.constant 0 : i32
    return %c0_i32, %arg0 : i32, i32
  }
  func.func @transform_2(%arg0: i32) -> (i32, i32) {
    %c0_i32 = arith.constant 0 : i32
    %c0_i32_0 = arith.constant 0 : i32
    return %c0_i32, %arg0 : i32, i32
  }
  func.func @transform_3(%arg0: i32) -> (i32, i32) {
    %c0_i32 = arith.constant 0 : i32
    %c0_i32_0 = arith.constant 0 : i32
    %c0_i32_1 = arith.constant 0 : i32
    return %c0_i32, %c0_i32_0 : i32, i32
  }
  func.func @transform_4(%arg0: i32) -> (i32, i32) {
    %c0_i32 = arith.constant 0 : i32
    %c0_i32_0 = arith.constant 0 : i32
    %c0_i32_1 = arith.constant 0 : i32
    return %c0_i32, %c0_i32_0 : i32, i32
  }
}

module attributes {stable_mosaic.version = 11 : i64} {
  func.func @_affine_act_kernel(%arg0: i32, %arg1: memref<8x128xbf16, #tpu.memory_space<vmem>>, %arg2: memref<8x1xf32, #tpu.memory_space<vmem>>, %arg3: memref<8x1xf32, #tpu.memory_space<vmem>>, %arg4: memref<8x128xbf16, #tpu.memory_space<vmem>>) attributes {dimension_semantics = [#tpu.dimension_semantics<parallel>], iteration_bounds = array<i64: 4>, scalar_prefetch = 0 : i64, scratch_operands = 0 : i64, tpu.core_type = #tpu.core_type<tc>, window_params = [{transform_indices = @transform_0, window_bounds = array<i64: 8, 128>}, {pipeline_mode = #tpu.pipeline_mode<synchronous>, transform_indices = @transform_1, window_bounds = array<i64: 8, 1>}, {pipeline_mode = #tpu.pipeline_mode<synchronous>, transform_indices = @transform_2, window_bounds = array<i64: 8, 1>}, {transform_indices = @transform_3, window_bounds = array<i64: 8, 128>}]} {
    %c0 = arith.constant 0 : index
    %c0_0 = arith.constant 0 : index
    %0 = vector.load %arg1[%c0, %c0_0] : memref<8x128xbf16, #tpu.memory_space<vmem>>, vector<8x128xbf16>
    %1 = arith.extf %0 : vector<8x128xbf16> to vector<8x128xf32>
    %c0_1 = arith.constant 0 : index
    %c0_2 = arith.constant 0 : index
    %2 = vector.load %arg2[%c0_1, %c0_2] : memref<8x1xf32, #tpu.memory_space<vmem>>, vector<8x1xf32>
    %3 = vector.broadcast %2 : vector<8x1xf32> to vector<8x128xf32>
    %4 = arith.mulf %1, %3 : vector<8x128xf32>
    %c0_3 = arith.constant 0 : index
    %c0_4 = arith.constant 0 : index
    %5 = vector.load %arg3[%c0_3, %c0_4] : memref<8x1xf32, #tpu.memory_space<vmem>>, vector<8x1xf32>
    %6 = vector.broadcast %5 : vector<8x1xf32> to vector<8x128xf32>
    %7 = arith.addf %4, %6 : vector<8x128xf32>
    %cst = arith.constant 0.000000e+00 : f32
    %8 = vector.broadcast %cst : f32 to vector<8x128xf32>
    %9 = arith.maximumf %7, %8 : vector<8x128xf32>
    %10 = arith.truncf %9 : vector<8x128xf32> to vector<8x128xbf16>
    %c0_5 = arith.constant 0 : index
    %c0_6 = arith.constant 0 : index
    %11 = vector.load %arg4[%c0_5, %c0_6] : memref<8x128xbf16, #tpu.memory_space<vmem>>, vector<8x128xbf16>
    tpu.vector_store %arg4[%c0_5, %c0_6], %10 {strides = array<i32>} : memref<8x128xbf16, #tpu.memory_space<vmem>>, vector<8x128xbf16>,
    return
  }
  func.func @transform_0(%arg0: i32) -> (i32, i32) {
    %c0_i32 = arith.constant 0 : i32
    %c0_i32_0 = arith.constant 0 : i32
    return %c0_i32, %arg0 : i32, i32
  }
  func.func @transform_1(%arg0: i32) -> (i32, i32) {
    %c0_i32 = arith.constant 0 : i32
    %c0_i32_0 = arith.constant 0 : i32
    %c0_i32_1 = arith.constant 0 : i32
    return %c0_i32, %c0_i32_0 : i32, i32
  }
  func.func @transform_2(%arg0: i32) -> (i32, i32) {
    %c0_i32 = arith.constant 0 : i32
    %c0_i32_0 = arith.constant 0 : i32
    %c0_i32_1 = arith.constant 0 : i32
    return %c0_i32, %c0_i32_0 : i32, i32
  }
  func.func @transform_3(%arg0: i32) -> (i32, i32) {
    %c0_i32 = arith.constant 0 : i32
    %c0_i32_0 = arith.constant 0 : i32
    return %c0_i32, %arg0 : i32, i32
  }
}

module attributes {stable_mosaic.version = 11 : i64} {
  func.func @_affine_act_kernel(%arg0: i32, %arg1: memref<16x128xbf16, #tpu.memory_space<vmem>>, %arg2: memref<16x1xf32, #tpu.memory_space<vmem>>, %arg3: memref<16x1xf32, #tpu.memory_space<vmem>>, %arg4: memref<16x128xbf16, #tpu.memory_space<vmem>>) attributes {dimension_semantics = [#tpu.dimension_semantics<parallel>], iteration_bounds = array<i64: 1>, scalar_prefetch = 0 : i64, scratch_operands = 0 : i64, tpu.core_type = #tpu.core_type<tc>, window_params = [{transform_indices = @transform_0, window_bounds = array<i64: 16, 128>}, {pipeline_mode = #tpu.pipeline_mode<synchronous>, transform_indices = @transform_1, window_bounds = array<i64: 16, 1>}, {pipeline_mode = #tpu.pipeline_mode<synchronous>, transform_indices = @transform_2, window_bounds = array<i64: 16, 1>}, {transform_indices = @transform_3, window_bounds = array<i64: 16, 128>}]} {
    %c0 = arith.constant 0 : index
    %c0_0 = arith.constant 0 : index
    %0 = vector.load %arg1[%c0, %c0_0] : memref<16x128xbf16, #tpu.memory_space<vmem>>, vector<16x128xbf16>
    %1 = arith.extf %0 : vector<16x128xbf16> to vector<16x128xf32>
    %c0_1 = arith.constant 0 : index
    %c0_2 = arith.constant 0 : index
    %2 = vector.load %arg2[%c0_1, %c0_2] : memref<16x1xf32, #tpu.memory_space<vmem>>, vector<16x1xf32>
    %3 = vector.broadcast %2 : vector<16x1xf32> to vector<16x128xf32>
    %4 = arith.mulf %1, %3 : vector<16x128xf32>
    %c0_3 = arith.constant 0 : index
    %c0_4 = arith.constant 0 : index
    %5 = vector.load %arg3[%c0_3, %c0_4] : memref<16x1xf32, #tpu.memory_space<vmem>>, vector<16x1xf32>
    %6 = vector.broadcast %5 : vector<16x1xf32> to vector<16x128xf32>
    %7 = arith.addf %4, %6 : vector<16x128xf32>
    %cst = arith.constant 0.000000e+00 : f32
    %8 = vector.broadcast %cst : f32 to vector<16x128xf32>
    %9 = arith.maximumf %7, %8 : vector<16x128xf32>
    %10 = arith.truncf %9 : vector<16x128xf32> to vector<16x128xbf16>
    %c0_5 = arith.constant 0 : index
    %c0_6 = arith.constant 0 : index
    %11 = vector.load %arg4[%c0_5, %c0_6] : memref<16x128xbf16, #tpu.memory_space<vmem>>, vector<16x128xbf16>
    tpu.vector_store %arg4[%c0_5, %c0_6], %10 {strides = array<i32>} : memref<16x128xbf16, #tpu.memory_space<vmem>>, vector<16x128xbf16>,
    return
  }
  func.func @transform_0(%arg0: i32) -> (i32, i32) {
    %c0_i32 = arith.constant 0 : i32
    %c0_i32_0 = arith.constant 0 : i32
    return %c0_i32, %arg0 : i32, i32
  }
  func.func @transform_1(%arg0: i32) -> (i32, i32) {
    %c0_i32 = arith.constant 0 : i32
    %c0_i32_0 = arith.constant 0 : i32
    %c0_i32_1 = arith.constant 0 : i32
    return %c0_i32, %c0_i32_0 : i32, i32
  }
  func.func @transform_2(%arg0: i32) -> (i32, i32) {
    %c0_i32 = arith.constant 0 : i32
    %c0_i32_0 = arith.constant 0 : i32
    %c0_i32_1 = arith.constant 0 : i32
    return %c0_i32, %c0_i32_0 : i32, i32
  }
  func.func @transform_3(%arg0: i32) -> (i32, i32) {
    %c0_i32 = arith.constant 0 : i32
    %c0_i32_0 = arith.constant 0 : i32
    return %c0_i32, %arg0 : i32, i32
  }
}

module attributes {stable_mosaic.version = 11 : i64} {
  func.func @_gemm_stats_kernel(%arg0: i32, %arg1: memref<16x80xbf16, #tpu.memory_space<vmem>>, %arg2: memref<80x128xbf16, #tpu.memory_space<vmem>>, %arg3: memref<16x128xbf16, #tpu.memory_space<vmem>>, %arg4: memref<16x1xf32, #tpu.memory_space<vmem>>, %arg5: memref<16x1xf32, #tpu.memory_space<vmem>>) attributes {dimension_semantics = [#tpu.dimension_semantics<arbitrary>], iteration_bounds = array<i64: 1>, scalar_prefetch = 0 : i64, scratch_operands = 0 : i64, tpu.core_type = #tpu.core_type<tc>, window_params = [{pipeline_mode = #tpu.pipeline_mode<synchronous>, transform_indices = @transform_0, window_bounds = array<i64: 16, 80>}, {transform_indices = @transform_1, window_bounds = array<i64: 80, 128>}, {transform_indices = @transform_2, window_bounds = array<i64: 16, 128>}, {pipeline_mode = #tpu.pipeline_mode<synchronous>, transform_indices = @transform_3, window_bounds = array<i64: 16, 1>}, {pipeline_mode = #tpu.pipeline_mode<synchronous>, transform_indices = @transform_4, window_bounds = array<i64: 16, 1>}]} {
    %c0_i32 = arith.constant 0 : i32
    %0 = arith.cmpi eq, %arg0, %c0_i32 : i32
    %1 = arith.extui %0 : i1 to i32
    %c0_i32_0 = arith.constant 0 : i32
    %2 = arith.cmpi ne, %1, %c0_i32_0 : i32
    scf.if %2 {
      %cst_16 = arith.constant 0.000000e+00 : f32
      %19 = vector.broadcast %cst_16 : f32 to vector<16x1xf32>
      %c0_17 = arith.constant 0 : index
      %c0_18 = arith.constant 0 : index
      %20 = vector.load %arg4[%c0_17, %c0_18] : memref<16x1xf32, #tpu.memory_space<vmem>>, vector<16x1xf32>
      tpu.vector_store %arg4[%c0_17, %c0_18], %19 {strides = array<i32>} : memref<16x1xf32, #tpu.memory_space<vmem>>, vector<16x1xf32>,
      %cst_19 = arith.constant 0.000000e+00 : f32
      %21 = vector.broadcast %cst_19 : f32 to vector<16x1xf32>
      %c0_20 = arith.constant 0 : index
      %c0_21 = arith.constant 0 : index
      %22 = vector.load %arg5[%c0_20, %c0_21] : memref<16x1xf32, #tpu.memory_space<vmem>>, vector<16x1xf32>
      tpu.vector_store %arg5[%c0_20, %c0_21], %21 {strides = array<i32>} : memref<16x1xf32, #tpu.memory_space<vmem>>, vector<16x1xf32>,
    } else {
    }
    %c0 = arith.constant 0 : index
    %c0_1 = arith.constant 0 : index
    %3 = vector.load %arg1[%c0, %c0_1] : memref<16x80xbf16, #tpu.memory_space<vmem>>, vector<16x80xbf16>
    %c0_2 = arith.constant 0 : index
    %c0_3 = arith.constant 0 : index
    %4 = vector.load %arg2[%c0_2, %c0_3] : memref<80x128xbf16, #tpu.memory_space<vmem>>, vector<80x128xbf16>
    %cst = arith.constant dense<0.000000e+00> : vector<16x128xf32>
    %5 = tpu.matmul %3, %4, %cst {dimension_numbers = #tpu.dot_dimension_numbers<[1], [0], [0], [1], [0, 0, 1, 1], [], []>} : vector<16x80xbf16>, vector<80x128xbf16>, vector<16x128xf32> -> vector<16x128xf32>
    %6 = arith.truncf %5 : vector<16x128xf32> to vector<16x128xbf16>
    %c0_4 = arith.constant 0 : index
    %c0_5 = arith.constant 0 : index
    %7 = vector.load %arg3[%c0_4, %c0_5] : memref<16x128xbf16, #tpu.memory_space<vmem>>, vector<16x128xbf16>
    tpu.vector_store %arg3[%c0_4, %c0_5], %6 {strides = array<i32>} : memref<16x128xbf16, #tpu.memory_space<vmem>>, vector<16x128xbf16>,
    %c0_6 = arith.constant 0 : index
    %c0_7 = arith.constant 0 : index
    %8 = vector.load %arg4[%c0_6, %c0_7] : memref<16x1xf32, #tpu.memory_space<vmem>>, vector<16x1xf32>
    %cst_8 = arith.constant dense<0.000000e+00> : vector<16xf32>
    %9 = vector.multi_reduction <add>, %5, %cst_8 [1] : vector<16x128xf32> to vector<16xf32>
    %10 = vector.shape_cast %9 : vector<16xf32> to vector<16x1xf32>
    %11 = arith.addf %8, %10 : vector<16x1xf32>
    %c0_9 = arith.constant 0 : index
    %c0_10 = arith.constant 0 : index
    %12 = vector.load %arg4[%c0_9, %c0_10] : memref<16x1xf32, #tpu.memory_space<vmem>>, vector<16x1xf32>
    tpu.vector_store %arg4[%c0_9, %c0_10], %11 {strides = array<i32>} : memref<16x1xf32, #tpu.memory_space<vmem>>, vector<16x1xf32>,
    %c0_11 = arith.constant 0 : index
    %c0_12 = arith.constant 0 : index
    %13 = vector.load %arg5[%c0_11, %c0_12] : memref<16x1xf32, #tpu.memory_space<vmem>>, vector<16x1xf32>
    %14 = arith.mulf %5, %5 : vector<16x128xf32>
    %cst_13 = arith.constant dense<0.000000e+00> : vector<16xf32>
    %15 = vector.multi_reduction <add>, %14, %cst_13 [1] : vector<16x128xf32> to vector<16xf32>
    %16 = vector.shape_cast %15 : vector<16xf32> to vector<16x1xf32>
    %17 = arith.addf %13, %16 : vector<16x1xf32>
    %c0_14 = arith.constant 0 : index
    %c0_15 = arith.constant 0 : index
    %18 = vector.load %arg5[%c0_14, %c0_15] : memref<16x1xf32, #tpu.memory_space<vmem>>, vector<16x1xf32>
    tpu.vector_store %arg5[%c0_14, %c0_15], %17 {strides = array<i32>} : memref<16x1xf32, #tpu.memory_space<vmem>>, vector<16x1xf32>,
    return
  }
  func.func @transform_0(%arg0: i32) -> (i32, i32) {
    %c0_i32 = arith.constant 0 : i32
    %c0_i32_0 = arith.constant 0 : i32
    %c0_i32_1 = arith.constant 0 : i32
    return %c0_i32, %c0_i32_0 : i32, i32
  }
  func.func @transform_1(%arg0: i32) -> (i32, i32) {
    %c0_i32 = arith.constant 0 : i32
    %c0_i32_0 = arith.constant 0 : i32
    return %c0_i32, %arg0 : i32, i32
  }
  func.func @transform_2(%arg0: i32) -> (i32, i32) {
    %c0_i32 = arith.constant 0 : i32
    %c0_i32_0 = arith.constant 0 : i32
    return %c0_i32, %arg0 : i32, i32
  }
  func.func @transform_3(%arg0: i32) -> (i32, i32) {
    %c0_i32 = arith.constant 0 : i32
    %c0_i32_0 = arith.constant 0 : i32
    %c0_i32_1 = arith.constant 0 : i32
    return %c0_i32, %c0_i32_0 : i32, i32
  }
  func.func @transform_4(%arg0: i32) -> (i32, i32) {
    %c0_i32 = arith.constant 0 : i32
    %c0_i32_0 = arith.constant 0 : i32
    %c0_i32_1 = arith.constant 0 : i32
    return %c0_i32, %c0_i32_0 : i32, i32
  }
}

module attributes {stable_mosaic.version = 11 : i64} {
  func.func @_affine_act_kernel(%arg0: i32, %arg1: memref<32x32xbf16, #tpu.memory_space<vmem>>, %arg2: memref<32x1xf32, #tpu.memory_space<vmem>>, %arg3: memref<32x1xf32, #tpu.memory_space<vmem>>, %arg4: memref<32x32xbf16, #tpu.memory_space<vmem>>) attributes {dimension_semantics = [#tpu.dimension_semantics<parallel>], iteration_bounds = array<i64: 1>, scalar_prefetch = 0 : i64, scratch_operands = 0 : i64, tpu.core_type = #tpu.core_type<tc>, window_params = [{transform_indices = @transform_0, window_bounds = array<i64: 32, 32>}, {pipeline_mode = #tpu.pipeline_mode<synchronous>, transform_indices = @transform_1, window_bounds = array<i64: 32, 1>}, {pipeline_mode = #tpu.pipeline_mode<synchronous>, transform_indices = @transform_2, window_bounds = array<i64: 32, 1>}, {transform_indices = @transform_3, window_bounds = array<i64: 32, 32>}]} {
    %c0 = arith.constant 0 : index
    %c0_0 = arith.constant 0 : index
    %0 = vector.load %arg1[%c0, %c0_0] : memref<32x32xbf16, #tpu.memory_space<vmem>>, vector<32x32xbf16>
    %1 = arith.extf %0 : vector<32x32xbf16> to vector<32x32xf32>
    %c0_1 = arith.constant 0 : index
    %c0_2 = arith.constant 0 : index
    %2 = vector.load %arg2[%c0_1, %c0_2] : memref<32x1xf32, #tpu.memory_space<vmem>>, vector<32x1xf32>
    %3 = vector.broadcast %2 : vector<32x1xf32> to vector<32x32xf32>
    %4 = arith.mulf %1, %3 : vector<32x32xf32>
    %c0_3 = arith.constant 0 : index
    %c0_4 = arith.constant 0 : index
    %5 = vector.load %arg3[%c0_3, %c0_4] : memref<32x1xf32, #tpu.memory_space<vmem>>, vector<32x1xf32>
    %6 = vector.broadcast %5 : vector<32x1xf32> to vector<32x32xf32>
    %7 = arith.addf %4, %6 : vector<32x32xf32>
    %cst = arith.constant 0.000000e+00 : f32
    %8 = vector.broadcast %cst : f32 to vector<32x32xf32>
    %9 = arith.maximumf %7, %8 : vector<32x32xf32>
    %10 = arith.truncf %9 : vector<32x32xf32> to vector<32x32xbf16>
    %c0_5 = arith.constant 0 : index
    %c0_6 = arith.constant 0 : index
    %11 = vector.load %arg4[%c0_5, %c0_6] : memref<32x32xbf16, #tpu.memory_space<vmem>>, vector<32x32xbf16>
    tpu.vector_store %arg4[%c0_5, %c0_6], %10 {strides = array<i32>} : memref<32x32xbf16, #tpu.memory_space<vmem>>, vector<32x32xbf16>,
    return
  }
  func.func @transform_0(%arg0: i32) -> (i32, i32) {
    %c0_i32 = arith.constant 0 : i32
    %c0_i32_0 = arith.constant 0 : i32
    return %c0_i32, %arg0 : i32, i32
  }
  func.func @transform_1(%arg0: i32) -> (i32, i32) {
    %c0_i32 = arith.constant 0 : i32
    %c0_i32_0 = arith.constant 0 : i32
    %c0_i32_1 = arith.constant 0 : i32
    return %c0_i32, %c0_i32_0 : i32, i32
  }
  func.func @transform_2(%arg0: i32) -> (i32, i32) {
    %c0_i32 = arith.constant 0 : i32
    %c0_i32_0 = arith.constant 0 : i32
    %c0_i32_1 = arith.constant 0 : i32
    return %c0_i32, %c0_i32_0 : i32, i32
  }
  func.func @transform_3(%arg0: i32) -> (i32, i32) {
    %c0_i32 = arith.constant 0 : i32
    %c0_i32_0 = arith.constant 0 : i32
    return %c0_i32, %arg0 : i32, i32
  }
}

module attributes {stable_mosaic.version = 11 : i64} {
  func.func @_gemm_stats_kernel(%arg0: i32, %arg1: memref<32x144xbf16, #tpu.memory_space<vmem>>, %arg2: memref<144x32xbf16, #tpu.memory_space<vmem>>, %arg3: memref<32x32xbf16, #tpu.memory_space<vmem>>, %arg4: memref<32x1xf32, #tpu.memory_space<vmem>>, %arg5: memref<32x1xf32, #tpu.memory_space<vmem>>) attributes {dimension_semantics = [#tpu.dimension_semantics<arbitrary>], iteration_bounds = array<i64: 1>, scalar_prefetch = 0 : i64, scratch_operands = 0 : i64, tpu.core_type = #tpu.core_type<tc>, window_params = [{pipeline_mode = #tpu.pipeline_mode<synchronous>, transform_indices = @transform_0, window_bounds = array<i64: 32, 144>}, {transform_indices = @transform_1, window_bounds = array<i64: 144, 32>}, {transform_indices = @transform_2, window_bounds = array<i64: 32, 32>}, {pipeline_mode = #tpu.pipeline_mode<synchronous>, transform_indices = @transform_3, window_bounds = array<i64: 32, 1>}, {pipeline_mode = #tpu.pipeline_mode<synchronous>, transform_indices = @transform_4, window_bounds = array<i64: 32, 1>}]} {
    %c0_i32 = arith.constant 0 : i32
    %0 = arith.cmpi eq, %arg0, %c0_i32 : i32
    %1 = arith.extui %0 : i1 to i32
    %c0_i32_0 = arith.constant 0 : i32
    %2 = arith.cmpi ne, %1, %c0_i32_0 : i32
    scf.if %2 {
      %cst_16 = arith.constant 0.000000e+00 : f32
      %19 = vector.broadcast %cst_16 : f32 to vector<32x1xf32>
      %c0_17 = arith.constant 0 : index
      %c0_18 = arith.constant 0 : index
      %20 = vector.load %arg4[%c0_17, %c0_18] : memref<32x1xf32, #tpu.memory_space<vmem>>, vector<32x1xf32>
      tpu.vector_store %arg4[%c0_17, %c0_18], %19 {strides = array<i32>} : memref<32x1xf32, #tpu.memory_space<vmem>>, vector<32x1xf32>,
      %cst_19 = arith.constant 0.000000e+00 : f32
      %21 = vector.broadcast %cst_19 : f32 to vector<32x1xf32>
      %c0_20 = arith.constant 0 : index
      %c0_21 = arith.constant 0 : index
      %22 = vector.load %arg5[%c0_20, %c0_21] : memref<32x1xf32, #tpu.memory_space<vmem>>, vector<32x1xf32>
      tpu.vector_store %arg5[%c0_20, %c0_21], %21 {strides = array<i32>} : memref<32x1xf32, #tpu.memory_space<vmem>>, vector<32x1xf32>,
    } else {
    }
    %c0 = arith.constant 0 : index
    %c0_1 = arith.constant 0 : index
    %3 = vector.load %arg1[%c0, %c0_1] : memref<32x144xbf16, #tpu.memory_space<vmem>>, vector<32x144xbf16>
    %c0_2 = arith.constant 0 : index
    %c0_3 = arith.constant 0 : index
    %4 = vector.load %arg2[%c0_2, %c0_3] : memref<144x32xbf16, #tpu.memory_space<vmem>>, vector<144x32xbf16>
    %cst = arith.constant dense<0.000000e+00> : vector<32x32xf32>
    %5 = tpu.matmul %3, %4, %cst {dimension_numbers = #tpu.dot_dimension_numbers<[1], [0], [0], [1], [0, 0, 1, 1], [], []>} : vector<32x144xbf16>, vector<144x32xbf16>, vector<32x32xf32> -> vector<32x32xf32>
    %6 = arith.truncf %5 : vector<32x32xf32> to vector<32x32xbf16>
    %c0_4 = arith.constant 0 : index
    %c0_5 = arith.constant 0 : index
    %7 = vector.load %arg3[%c0_4, %c0_5] : memref<32x32xbf16, #tpu.memory_space<vmem>>, vector<32x32xbf16>
    tpu.vector_store %arg3[%c0_4, %c0_5], %6 {strides = array<i32>} : memref<32x32xbf16, #tpu.memory_space<vmem>>, vector<32x32xbf16>,
    %c0_6 = arith.constant 0 : index
    %c0_7 = arith.constant 0 : index
    %8 = vector.load %arg4[%c0_6, %c0_7] : memref<32x1xf32, #tpu.memory_space<vmem>>, vector<32x1xf32>
    %cst_8 = arith.constant dense<0.000000e+00> : vector<32xf32>
    %9 = vector.multi_reduction <add>, %5, %cst_8 [1] : vector<32x32xf32> to vector<32xf32>
    %10 = vector.shape_cast %9 : vector<32xf32> to vector<32x1xf32>
    %11 = arith.addf %8, %10 : vector<32x1xf32>
    %c0_9 = arith.constant 0 : index
    %c0_10 = arith.constant 0 : index
    %12 = vector.load %arg4[%c0_9, %c0_10] : memref<32x1xf32, #tpu.memory_space<vmem>>, vector<32x1xf32>
    tpu.vector_store %arg4[%c0_9, %c0_10], %11 {strides = array<i32>} : memref<32x1xf32, #tpu.memory_space<vmem>>, vector<32x1xf32>,
    %c0_11 = arith.constant 0 : index
    %c0_12 = arith.constant 0 : index
    %13 = vector.load %arg5[%c0_11, %c0_12] : memref<32x1xf32, #tpu.memory_space<vmem>>, vector<32x1xf32>
    %14 = arith.mulf %5, %5 : vector<32x32xf32>
    %cst_13 = arith.constant dense<0.000000e+00> : vector<32xf32>
    %15 = vector.multi_reduction <add>, %14, %cst_13 [1] : vector<32x32xf32> to vector<32xf32>
    %16 = vector.shape_cast %15 : vector<32xf32> to vector<32x1xf32>
    %17 = arith.addf %13, %16 : vector<32x1xf32>
    %c0_14 = arith.constant 0 : index
    %c0_15 = arith.constant 0 : index
    %18 = vector.load %arg5[%c0_14, %c0_15] : memref<32x1xf32, #tpu.memory_space<vmem>>, vector<32x1xf32>
    tpu.vector_store %arg5[%c0_14, %c0_15], %17 {strides = array<i32>} : memref<32x1xf32, #tpu.memory_space<vmem>>, vector<32x1xf32>,
    return
  }
  func.func @transform_0(%arg0: i32) -> (i32, i32) {
    %c0_i32 = arith.constant 0 : i32
    %c0_i32_0 = arith.constant 0 : i32
    %c0_i32_1 = arith.constant 0 : i32
    return %c0_i32, %c0_i32_0 : i32, i32
  }
  func.func @transform_1(%arg0: i32) -> (i32, i32) {
    %c0_i32 = arith.constant 0 : i32
    %c0_i32_0 = arith.constant 0 : i32
    return %c0_i32, %arg0 : i32, i32
  }
  func.func @transform_2(%arg0: i32) -> (i32, i32) {
    %c0_i32 = arith.constant 0 : i32
    %c0_i32_0 = arith.constant 0 : i32
    return %c0_i32, %arg0 : i32, i32
  }
  func.func @transform_3(%arg0: i32) -> (i32, i32) {
    %c0_i32 = arith.constant 0 : i32
    %c0_i32_0 = arith.constant 0 : i32
    %c0_i32_1 = arith.constant 0 : i32
    return %c0_i32, %c0_i32_0 : i32, i32
  }
  func.func @transform_4(%arg0: i32) -> (i32, i32) {
    %c0_i32 = arith.constant 0 : i32
    %c0_i32_0 = arith.constant 0 : i32
    %c0_i32_1 = arith.constant 0 : i32
    return %c0_i32, %c0_i32_0 : i32, i32
  }
}

module attributes {stable_mosaic.version = 11 : i64} {
  func.func @_gemm_stats_kernel(%arg0: i32, %arg1: memref<32x288xbf16, #tpu.memory_space<vmem>>, %arg2: memref<288x32xbf16, #tpu.memory_space<vmem>>, %arg3: memref<32x32xbf16, #tpu.memory_space<vmem>>, %arg4: memref<32x1xf32, #tpu.memory_space<vmem>>, %arg5: memref<32x1xf32, #tpu.memory_space<vmem>>) attributes {dimension_semantics = [#tpu.dimension_semantics<arbitrary>], iteration_bounds = array<i64: 1>, scalar_prefetch = 0 : i64, scratch_operands = 0 : i64, tpu.core_type = #tpu.core_type<tc>, window_params = [{pipeline_mode = #tpu.pipeline_mode<synchronous>, transform_indices = @transform_0, window_bounds = array<i64: 32, 288>}, {transform_indices = @transform_1, window_bounds = array<i64: 288, 32>}, {transform_indices = @transform_2, window_bounds = array<i64: 32, 32>}, {pipeline_mode = #tpu.pipeline_mode<synchronous>, transform_indices = @transform_3, window_bounds = array<i64: 32, 1>}, {pipeline_mode = #tpu.pipeline_mode<synchronous>, transform_indices = @transform_4, window_bounds = array<i64: 32, 1>}]} {
    %c0_i32 = arith.constant 0 : i32
    %0 = arith.cmpi eq, %arg0, %c0_i32 : i32
    %1 = arith.extui %0 : i1 to i32
    %c0_i32_0 = arith.constant 0 : i32
    %2 = arith.cmpi ne, %1, %c0_i32_0 : i32
    scf.if %2 {
      %cst_16 = arith.constant 0.000000e+00 : f32
      %19 = vector.broadcast %cst_16 : f32 to vector<32x1xf32>
      %c0_17 = arith.constant 0 : index
      %c0_18 = arith.constant 0 : index
      %20 = vector.load %arg4[%c0_17, %c0_18] : memref<32x1xf32, #tpu.memory_space<vmem>>, vector<32x1xf32>
      tpu.vector_store %arg4[%c0_17, %c0_18], %19 {strides = array<i32>} : memref<32x1xf32, #tpu.memory_space<vmem>>, vector<32x1xf32>,
      %cst_19 = arith.constant 0.000000e+00 : f32
      %21 = vector.broadcast %cst_19 : f32 to vector<32x1xf32>
      %c0_20 = arith.constant 0 : index
      %c0_21 = arith.constant 0 : index
      %22 = vector.load %arg5[%c0_20, %c0_21] : memref<32x1xf32, #tpu.memory_space<vmem>>, vector<32x1xf32>
      tpu.vector_store %arg5[%c0_20, %c0_21], %21 {strides = array<i32>} : memref<32x1xf32, #tpu.memory_space<vmem>>, vector<32x1xf32>,
    } else {
    }
    %c0 = arith.constant 0 : index
    %c0_1 = arith.constant 0 : index
    %3 = vector.load %arg1[%c0, %c0_1] : memref<32x288xbf16, #tpu.memory_space<vmem>>, vector<32x288xbf16>
    %c0_2 = arith.constant 0 : index
    %c0_3 = arith.constant 0 : index
    %4 = vector.load %arg2[%c0_2, %c0_3] : memref<288x32xbf16, #tpu.memory_space<vmem>>, vector<288x32xbf16>
    %cst = arith.constant dense<0.000000e+00> : vector<32x32xf32>
    %5 = tpu.matmul %3, %4, %cst {dimension_numbers = #tpu.dot_dimension_numbers<[1], [0], [0], [1], [0, 0, 1, 1], [], []>} : vector<32x288xbf16>, vector<288x32xbf16>, vector<32x32xf32> -> vector<32x32xf32>
    %6 = arith.truncf %5 : vector<32x32xf32> to vector<32x32xbf16>
    %c0_4 = arith.constant 0 : index
    %c0_5 = arith.constant 0 : index
    %7 = vector.load %arg3[%c0_4, %c0_5] : memref<32x32xbf16, #tpu.memory_space<vmem>>, vector<32x32xbf16>
    tpu.vector_store %arg3[%c0_4, %c0_5], %6 {strides = array<i32>} : memref<32x32xbf16, #tpu.memory_space<vmem>>, vector<32x32xbf16>,
    %c0_6 = arith.constant 0 : index
    %c0_7 = arith.constant 0 : index
    %8 = vector.load %arg4[%c0_6, %c0_7] : memref<32x1xf32, #tpu.memory_space<vmem>>, vector<32x1xf32>
    %cst_8 = arith.constant dense<0.000000e+00> : vector<32xf32>
    %9 = vector.multi_reduction <add>, %5, %cst_8 [1] : vector<32x32xf32> to vector<32xf32>
    %10 = vector.shape_cast %9 : vector<32xf32> to vector<32x1xf32>
    %11 = arith.addf %8, %10 : vector<32x1xf32>
    %c0_9 = arith.constant 0 : index
    %c0_10 = arith.constant 0 : index
    %12 = vector.load %arg4[%c0_9, %c0_10] : memref<32x1xf32, #tpu.memory_space<vmem>>, vector<32x1xf32>
    tpu.vector_store %arg4[%c0_9, %c0_10], %11 {strides = array<i32>} : memref<32x1xf32, #tpu.memory_space<vmem>>, vector<32x1xf32>,
    %c0_11 = arith.constant 0 : index
    %c0_12 = arith.constant 0 : index
    %13 = vector.load %arg5[%c0_11, %c0_12] : memref<32x1xf32, #tpu.memory_space<vmem>>, vector<32x1xf32>
    %14 = arith.mulf %5, %5 : vector<32x32xf32>
    %cst_13 = arith.constant dense<0.000000e+00> : vector<32xf32>
    %15 = vector.multi_reduction <add>, %14, %cst_13 [1] : vector<32x32xf32> to vector<32xf32>
    %16 = vector.shape_cast %15 : vector<32xf32> to vector<32x1xf32>
    %17 = arith.addf %13, %16 : vector<32x1xf32>
    %c0_14 = arith.constant 0 : index
    %c0_15 = arith.constant 0 : index
    %18 = vector.load %arg5[%c0_14, %c0_15] : memref<32x1xf32, #tpu.memory_space<vmem>>, vector<32x1xf32>
    tpu.vector_store %arg5[%c0_14, %c0_15], %17 {strides = array<i32>} : memref<32x1xf32, #tpu.memory_space<vmem>>, vector<32x1xf32>,
    return
  }
  func.func @transform_0(%arg0: i32) -> (i32, i32) {
    %c0_i32 = arith.constant 0 : i32
    %c0_i32_0 = arith.constant 0 : i32
    %c0_i32_1 = arith.constant 0 : i32
    return %c0_i32, %c0_i32_0 : i32, i32
  }
  func.func @transform_1(%arg0: i32) -> (i32, i32) {
    %c0_i32 = arith.constant 0 : i32
    %c0_i32_0 = arith.constant 0 : i32
    return %c0_i32, %arg0 : i32, i32
  }
  func.func @transform_2(%arg0: i32) -> (i32, i32) {
    %c0_i32 = arith.constant 0 : i32
    %c0_i32_0 = arith.constant 0 : i32
    return %c0_i32, %arg0 : i32, i32
  }
  func.func @transform_3(%arg0: i32) -> (i32, i32) {
    %c0_i32 = arith.constant 0 : i32
    %c0_i32_0 = arith.constant 0 : i32
    %c0_i32_1 = arith.constant 0 : i32
    return %c0_i32, %c0_i32_0 : i32, i32
  }
  func.func @transform_4(%arg0: i32) -> (i32, i32) {
    %c0_i32 = arith.constant 0 : i32
    %c0_i32_0 = arith.constant 0 : i32
    %c0_i32_1 = arith.constant 0 : i32
    return %c0_i32, %c0_i32_0 : i32, i32
  }
}

module attributes {stable_mosaic.version = 11 : i64} {
  func.func @_affine_act_kernel(%arg0: i32, %arg1: memref<32x32xbf16, #tpu.memory_space<vmem>>, %arg2: memref<32x1xf32, #tpu.memory_space<vmem>>, %arg3: memref<32x1xf32, #tpu.memory_space<vmem>>, %arg4: memref<32x32xbf16, #tpu.memory_space<vmem>>, %arg5: memref<32x32xbf16, #tpu.memory_space<vmem>>) attributes {dimension_semantics = [#tpu.dimension_semantics<parallel>], iteration_bounds = array<i64: 1>, scalar_prefetch = 0 : i64, scratch_operands = 0 : i64, tpu.core_type = #tpu.core_type<tc>, window_params = [{transform_indices = @transform_0, window_bounds = array<i64: 32, 32>}, {pipeline_mode = #tpu.pipeline_mode<synchronous>, transform_indices = @transform_1, window_bounds = array<i64: 32, 1>}, {pipeline_mode = #tpu.pipeline_mode<synchronous>, transform_indices = @transform_2, window_bounds = array<i64: 32, 1>}, {transform_indices = @transform_3, window_bounds = array<i64: 32, 32>}, {transform_indices = @transform_4, window_bounds = array<i64: 32, 32>}]} {
    %c0 = arith.constant 0 : index
    %c0_0 = arith.constant 0 : index
    %0 = vector.load %arg1[%c0, %c0_0] : memref<32x32xbf16, #tpu.memory_space<vmem>>, vector<32x32xbf16>
    %1 = arith.extf %0 : vector<32x32xbf16> to vector<32x32xf32>
    %c0_1 = arith.constant 0 : index
    %c0_2 = arith.constant 0 : index
    %2 = vector.load %arg2[%c0_1, %c0_2] : memref<32x1xf32, #tpu.memory_space<vmem>>, vector<32x1xf32>
    %3 = vector.broadcast %2 : vector<32x1xf32> to vector<32x32xf32>
    %4 = arith.mulf %1, %3 : vector<32x32xf32>
    %c0_3 = arith.constant 0 : index
    %c0_4 = arith.constant 0 : index
    %5 = vector.load %arg3[%c0_3, %c0_4] : memref<32x1xf32, #tpu.memory_space<vmem>>, vector<32x1xf32>
    %6 = vector.broadcast %5 : vector<32x1xf32> to vector<32x32xf32>
    %7 = arith.addf %4, %6 : vector<32x32xf32>
    %c0_5 = arith.constant 0 : index
    %c0_6 = arith.constant 0 : index
    %8 = vector.load %arg4[%c0_5, %c0_6] : memref<32x32xbf16, #tpu.memory_space<vmem>>, vector<32x32xbf16>
    %9 = arith.extf %8 : vector<32x32xbf16> to vector<32x32xf32>
    %10 = arith.addf %7, %9 : vector<32x32xf32>
    %11 = arith.truncf %10 : vector<32x32xf32> to vector<32x32xbf16>
    %c0_7 = arith.constant 0 : index
    %c0_8 = arith.constant 0 : index
    %12 = vector.load %arg5[%c0_7, %c0_8] : memref<32x32xbf16, #tpu.memory_space<vmem>>, vector<32x32xbf16>
    tpu.vector_store %arg5[%c0_7, %c0_8], %11 {strides = array<i32>} : memref<32x32xbf16, #tpu.memory_space<vmem>>, vector<32x32xbf16>,
    return
  }
  func.func @transform_0(%arg0: i32) -> (i32, i32) {
    %c0_i32 = arith.constant 0 : i32
    %c0_i32_0 = arith.constant 0 : i32
    return %c0_i32, %arg0 : i32, i32
  }
  func.func @transform_1(%arg0: i32) -> (i32, i32) {
    %c0_i32 = arith.constant 0 : i32
    %c0_i32_0 = arith.constant 0 : i32
    %c0_i32_1 = arith.constant 0 : i32
    return %c0_i32, %c0_i32_0 : i32, i32
  }
  func.func @transform_2(%arg0: i32) -> (i32, i32) {
    %c0_i32 = arith.constant 0 : i32
    %c0_i32_0 = arith.constant 0 : i32
    %c0_i32_1 = arith.constant 0 : i32
    return %c0_i32, %c0_i32_0 : i32, i32
  }
  func.func @transform_3(%arg0: i32) -> (i32, i32) {
    %c0_i32 = arith.constant 0 : i32
    %c0_i32_0 = arith.constant 0 : i32
    return %c0_i32, %arg0 : i32, i32
  }
  func.func @transform_4(%arg0: i32) -> (i32, i32) {
    %c0_i32 = arith.constant 0 : i32
    %c0_i32_0 = arith.constant 0 : i32
    return %c0_i32, %arg0 : i32, i32
  }
}

module attributes {stable_mosaic.version = 11 : i64} {
  func.func @_gemm_stats_kernel(%arg0: i32, %arg1: memref<64x128xbf16, #tpu.memory_space<vmem>>, %arg2: memref<128x32xbf16, #tpu.memory_space<vmem>>, %arg3: memref<64x32xbf16, #tpu.memory_space<vmem>>, %arg4: memref<64x1xf32, #tpu.memory_space<vmem>>, %arg5: memref<64x1xf32, #tpu.memory_space<vmem>>) attributes {dimension_semantics = [#tpu.dimension_semantics<arbitrary>], iteration_bounds = array<i64: 1>, scalar_prefetch = 0 : i64, scratch_operands = 0 : i64, tpu.core_type = #tpu.core_type<tc>, window_params = [{pipeline_mode = #tpu.pipeline_mode<synchronous>, transform_indices = @transform_0, window_bounds = array<i64: 64, 128>}, {transform_indices = @transform_1, window_bounds = array<i64: 128, 32>}, {transform_indices = @transform_2, window_bounds = array<i64: 64, 32>}, {pipeline_mode = #tpu.pipeline_mode<synchronous>, transform_indices = @transform_3, window_bounds = array<i64: 64, 1>}, {pipeline_mode = #tpu.pipeline_mode<synchronous>, transform_indices = @transform_4, window_bounds = array<i64: 64, 1>}]} {
    %c0_i32 = arith.constant 0 : i32
    %0 = arith.cmpi eq, %arg0, %c0_i32 : i32
    %1 = arith.extui %0 : i1 to i32
    %c0_i32_0 = arith.constant 0 : i32
    %2 = arith.cmpi ne, %1, %c0_i32_0 : i32
    scf.if %2 {
      %cst_16 = arith.constant 0.000000e+00 : f32
      %19 = vector.broadcast %cst_16 : f32 to vector<64x1xf32>
      %c0_17 = arith.constant 0 : index
      %c0_18 = arith.constant 0 : index
      %20 = vector.load %arg4[%c0_17, %c0_18] : memref<64x1xf32, #tpu.memory_space<vmem>>, vector<64x1xf32>
      tpu.vector_store %arg4[%c0_17, %c0_18], %19 {strides = array<i32>} : memref<64x1xf32, #tpu.memory_space<vmem>>, vector<64x1xf32>,
      %cst_19 = arith.constant 0.000000e+00 : f32
      %21 = vector.broadcast %cst_19 : f32 to vector<64x1xf32>
      %c0_20 = arith.constant 0 : index
      %c0_21 = arith.constant 0 : index
      %22 = vector.load %arg5[%c0_20, %c0_21] : memref<64x1xf32, #tpu.memory_space<vmem>>, vector<64x1xf32>
      tpu.vector_store %arg5[%c0_20, %c0_21], %21 {strides = array<i32>} : memref<64x1xf32, #tpu.memory_space<vmem>>, vector<64x1xf32>,
    } else {
    }
    %c0 = arith.constant 0 : index
    %c0_1 = arith.constant 0 : index
    %3 = vector.load %arg1[%c0, %c0_1] : memref<64x128xbf16, #tpu.memory_space<vmem>>, vector<64x128xbf16>
    %c0_2 = arith.constant 0 : index
    %c0_3 = arith.constant 0 : index
    %4 = vector.load %arg2[%c0_2, %c0_3] : memref<128x32xbf16, #tpu.memory_space<vmem>>, vector<128x32xbf16>
    %cst = arith.constant dense<0.000000e+00> : vector<64x32xf32>
    %5 = tpu.matmul %3, %4, %cst {dimension_numbers = #tpu.dot_dimension_numbers<[1], [0], [0], [1], [0, 0, 1, 1], [], []>} : vector<64x128xbf16>, vector<128x32xbf16>, vector<64x32xf32> -> vector<64x32xf32>
    %6 = arith.truncf %5 : vector<64x32xf32> to vector<64x32xbf16>
    %c0_4 = arith.constant 0 : index
    %c0_5 = arith.constant 0 : index
    %7 = vector.load %arg3[%c0_4, %c0_5] : memref<64x32xbf16, #tpu.memory_space<vmem>>, vector<64x32xbf16>
    tpu.vector_store %arg3[%c0_4, %c0_5], %6 {strides = array<i32>} : memref<64x32xbf16, #tpu.memory_space<vmem>>, vector<64x32xbf16>,
    %c0_6 = arith.constant 0 : index
    %c0_7 = arith.constant 0 : index
    %8 = vector.load %arg4[%c0_6, %c0_7] : memref<64x1xf32, #tpu.memory_space<vmem>>, vector<64x1xf32>
    %cst_8 = arith.constant dense<0.000000e+00> : vector<64xf32>
    %9 = vector.multi_reduction <add>, %5, %cst_8 [1] : vector<64x32xf32> to vector<64xf32>
    %10 = vector.shape_cast %9 : vector<64xf32> to vector<64x1xf32>
    %11 = arith.addf %8, %10 : vector<64x1xf32>
    %c0_9 = arith.constant 0 : index
    %c0_10 = arith.constant 0 : index
    %12 = vector.load %arg4[%c0_9, %c0_10] : memref<64x1xf32, #tpu.memory_space<vmem>>, vector<64x1xf32>
    tpu.vector_store %arg4[%c0_9, %c0_10], %11 {strides = array<i32>} : memref<64x1xf32, #tpu.memory_space<vmem>>, vector<64x1xf32>,
    %c0_11 = arith.constant 0 : index
    %c0_12 = arith.constant 0 : index
    %13 = vector.load %arg5[%c0_11, %c0_12] : memref<64x1xf32, #tpu.memory_space<vmem>>, vector<64x1xf32>
    %14 = arith.mulf %5, %5 : vector<64x32xf32>
    %cst_13 = arith.constant dense<0.000000e+00> : vector<64xf32>
    %15 = vector.multi_reduction <add>, %14, %cst_13 [1] : vector<64x32xf32> to vector<64xf32>
    %16 = vector.shape_cast %15 : vector<64xf32> to vector<64x1xf32>
    %17 = arith.addf %13, %16 : vector<64x1xf32>
    %c0_14 = arith.constant 0 : index
    %c0_15 = arith.constant 0 : index
    %18 = vector.load %arg5[%c0_14, %c0_15] : memref<64x1xf32, #tpu.memory_space<vmem>>, vector<64x1xf32>
    tpu.vector_store %arg5[%c0_14, %c0_15], %17 {strides = array<i32>} : memref<64x1xf32, #tpu.memory_space<vmem>>, vector<64x1xf32>,
    return
  }
  func.func @transform_0(%arg0: i32) -> (i32, i32) {
    %c0_i32 = arith.constant 0 : i32
    %c0_i32_0 = arith.constant 0 : i32
    %c0_i32_1 = arith.constant 0 : i32
    return %c0_i32, %c0_i32_0 : i32, i32
  }
  func.func @transform_1(%arg0: i32) -> (i32, i32) {
    %c0_i32 = arith.constant 0 : i32
    %c0_i32_0 = arith.constant 0 : i32
    return %c0_i32, %arg0 : i32, i32
  }
  func.func @transform_2(%arg0: i32) -> (i32, i32) {
    %c0_i32 = arith.constant 0 : i32
    %c0_i32_0 = arith.constant 0 : i32
    return %c0_i32, %arg0 : i32, i32
  }
  func.func @transform_3(%arg0: i32) -> (i32, i32) {
    %c0_i32 = arith.constant 0 : i32
    %c0_i32_0 = arith.constant 0 : i32
    %c0_i32_1 = arith.constant 0 : i32
    return %c0_i32, %c0_i32_0 : i32, i32
  }
  func.func @transform_4(%arg0: i32) -> (i32, i32) {
    %c0_i32 = arith.constant 0 : i32
    %c0_i32_0 = arith.constant 0 : i32
    %c0_i32_1 = arith.constant 0 : i32
    return %c0_i32, %c0_i32_0 : i32, i32
  }
}

module attributes {stable_mosaic.version = 11 : i64} {
  func.func @_affine_act_kernel(%arg0: i32, %arg1: memref<64x32xbf16, #tpu.memory_space<vmem>>, %arg2: memref<64x1xf32, #tpu.memory_space<vmem>>, %arg3: memref<64x1xf32, #tpu.memory_space<vmem>>, %arg4: memref<64x32xbf16, #tpu.memory_space<vmem>>) attributes {dimension_semantics = [#tpu.dimension_semantics<parallel>], iteration_bounds = array<i64: 1>, scalar_prefetch = 0 : i64, scratch_operands = 0 : i64, tpu.core_type = #tpu.core_type<tc>, window_params = [{transform_indices = @transform_0, window_bounds = array<i64: 64, 32>}, {pipeline_mode = #tpu.pipeline_mode<synchronous>, transform_indices = @transform_1, window_bounds = array<i64: 64, 1>}, {pipeline_mode = #tpu.pipeline_mode<synchronous>, transform_indices = @transform_2, window_bounds = array<i64: 64, 1>}, {transform_indices = @transform_3, window_bounds = array<i64: 64, 32>}]} {
    %c0 = arith.constant 0 : index
    %c0_0 = arith.constant 0 : index
    %0 = vector.load %arg1[%c0, %c0_0] : memref<64x32xbf16, #tpu.memory_space<vmem>>, vector<64x32xbf16>
    %1 = arith.extf %0 : vector<64x32xbf16> to vector<64x32xf32>
    %c0_1 = arith.constant 0 : index
    %c0_2 = arith.constant 0 : index
    %2 = vector.load %arg2[%c0_1, %c0_2] : memref<64x1xf32, #tpu.memory_space<vmem>>, vector<64x1xf32>
    %3 = vector.broadcast %2 : vector<64x1xf32> to vector<64x32xf32>
    %4 = arith.mulf %1, %3 : vector<64x32xf32>
    %c0_3 = arith.constant 0 : index
    %c0_4 = arith.constant 0 : index
    %5 = vector.load %arg3[%c0_3, %c0_4] : memref<64x1xf32, #tpu.memory_space<vmem>>, vector<64x1xf32>
    %6 = vector.broadcast %5 : vector<64x1xf32> to vector<64x32xf32>
    %7 = arith.addf %4, %6 : vector<64x32xf32>
    %cst = arith.constant 0.000000e+00 : f32
    %8 = vector.broadcast %cst : f32 to vector<64x32xf32>
    %9 = arith.maximumf %7, %8 : vector<64x32xf32>
    %10 = arith.truncf %9 : vector<64x32xf32> to vector<64x32xbf16>
    %c0_5 = arith.constant 0 : index
    %c0_6 = arith.constant 0 : index
    %11 = vector.load %arg4[%c0_5, %c0_6] : memref<64x32xbf16, #tpu.memory_space<vmem>>, vector<64x32xbf16>
    tpu.vector_store %arg4[%c0_5, %c0_6], %10 {strides = array<i32>} : memref<64x32xbf16, #tpu.memory_space<vmem>>, vector<64x32xbf16>,
    return
  }
  func.func @transform_0(%arg0: i32) -> (i32, i32) {
    %c0_i32 = arith.constant 0 : i32
    %c0_i32_0 = arith.constant 0 : i32
    return %c0_i32, %arg0 : i32, i32
  }
  func.func @transform_1(%arg0: i32) -> (i32, i32) {
    %c0_i32 = arith.constant 0 : i32
    %c0_i32_0 = arith.constant 0 : i32
    %c0_i32_1 = arith.constant 0 : i32
    return %c0_i32, %c0_i32_0 : i32, i32
  }
  func.func @transform_2(%arg0: i32) -> (i32, i32) {
    %c0_i32 = arith.constant 0 : i32
    %c0_i32_0 = arith.constant 0 : i32
    %c0_i32_1 = arith.constant 0 : i32
    return %c0_i32, %c0_i32_0 : i32, i32
  }
  func.func @transform_3(%arg0: i32) -> (i32, i32) {
    %c0_i32 = arith.constant 0 : i32
    %c0_i32_0 = arith.constant 0 : i32
    return %c0_i32, %arg0 : i32, i32
  }
}

module attributes {stable_mosaic.version = 11 : i64} {
  func.func @_gemm_stats_kernel(%arg0: i32, %arg1: memref<32x64xbf16, #tpu.memory_space<vmem>>, %arg2: memref<64x128xbf16, #tpu.memory_space<vmem>>, %arg3: memref<32x128xbf16, #tpu.memory_space<vmem>>, %arg4: memref<32x1xf32, #tpu.memory_space<vmem>>, %arg5: memref<32x1xf32, #tpu.memory_space<vmem>>) attributes {dimension_semantics = [#tpu.dimension_semantics<arbitrary>], iteration_bounds = array<i64: 1>, scalar_prefetch = 0 : i64, scratch_operands = 0 : i64, tpu.core_type = #tpu.core_type<tc>, window_params = [{pipeline_mode = #tpu.pipeline_mode<synchronous>, transform_indices = @transform_0, window_bounds = array<i64: 32, 64>}, {transform_indices = @transform_1, window_bounds = array<i64: 64, 128>}, {transform_indices = @transform_2, window_bounds = array<i64: 32, 128>}, {pipeline_mode = #tpu.pipeline_mode<synchronous>, transform_indices = @transform_3, window_bounds = array<i64: 32, 1>}, {pipeline_mode = #tpu.pipeline_mode<synchronous>, transform_indices = @transform_4, window_bounds = array<i64: 32, 1>}]} {
    %c0_i32 = arith.constant 0 : i32
    %0 = arith.cmpi eq, %arg0, %c0_i32 : i32
    %1 = arith.extui %0 : i1 to i32
    %c0_i32_0 = arith.constant 0 : i32
    %2 = arith.cmpi ne, %1, %c0_i32_0 : i32
    scf.if %2 {
      %cst_16 = arith.constant 0.000000e+00 : f32
      %19 = vector.broadcast %cst_16 : f32 to vector<32x1xf32>
      %c0_17 = arith.constant 0 : index
      %c0_18 = arith.constant 0 : index
      %20 = vector.load %arg4[%c0_17, %c0_18] : memref<32x1xf32, #tpu.memory_space<vmem>>, vector<32x1xf32>
      tpu.vector_store %arg4[%c0_17, %c0_18], %19 {strides = array<i32>} : memref<32x1xf32, #tpu.memory_space<vmem>>, vector<32x1xf32>,
      %cst_19 = arith.constant 0.000000e+00 : f32
      %21 = vector.broadcast %cst_19 : f32 to vector<32x1xf32>
      %c0_20 = arith.constant 0 : index
      %c0_21 = arith.constant 0 : index
      %22 = vector.load %arg5[%c0_20, %c0_21] : memref<32x1xf32, #tpu.memory_space<vmem>>, vector<32x1xf32>
      tpu.vector_store %arg5[%c0_20, %c0_21], %21 {strides = array<i32>} : memref<32x1xf32, #tpu.memory_space<vmem>>, vector<32x1xf32>,
    } else {
    }
    %c0 = arith.constant 0 : index
    %c0_1 = arith.constant 0 : index
    %3 = vector.load %arg1[%c0, %c0_1] : memref<32x64xbf16, #tpu.memory_space<vmem>>, vector<32x64xbf16>
    %c0_2 = arith.constant 0 : index
    %c0_3 = arith.constant 0 : index
    %4 = vector.load %arg2[%c0_2, %c0_3] : memref<64x128xbf16, #tpu.memory_space<vmem>>, vector<64x128xbf16>
    %cst = arith.constant dense<0.000000e+00> : vector<32x128xf32>
    %5 = tpu.matmul %3, %4, %cst {dimension_numbers = #tpu.dot_dimension_numbers<[1], [0], [0], [1], [0, 0, 1, 1], [], []>} : vector<32x64xbf16>, vector<64x128xbf16>, vector<32x128xf32> -> vector<32x128xf32>
    %6 = arith.truncf %5 : vector<32x128xf32> to vector<32x128xbf16>
    %c0_4 = arith.constant 0 : index
    %c0_5 = arith.constant 0 : index
    %7 = vector.load %arg3[%c0_4, %c0_5] : memref<32x128xbf16, #tpu.memory_space<vmem>>, vector<32x128xbf16>
    tpu.vector_store %arg3[%c0_4, %c0_5], %6 {strides = array<i32>} : memref<32x128xbf16, #tpu.memory_space<vmem>>, vector<32x128xbf16>,
    %c0_6 = arith.constant 0 : index
    %c0_7 = arith.constant 0 : index
    %8 = vector.load %arg4[%c0_6, %c0_7] : memref<32x1xf32, #tpu.memory_space<vmem>>, vector<32x1xf32>
    %cst_8 = arith.constant dense<0.000000e+00> : vector<32xf32>
    %9 = vector.multi_reduction <add>, %5, %cst_8 [1] : vector<32x128xf32> to vector<32xf32>
    %10 = vector.shape_cast %9 : vector<32xf32> to vector<32x1xf32>
    %11 = arith.addf %8, %10 : vector<32x1xf32>
    %c0_9 = arith.constant 0 : index
    %c0_10 = arith.constant 0 : index
    %12 = vector.load %arg4[%c0_9, %c0_10] : memref<32x1xf32, #tpu.memory_space<vmem>>, vector<32x1xf32>
    tpu.vector_store %arg4[%c0_9, %c0_10], %11 {strides = array<i32>} : memref<32x1xf32, #tpu.memory_space<vmem>>, vector<32x1xf32>,
    %c0_11 = arith.constant 0 : index
    %c0_12 = arith.constant 0 : index
    %13 = vector.load %arg5[%c0_11, %c0_12] : memref<32x1xf32, #tpu.memory_space<vmem>>, vector<32x1xf32>
    %14 = arith.mulf %5, %5 : vector<32x128xf32>
    %cst_13 = arith.constant dense<0.000000e+00> : vector<32xf32>
    %15 = vector.multi_reduction <add>, %14, %cst_13 [1] : vector<32x128xf32> to vector<32xf32>
    %16 = vector.shape_cast %15 : vector<32xf32> to vector<32x1xf32>
    %17 = arith.addf %13, %16 : vector<32x1xf32>
    %c0_14 = arith.constant 0 : index
    %c0_15 = arith.constant 0 : index
    %18 = vector.load %arg5[%c0_14, %c0_15] : memref<32x1xf32, #tpu.memory_space<vmem>>, vector<32x1xf32>
    tpu.vector_store %arg5[%c0_14, %c0_15], %17 {strides = array<i32>} : memref<32x1xf32, #tpu.memory_space<vmem>>, vector<32x1xf32>,
    return
  }
  func.func @transform_0(%arg0: i32) -> (i32, i32) {
    %c0_i32 = arith.constant 0 : i32
    %c0_i32_0 = arith.constant 0 : i32
    %c0_i32_1 = arith.constant 0 : i32
    return %c0_i32, %c0_i32_0 : i32, i32
  }
  func.func @transform_1(%arg0: i32) -> (i32, i32) {
    %c0_i32 = arith.constant 0 : i32
    %c0_i32_0 = arith.constant 0 : i32
    return %c0_i32, %arg0 : i32, i32
  }
  func.func @transform_2(%arg0: i32) -> (i32, i32) {
    %c0_i32 = arith.constant 0 : i32
    %c0_i32_0 = arith.constant 0 : i32
    return %c0_i32, %arg0 : i32, i32
  }
  func.func @transform_3(%arg0: i32) -> (i32, i32) {
    %c0_i32 = arith.constant 0 : i32
    %c0_i32_0 = arith.constant 0 : i32
    %c0_i32_1 = arith.constant 0 : i32
    return %c0_i32, %c0_i32_0 : i32, i32
  }
  func.func @transform_4(%arg0: i32) -> (i32, i32) {
    %c0_i32 = arith.constant 0 : i32
    %c0_i32_0 = arith.constant 0 : i32
    %c0_i32_1 = arith.constant 0 : i32
    return %c0_i32, %c0_i32_0 : i32, i32
  }
}

module attributes {stable_mosaic.version = 11 : i64} {
  func.func @_affine_act_kernel(%arg0: i32, %arg1: memref<32x128xbf16, #tpu.memory_space<vmem>>, %arg2: memref<32x1xf32, #tpu.memory_space<vmem>>, %arg3: memref<32x1xf32, #tpu.memory_space<vmem>>, %arg4: memref<32x128xbf16, #tpu.memory_space<vmem>>) attributes {dimension_semantics = [#tpu.dimension_semantics<parallel>], iteration_bounds = array<i64: 1>, scalar_prefetch = 0 : i64, scratch_operands = 0 : i64, tpu.core_type = #tpu.core_type<tc>, window_params = [{transform_indices = @transform_0, window_bounds = array<i64: 32, 128>}, {pipeline_mode = #tpu.pipeline_mode<synchronous>, transform_indices = @transform_1, window_bounds = array<i64: 32, 1>}, {pipeline_mode = #tpu.pipeline_mode<synchronous>, transform_indices = @transform_2, window_bounds = array<i64: 32, 1>}, {transform_indices = @transform_3, window_bounds = array<i64: 32, 128>}]} {
    %c0 = arith.constant 0 : index
    %c0_0 = arith.constant 0 : index
    %0 = vector.load %arg1[%c0, %c0_0] : memref<32x128xbf16, #tpu.memory_space<vmem>>, vector<32x128xbf16>
    %1 = arith.extf %0 : vector<32x128xbf16> to vector<32x128xf32>
    %c0_1 = arith.constant 0 : index
    %c0_2 = arith.constant 0 : index
    %2 = vector.load %arg2[%c0_1, %c0_2] : memref<32x1xf32, #tpu.memory_space<vmem>>, vector<32x1xf32>
    %3 = vector.broadcast %2 : vector<32x1xf32> to vector<32x128xf32>
    %4 = arith.mulf %1, %3 : vector<32x128xf32>
    %c0_3 = arith.constant 0 : index
    %c0_4 = arith.constant 0 : index
    %5 = vector.load %arg3[%c0_3, %c0_4] : memref<32x1xf32, #tpu.memory_space<vmem>>, vector<32x1xf32>
    %6 = vector.broadcast %5 : vector<32x1xf32> to vector<32x128xf32>
    %7 = arith.addf %4, %6 : vector<32x128xf32>
    %cst = arith.constant 0.000000e+00 : f32
    %8 = vector.broadcast %cst : f32 to vector<32x128xf32>
    %9 = arith.maximumf %7, %8 : vector<32x128xf32>
    %10 = arith.truncf %9 : vector<32x128xf32> to vector<32x128xbf16>
    %c0_5 = arith.constant 0 : index
    %c0_6 = arith.constant 0 : index
    %11 = vector.load %arg4[%c0_5, %c0_6] : memref<32x128xbf16, #tpu.memory_space<vmem>>, vector<32x128xbf16>
    tpu.vector_store %arg4[%c0_5, %c0_6], %10 {strides = array<i32>} : memref<32x128xbf16, #tpu.memory_space<vmem>>, vector<32x128xbf16>,
    return
  }
  func.func @transform_0(%arg0: i32) -> (i32, i32) {
    %c0_i32 = arith.constant 0 : i32
    %c0_i32_0 = arith.constant 0 : i32
    return %c0_i32, %arg0 : i32, i32
  }
  func.func @transform_1(%arg0: i32) -> (i32, i32) {
    %c0_i32 = arith.constant 0 : i32
    %c0_i32_0 = arith.constant 0 : i32
    %c0_i32_1 = arith.constant 0 : i32
    return %c0_i32, %c0_i32_0 : i32, i32
  }
  func.func @transform_2(%arg0: i32) -> (i32, i32) {
    %c0_i32 = arith.constant 0 : i32
    %c0_i32_0 = arith.constant 0 : i32
    %c0_i32_1 = arith.constant 0 : i32
    return %c0_i32, %c0_i32_0 : i32, i32
  }
  func.func @transform_3(%arg0: i32) -> (i32, i32) {
    %c0_i32 = arith.constant 0 : i32
    %c0_i32_0 = arith.constant 0 : i32
    return %c0_i32, %arg0 : i32, i32
  }
}

module attributes {stable_mosaic.version = 11 : i64} {
  func.func @_gemm_bias_act_kernel(%arg0: i32, %arg1: memref<16x400xbf16, #tpu.memory_space<vmem>>, %arg2: memref<400x128xbf16, #tpu.memory_space<vmem>>, %arg3: memref<8x1xf32, #tpu.memory_space<vmem>>, %arg4: memref<8x128xf32, #tpu.memory_space<vmem>>) attributes {dimension_semantics = [#tpu.dimension_semantics<parallel>], iteration_bounds = array<i64: 4>, scalar_prefetch = 0 : i64, scratch_operands = 0 : i64, tpu.core_type = #tpu.core_type<tc>, window_params = [{pipeline_mode = #tpu.pipeline_mode<synchronous>, transform_indices = @transform_0, window_bounds = array<i64: 16, 400>}, {transform_indices = @transform_1, window_bounds = array<i64: 400, 128>}, {pipeline_mode = #tpu.pipeline_mode<synchronous>, transform_indices = @transform_2, window_bounds = array<i64: 8, 1>}, {transform_indices = @transform_3, window_bounds = array<i64: 8, 128>}]} {
    %c0 = arith.constant 0 : index
    %c0_0 = arith.constant 0 : index
    %0 = vector.load %arg1[%c0, %c0_0] : memref<16x400xbf16, #tpu.memory_space<vmem>>, vector<16x400xbf16>
    %c0_1 = arith.constant 0 : index
    %c0_2 = arith.constant 0 : index
    %1 = vector.load %arg2[%c0_1, %c0_2] : memref<400x128xbf16, #tpu.memory_space<vmem>>, vector<400x128xbf16>
    %cst = arith.constant dense<0.000000e+00> : vector<16x128xf32>
    %2 = tpu.matmul %0, %1, %cst {dimension_numbers = #tpu.dot_dimension_numbers<[1], [0], [0], [1], [0, 0, 1, 1], [], []>} : vector<16x400xbf16>, vector<400x128xbf16>, vector<16x128xf32> -> vector<16x128xf32>
    %3 = vector.extract_strided_slice %2 {offsets = [0, 0], sizes = [8, 128], strides = [1, 1]} : vector<16x128xf32> to vector<8x128xf32>
    %c0_3 = arith.constant 0 : index
    %c0_4 = arith.constant 0 : index
    %4 = vector.load %arg3[%c0_3, %c0_4] : memref<8x1xf32, #tpu.memory_space<vmem>>, vector<8x1xf32>
    %5 = vector.broadcast %4 : vector<8x1xf32> to vector<8x128xf32>
    %6 = arith.addf %3, %5 : vector<8x128xf32>
    %7 = math.tanh %6 : vector<8x128xf32>
    %c0_5 = arith.constant 0 : index
    %c0_6 = arith.constant 0 : index
    %8 = vector.load %arg4[%c0_5, %c0_6] : memref<8x128xf32, #tpu.memory_space<vmem>>, vector<8x128xf32>
    tpu.vector_store %arg4[%c0_5, %c0_6], %7 {strides = array<i32>} : memref<8x128xf32, #tpu.memory_space<vmem>>, vector<8x128xf32>,
    return
  }
  func.func @transform_0(%arg0: i32) -> (i32, i32) {
    %c0_i32 = arith.constant 0 : i32
    %c0_i32_0 = arith.constant 0 : i32
    %c0_i32_1 = arith.constant 0 : i32
    return %c0_i32, %c0_i32_0 : i32, i32
  }
  func.func @transform_1(%arg0: i32) -> (i32, i32) {
    %c0_i32 = arith.constant 0 : i32
    %c0_i32_0 = arith.constant 0 : i32
    return %c0_i32, %arg0 : i32, i32
  }
  func.func @transform_2(%arg0: i32) -> (i32, i32) {
    %c0_i32 = arith.constant 0 : i32
    %c0_i32_0 = arith.constant 0 : i32
    %c0_i32_1 = arith.constant 0 : i32
    return %c0_i32, %c0_i32_0 : i32, i32
  }
  func.func @transform_3(%arg0: i32) -> (i32, i32) {
    %c0_i32 = arith.constant 0 : i32
    %c0_i32_0 = arith.constant 0 : i32
    return %c0_i32, %arg0 : i32, i32
  }
}

</mosaic_0001>

<llo_original>
// kernel: resnet_generator_forward.19
$region0: #{resnet_generator_forward.19}
  #allocation0 [shape = 'u32[]', space=smem, size = 0x4, offset = 0x4, fixed_abs, tag = 'smem constant byte address 0x4 - core index']
  #allocation1 [shape = 'u32[144,128]{1,0:T(1,128)}', space=vmem, size = 0x12000, scoped, tag = 'internal scratch']
  %s0 = inlined_call_operand.vmem [shape: bf16[16,160], index: 0, kind: input, shape index: {}]
  %s1 = inlined_call_operand.vmem [shape: bf16[160,512], index: 1, kind: input, shape index: {}]
  %s2 = inlined_call_operand.vmem [shape: bf16[8,512], index: 2, kind: output, shape index: {0}]
  %s3 = inlined_call_operand.vmem [shape: f32[8,1], index: 3, kind: output, shape index: {1}]
  %s4 = inlined_call_operand.vmem [shape: f32[8,1], index: 4, kind: output, shape index: {2}]
  %5 = xla_tuple %s2, %s3, %s4
  %s6 = sld [smem:[#allocation0]]
  $region102: #{resnet_generator_forward.19} parent=0
    _
  %s8 = ssub.s32 1, %s6
  %s9 = scalar_select 0, %s8, %s6
  $region1: #{resnet_generator_forward.19} parent=0
    #allocation2 [shape = 'u8[81920]{0}', space=vmem, size = 0x14000, scoped, tag = 'input window, operand 1']
    loop: start=0, step=1, limit=6
    $region2: #{resnet_generator_forward.19} parent=1 // loop_pre_header
      _
    $region3: #{resnet_generator_forward.19} parent=1 // loop_header
      %s11 = sphi 0, %s15
      %p12 = scmp.ge.s32.totalorder %s11, 6
      %s19 = sphi 0, %s19
      %s21 = sphi 0, %s19
      %s22 = sphi 0, %s21
      %s36 = sphi 0, %s22
      %s42 = sphi 0, %s44
      %s45 = sphi 0, %s42
      %s46 = sphi 0, %s45
      %s62 = sphi 0, %s46
      %s68 = sphi 0, %s70
      %s71 = sphi 0, %s68
      %s72 = sphi 0, %s71
      %s88 = sphi 0, %s72
      %s92 = sphi 0, %s92
      %s94 = sphi 0, %s92
      %s95 = sphi 0, %s94
      %s109 = sphi 0, %s95
      %s113 = sphi 0, %s113
      %s115 = sphi 0, %s113
      %s116 = sphi 0, %s115
      %s130 = sphi 0, %s116
    $region4: #{resnet_generator_forward.19} parent=1 // loop_header_branch
      %14 = sbr.rel (%p12) target = $region8
    $region5: #{resnet_generator_forward.19} parent=1 // loop_body
      %s16 = ssub.s32 %s11, 1
      %s17 = ssub.s32 %s11, 2
      %s18 = sadd.s32 %s11, 1
      %s20 = sadd.s32 %s19, 1
      %p23 = scmp.eq.s32.totalorder %s11, 3
      %p24 = scmp.ne.s32.totalorder %s19, %s21
      %p25 = scmp.eq.s32.totalorder %s11, 0
      %p26 = por %p24, %p25
      %p27 = scmp.ne.s32.totalorder %s19, %s21
      %p28 = scmp.eq.s32.totalorder %s16, 3
      %p29 = por %p27, %p28
      %p30 = scmp.ne.s32.totalorder %s21, %s22
      %p31 = scmp.eq.s32.totalorder %s16, 0
      %p32 = por %p30, %p31
      %p33 = scmp.ne.s32.totalorder %s21, %s22
      %p34 = scmp.eq.s32.totalorder %s17, 3
      %p35 = por %p33, %p34
      %p37 = scmp.ne.s32.totalorder %s22, %s36
      %p38 = scmp.eq.s32.totalorder %s17, 0
      %p39 = por %p37, %p38
      %s40 = ssub.s32 %s11, %s18
      %p41 = scmp.eq.s32.totalorder %s40, 0
      %s43 = sadd.s32 %s42, 1
      %s44 = scalar_select %p41, %s42, %s43
      %p47 = pneg %p41
      %p48 = scmp.eq.s32.totalorder %s11, 3
      %p49 = por %p47, %p48
      %p50 = scmp.ne.s32.totalorder %s42, %s45
      %p51 = scmp.eq.s32.totalorder %s11, 0
      %p52 = por %p50, %p51
      %p53 = scmp.ne.s32.totalorder %s42, %s45
      %p54 = scmp.eq.s32.totalorder %s16, 3
      %p55 = por %p53, %p54
      %p56 = scmp.ne.s32.totalorder %s45, %s46
      %p57 = scmp.eq.s32.totalorder %s16, 0
      %p58 = por %p56, %p57
      %p59 = scmp.ne.s32.totalorder %s45, %s46
      %p60 = scmp.eq.s32.totalorder %s17, 3
      %p61 = por %p59, %p60
      %p63 = scmp.ne.s32.totalorder %s46, %s62
      %p64 = scmp.eq.s32.totalorder %s17, 0
      %p65 = por %p63, %p64
      %s66 = ssub.s32 %s11, %s18
      %p67 = scmp.eq.s32.totalorder %s66, 0
      %s69 = sadd.s32 %s68, 1
      %s70 = scalar_select %p67, %s68, %s69
      %p73 = pneg %p67
      %p74 = scmp.eq.s32.totalorder %s11, 3
      %p75 = por %p73, %p74
      %p76 = scmp.ne.s32.totalorder %s68, %s71
      %p77 = scmp.eq.s32.totalorder %s11, 0
      %p78 = por %p76, %p77
      %p79 = scmp.ne.s32.totalorder %s68, %s71
      %p80 = scmp.eq.s32.totalorder %s16, 3
      %p81 = por %p79, %p80
      %p82 = scmp.ne.s32.totalorder %s71, %s72
      %p83 = scmp.eq.s32.totalorder %s16, 0
      %p84 = por %p82, %p83
      %p85 = scmp.ne.s32.totalorder %s71, %s72
      %p86 = scmp.eq.s32.totalorder %s17, 3
      %p87 = por %p85, %p86
      %p89 = scmp.ne.s32.totalorder %s72, %s88
      %p90 = scmp.eq.s32.totalorder %s17, 0
      %p91 = por %p89, %p90
      %s93 = sadd.s32 %s92, 1
      %p96 = scmp.eq.s32.totalorder %s11, 3
      %p97 = scmp.ne.s32.totalorder %s92, %s94
      %p98 = scmp.eq.s32.totalorder %s11, 0
      %p99 = por %p97, %p98
      %p100 = scmp.ne.s32.totalorder %s92, %s94
      %p101 = scmp.eq.s32.totalorder %s16, 3
      %p102 = por %p100, %p101
      %p103 = scmp.ne.s32.totalorder %s94, %s95
      %p104 = scmp.eq.s32.totalorder %s16, 0
      %p105 = por %p103, %p104
      %p106 = scmp.ne.s32.totalorder %s94, %s95
      %p107 = scmp.eq.s32.totalorder %s17, 3
      %p108 = por %p106, %p107
      %p110 = scmp.ne.s32.totalorder %s95, %s109
      %p111 = scmp.eq.s32.totalorder %s17, 0
      %p112 = por %p110, %p111
      %s114 = sadd.s32 %s113, 1
      %p117 = scmp.eq.s32.totalorder %s11, 3
      %p118 = scmp.ne.s32.totalorder %s113, %s115
      %p119 = scmp.eq.s32.totalorder %s11, 0
      %p120 = por %p118, %p119
      %p121 = scmp.ne.s32.totalorder %s113, %s115
      %p122 = scmp.eq.s32.totalorder %s16, 3
      %p123 = por %p121, %p122
      %p124 = scmp.ne.s32.totalorder %s115, %s116
      %p125 = scmp.eq.s32.totalorder %s16, 0
      %p126 = por %p124, %p125
      %p127 = scmp.ne.s32.totalorder %s115, %s116
      %p128 = scmp.eq.s32.totalorder %s17, 3
      %p129 = por %p127, %p128
      %p131 = scmp.ne.s32.totalorder %s116, %s130
      %p132 = scmp.eq.s32.totalorder %s17, 0
      %p133 = por %p131, %p132
      %p134 = scmp.le.s32.totalorder 1, %s11
      %p135 = scmp.lt.s32.totalorder %s11, 5
      %p136 = pnand %p134, %p135
      %p137 = pneg %p136
      // Predicated region
      $region9: #{resnet_generator_forward.19} parent=5 // pred_check
        _
      $region10: #{resnet_generator_forward.19} parent=5 // pred_check_branch
        %139 = sbr.rel (%p136) target = $region12
      $region11: #{resnet_generator_forward.19} parent=5 // pred_region
        %s140 = ssub.s32 %s11, 1
        // Predicated region
        $region13: #{resnet_generator_forward.19} parent=11 // pred_check
          %p141 = pneg %p32
        $region14: #{resnet_generator_forward.19} parent=11 // pred_check_branch
          %143 = sbr.rel (%p141) target = $region16
        $region15: #{resnet_generator_forward.19} parent=11 // pred_region
          _
        $region16: #{resnet_generator_forward.19} parent=11 // pred_fallthru
          _
      $region12: #{resnet_generator_forward.19} parent=5 // pred_fallthru
        _
      %p144 = scmp.lt.s32.totalorder %s11, 4
      // Predicated region
      $region17: #{resnet_generator_forward.19} parent=5 // pred_check
        %p145 = pneg %p144
      $region18: #{resnet_generator_forward.19} parent=5 // pred_check_branch
        %147 = sbr.rel (%p145) target = $region20
      $region19: #{resnet_generator_forward.19} parent=5 // pred_region
        // Predicated region
        $region21: #{resnet_generator_forward.19} parent=19 // pred_check
          %p148 = pneg %p52
        $region22: #{resnet_generator_forward.19} parent=19 // pred_check_branch
          %150 = sbr.rel (%p148) target = $region24
        $region23: #{resnet_generator_forward.19} parent=19 // pred_region
          %s151 = sand.u32 %s42, 1
          %s152 = sand.u32 %s42, 1
          %s153 = smul.addr %s152, 80
          %s154 = scalar_lea.vmem [#allocation2], %s153
          %s155 = smul.addr %s11, 4
          %s156 = scalar_lea.vmem %s1, %s155
          // Predicated region
          $region25: #{resnet_generator_forward.19} parent=23 // pred_check
            _
          $region26: #{resnet_generator_forward.19} parent=23 // pred_check_branch
            %158 = sbr.rel (0) target = $region28
          $region27: #{resnet_generator_forward.19} parent=23 // pred_region
            // Predicated region
            $region29: #{resnet_generator_forward.19} parent=27 // pred_check
              _
            $region30: #{resnet_generator_forward.19} parent=27 // pred_check_branch
              %160 = sbr.rel target = $region32
            $region31: #{resnet_generator_forward.19} parent=27 // pred_region
              // Predicated region
              $region44: #{resnet_generator_forward.19} parent=31 // pred_check
                _
              $region45: #{resnet_generator_forward.19} parent=31 // pred_check_branch
                %213 = sbr.rel (0) target = $region47
              $region46: #{resnet_generator_forward.19} parent=31 // pred_region
                loop: start=0, step=1, limit=1
                $region48: #{resnet_generator_forward.19} parent=46 // loop_pre_header
                  _
                $region49: #{resnet_generator_forward.19} parent=46 // loop_header
                  %s215 = sphi 0, %s219
                  %p216 = scmp.ge.s32.totalorder %s215, 1
                  %s220 = sphi %s156, %s156
                  %s221 = sphi %s154, %s154
                $region50: #{resnet_generator_forward.19} parent=46 // loop_header_branch
                  %218 = sbr.rel (%p216) target = $region54
                $region51: #{resnet_generator_forward.19} parent=46 // loop_body
                  _
                $region52: #{resnet_generator_forward.19} parent=46 // loop_footer
                  %s219 = sadd.s32 1, %s215
                $region53: #{resnet_generator_forward.19} parent=46 // loop_footer_branch
                  %214 = sbr.rel target = $region49
                $region54: #{resnet_generator_forward.19} parent=46 // loop_exit
                  _
                loop: start=0, step=1, limit=1
                $region55: #{resnet_generator_forward.19} parent=46 // loop_pre_header
                  _
                $region56: #{resnet_generator_forward.19} parent=46 // loop_header
                  %s224 = sphi 0, %s228
                  %p225 = scmp.ge.s32.totalorder %s224, 1
                  %s229 = sphi %s156, %s156
                  %s230 = sphi %s154, %s154
                $region57: #{resnet_generator_forward.19} parent=46 // loop_header_branch
                  %227 = sbr.rel (%p225) target = $region61
                $region58: #{resnet_generator_forward.19} parent=46 // loop_body
                  %v231 = vld [vmem:[%s229] sm:$0xf]
                  %232 = vst [vmem:[%s230] sm:$0xf] %v231
                  %v233 = vld [vmem:[%s229 + $0x10] sm:$0xf]
                  %234 = vst [vmem:[%s230 + $0x4] sm:$0xf] %v233
                  %v235 = vld [vmem:[%s229 + $0x20] sm:$0xf]
                  %236 = vst [vmem:[%s230 + $0x8] sm:$0xf] %v235
                  %v237 = vld [vmem:[%s229 + $0x30] sm:$0xf]
                  %238 = vst [vmem:[%s230 + $0xc] sm:$0xf] %v237
                  %v239 = vld [vmem:[%s229 + $0x40] sm:$0xf]
                  %240 = vst [vmem:[%s230 + $0x10] sm:$0xf] %v239
                  %v241 = vld [vmem:[%s229 + $0x50] sm:$0xf]
                  %242 = vst [vmem:[%s230 + $0x14] sm:$0xf] %v241
                  %v243 = vld [vmem:[%s229 + $0x60] sm:$0xf]
                  %244 = vst [vmem:[%s230 + $0x18] sm:$0xf] %v243
                  %v245 = vld [vmem:[%s229 + $0x70] sm:$0xf]
                  %246 = vst [vmem:[%s230 + $0x1c] sm:$0xf] %v245
                  %v247 = vld [vmem:[%s229 + $0x80] sm:$0xf]
                  %248 = vst [vmem:[%s230 + $0x20] sm:$0xf] %v247
                  %v249 = vld [vmem:[%s229 + $0x90] sm:$0xf]
                  %250 = vst [vmem:[%s230 + $0x24] sm:$0xf] %v249
                  %v251 = vld [vmem:[%s229 + $0xa0] sm:$0xf]
                  %252 = vst [vmem:[%s230 + $0x28] sm:$0xf] %v251
                  %v253 = vld [vmem:[%s229 + $0xb0] sm:$0xf]
                  %254 = vst [vmem:[%s230 + $0x2c] sm:$0xf] %v253
                  %v255 = vld [vmem:[%s229 + $0xc0] sm:$0xf]
                  %256 = vst [vmem:[%s230 + $0x30] sm:$0xf] %v255
                  %v257 = vld [vmem:[%s229 + $0xd0] sm:$0xf]
                  %258 = vst [vmem:[%s230 + $0x34] sm:$0xf] %v257
                  %v259 = vld [vmem:[%s229 + $0xe0] sm:$0xf]
                  %260 = vst [vmem:[%s230 + $0x38] sm:$0xf] %v259
                  %v261 = vld [vmem:[%s229 + $0xf0] sm:$0xf]
                  %262 = vst [vmem:[%s230 + $0x3c] sm:$0xf] %v261
                  %v263 = vld [vmem:[%s229 + $0x100] sm:$0xf]
                  %264 = vst [vmem:[%s230 + $0x40] sm:$0xf] %v263
                  %v265 = vld [vmem:[%s229 + $0x110] sm:$0xf]
                  %266 = vst [vmem:[%s230 + $0x44] sm:$0xf] %v265
                  %v267 = vld [vmem:[%s229 + $0x120] sm:$0xf]
                  %268 = vst [vmem:[%s230 + $0x48] sm:$0xf] %v267
                  %v269 = vld [vmem:[%s229 + $0x130] sm:$0xf]
                  %270 = vst [vmem:[%s230 + $0x4c] sm:$0xf] %v269
                $region59: #{resnet_generator_forward.19} parent=46 // loop_footer
                  %s228 = sadd.s32 1, %s224
                $region60: #{resnet_generator_forward.19} parent=46 // loop_footer_branch
                  %223 = sbr.rel target = $region56
                $region61: #{resnet_generator_forward.19} parent=46 // loop_exit
                  _
              $region47: #{resnet_generator_forward.19} parent=31 // pred_fallthru
                _
            $region32: #{resnet_generator_forward.19} parent=27 // pred_fallthru
              _
            // Predicated region
            $region33: #{resnet_generator_forward.19} parent=27 // pred_check
              _
            $region34: #{resnet_generator_forward.19} parent=27 // pred_check_branch
              %162 = sbr.rel (0) target = $region36
            $region35: #{resnet_generator_forward.19} parent=27 // pred_region
              loop: start=0, step=1, limit=1
              $region37: #{resnet_generator_forward.19} parent=35 // loop_pre_header
                _
              $region38: #{resnet_generator_forward.19} parent=35 // loop_header
                %s165 = sphi 0, %s169
                %p166 = scmp.ge.s32.totalorder %s165, 1
                %s170 = sphi %s156, %s156
                %s171 = sphi %s154, %s154
              $region39: #{resnet_generator_forward.19} parent=35 // loop_header_branch
                %168 = sbr.rel (%p166) target = $region43
              $region40: #{resnet_generator_forward.19} parent=35 // loop_body
                %v172 = vld [vmem:[%s170] sm:$0xf]
                %173 = vst [vmem:[%s171] sm:$0xf] %v172
                %v174 = vld [vmem:[%s170 + $0x10] sm:$0xf]
                %175 = vst [vmem:[%s171 + $0x4] sm:$0xf] %v174
                %v176 = vld [vmem:[%s170 + $0x20] sm:$0xf]
                %177 = vst [vmem:[%s171 + $0x8] sm:$0xf] %v176
                %v178 = vld [vmem:[%s170 + $0x30] sm:$0xf]
                %179 = vst [vmem:[%s171 + $0xc] sm:$0xf] %v178
                %v180 = vld [vmem:[%s170 + $0x40] sm:$0xf]
                %181 = vst [vmem:[%s171 + $0x10] sm:$0xf] %v180
                %v182 = vld [vmem:[%s170 + $0x50] sm:$0xf]
                %183 = vst [vmem:[%s171 + $0x14] sm:$0xf] %v182
                %v184 = vld [vmem:[%s170 + $0x60] sm:$0xf]
                %185 = vst [vmem:[%s171 + $0x18] sm:$0xf] %v184
                %v186 = vld [vmem:[%s170 + $0x70] sm:$0xf]
                %187 = vst [vmem:[%s171 + $0x1c] sm:$0xf] %v186
                %v188 = vld [vmem:[%s170 + $0x80] sm:$0xf]
                %189 = vst [vmem:[%s171 + $0x20] sm:$0xf] %v188
                %v190 = vld [vmem:[%s170 + $0x90] sm:$0xf]
                %191 = vst [vmem:[%s171 + $0x24] sm:$0xf] %v190
                %v192 = vld [vmem:[%s170 + $0xa0] sm:$0xf]
                %193 = vst [vmem:[%s171 + $0x28] sm:$0xf] %v192
                %v194 = vld [vmem:[%s170 + $0xb0] sm:$0xf]
                %195 = vst [vmem:[%s171 + $0x2c] sm:$0xf] %v194
                %v196 = vld [vmem:[%s170 + $0xc0] sm:$0xf]
                %197 = vst [vmem:[%s171 + $0x30] sm:$0xf] %v196
                %v198 = vld [vmem:[%s170 + $0xd0] sm:$0xf]
                %199 = vst [vmem:[%s171 + $0x34] sm:$0xf] %v198
                %v200 = vld [vmem:[%s170 + $0xe0] sm:$0xf]
                %201 = vst [vmem:[%s171 + $0x38] sm:$0xf] %v200
                %v202 = vld [vmem:[%s170 + $0xf0] sm:$0xf]
                %203 = vst [vmem:[%s171 + $0x3c] sm:$0xf] %v202
                %v204 = vld [vmem:[%s170 + $0x100] sm:$0xf]
                %205 = vst [vmem:[%s171 + $0x40] sm:$0xf] %v204
                %v206 = vld [vmem:[%s170 + $0x110] sm:$0xf]
                %207 = vst [vmem:[%s171 + $0x44] sm:$0xf] %v206
                %v208 = vld [vmem:[%s170 + $0x120] sm:$0xf]
                %209 = vst [vmem:[%s171 + $0x48] sm:$0xf] %v208
                %v210 = vld [vmem:[%s170 + $0x130] sm:$0xf]
                %211 = vst [vmem:[%s171 + $0x4c] sm:$0xf] %v210
              $region41: #{resnet_generator_forward.19} parent=35 // loop_footer
                %s169 = sadd.s32 1, %s165
              $region42: #{resnet_generator_forward.19} parent=35 // loop_footer_branch
                %164 = sbr.rel target = $region38
              $region43: #{resnet_generator_forward.19} parent=35 // loop_exit
                _
            $region36: #{resnet_generator_forward.19} parent=27 // pred_fallthru
              _
          $region28: #{resnet_generator_forward.19} parent=23 // pred_fallthru
            _
          %271 = vnop
        $region24: #{resnet_generator_forward.19} parent=19 // pred_fallthru
          _
      $region20: #{resnet_generator_forward.19} parent=5 // pred_fallthru
        _
      %p272 = scmp.le.s32.totalorder 1, %s11
      %p273 = scmp.lt.s32.totalorder %s11, 5
      %p274 = pnand %p272, %p273
      %p275 = pneg %p274
      // Predicated region
      $region62: #{resnet_generator_forward.19} parent=5 // pred_check
        _
      $region63: #{resnet_generator_forward.19} parent=5 // pred_check_branch
        %277 = sbr.rel (%p274) target = $region65
      $region64: #{resnet_generator_forward.19} parent=5 // pred_region
        %s278 = ssub.s32 %s11, 1
        %s279 = sand.u32 %s45, 1
        %s280 = sand.u32 %s45, 1
        %s281 = smul.addr %s280, 80
        %s282 = scalar_lea.vmem [#allocation2], %s281
        // Predicated region
        $region66: #{resnet_generator_forward.19} parent=64 // pred_check
          %p283 = pneg %p58
        $region67: #{resnet_generator_forward.19} parent=64 // pred_check_branch
          %285 = sbr.rel (%p283) target = $region69
        $region68: #{resnet_generator_forward.19} parent=64 // pred_region
          _
        $region69: #{resnet_generator_forward.19} parent=64 // pred_fallthru
          _
        %p286 = pneg %p32
        %p287 = pneg %p29
        %s288 = sand.u32 %s45, 1
        %s289 = sand.u32 %s45, 1
        %s290 = smul.addr %s289, 80
        %s291 = scalar_lea.vmem [#allocation2], %s290
        %p292 = pneg %p58
        %p293 = pneg %p55
        %p294 = pneg %p84
        %p295 = pneg %p81
        %p296 = scmp.lt.s32.totalorder %s16, 3
        %s297 = scalar_select %p296, %s16, 3
        %s298 = smul.addr %s297, 4
        %s299 = scalar_lea.vmem %s2, %s298
        %p300 = pneg %p105
        %p301 = pneg %p102
        %p302 = pneg %p126
        %p303 = pneg %p123
        %p304 = scmp.lt.s32.totalorder %s16, 3
        %s305 = scalar_select %p304, %s16, 3
        %s306 = smul.addr %s305, 4
        %s307 = scalar_lea.vmem %s2, %s306
        %p309 = scmp.eq.s32.totalorder %s16, 0
        // Predicated region
        $region70: #{resnet_generator_forward.19} parent=64 // pred_check
          %p310 = pneg %p309
        $region71: #{resnet_generator_forward.19} parent=64 // pred_check_branch
          %312 = sbr.rel (%p310) target = $region73
        $region72: #{resnet_generator_forward.19} parent=64 // pred_region
          %vm313 = vcmask 7168
          %314 = vst.msk [vmem:[%s3] sm:$0xff] %vm313, 0.0
          %315 = vst.msk [vmem:[%s4] sm:$0xff] %vm313, 0.0
        $region73: #{resnet_generator_forward.19} parent=64 // pred_fallthru
          _
        %v316 = vld [vmem:[%s0] sm:$0xff]
        %v317 = vld [vmem:[%s0 + $0x8] sm:$0xff]
        %v318 = vld [vmem:[%s282] sm:$0xf]
        %v319 = vld [vmem:[%s282 + $0x4] sm:$0xf]
        %v320 = vld [vmem:[%s282 + $0x8] sm:$0xf]
        %v321 = vld [vmem:[%s282 + $0xc] sm:$0xf]
        %v322 = vld [vmem:[%s282 + $0x10] sm:$0xf]
        %v323 = vld [vmem:[%s282 + $0x14] sm:$0xf]
        %v324 = vld [vmem:[%s282 + $0x18] sm:$0xf]
        %v325 = vld [vmem:[%s282 + $0x1c] sm:$0xf]
        %v326 = vld [vmem:[%s282 + $0x20] sm:$0xf]
        %v327 = vld [vmem:[%s282 + $0x24] sm:$0xf]
        %v328 = vld [vmem:[%s282 + $0x28] sm:$0xf]
        %v329 = vld [vmem:[%s282 + $0x2c] sm:$0xf]
        %v330 = vld [vmem:[%s282 + $0x30] sm:$0xf]
        %v331 = vld [vmem:[%s282 + $0x34] sm:$0xf]
        %v332 = vld [vmem:[%s282 + $0x38] sm:$0xf]
        %v333 = vld [vmem:[%s282 + $0x3c] sm:$0xf]
        %v334 = vld [vmem:[%s282 + $0x40] sm:$0xf]
        %v335 = vld [vmem:[%s282 + $0x44] sm:$0xf]
        %v336 = vld [vmem:[%s282 + $0x48] sm:$0xf]
        %v337 = vld [vmem:[%s282 + $0x4c] sm:$0xf]
        %v340 = vunpack.c.l.b16 %v316
        %v341 = vunpack.c.h.b16 %v316
        %v342 = vunpack.c.l.b16 %v317
        %v343 = vunpack.c.h.b16 %v317
        %v344 = vpack.c.b16 %v342, %v340
        %v345 = vpack.c.b16 %v343, %v341
        %v367 = vunpack.c.l.b16 %v318
        %v368 = vunpack.c.l.b16 %v319
        %v369 = vunpack.c.l.b16 %v320
        %v370 = vunpack.c.l.b16 %v321
        %v371 = vunpack.c.l.b16 %v322
        %v372 = vunpack.c.l.b16 %v323
        %v373 = vunpack.c.l.b16 %v324
        %v374 = vunpack.c.l.b16 %v325
        %v375 = vunpack.c.l.b16 %v326
        %v376 = vunpack.c.l.b16 %v327
        %v377 = vunpack.c.l.b16 %v328
        %v378 = vunpack.c.l.b16 %v329
        %v379 = vunpack.c.l.b16 %v330
        %v380 = vunpack.c.l.b16 %v331
        %v381 = vunpack.c.l.b16 %v332
        %v382 = vunpack.c.l.b16 %v333
        %v383 = vunpack.c.l.b16 %v334
        %v384 = vunpack.c.l.b16 %v335
        %v385 = vunpack.c.l.b16 %v336
        %v386 = vunpack.c.l.b16 %v337
        %v387 = vpack.c.b16 %v368, %v367
        %v388 = vpack.c.b16 %v370, %v369
        %v389 = vpack.c.b16 %v372, %v371
        %v390 = vpack.c.b16 %v374, %v373
        %v391 = vpack.c.b16 %v376, %v375
        %v392 = vpack.c.b16 %v378, %v377
        %v393 = vpack.c.b16 %v380, %v379
        %v394 = vpack.c.b16 %v382, %v381
        %v395 = vpack.c.b16 %v384, %v383
        %v396 = vpack.c.b16 %v386, %v385
        %vm407 = vcmask 261120
        %v409 = vsel %vm407, %v345, 0
        %411 = vmatprep.subr.bf16.mxu0 0
        %412 = vmatpush1.bf16.msra.mxu0 %v387
        %413 = vmatprep.subr.bf16.mxu0 0
        %414 = vmatpush1.bf16.msra.mxu0 %v388
        %415 = vmatprep.subr.bf16.mxu0 0
        %416 = vmatpush1.bf16.msra.mxu0 %v389
        %417 = vmatprep.subr.bf16.mxu0 0
        %418 = vmatpush1.bf16.msra.mxu0 %v390
        %419 = vmatprep.subr.bf16.mxu0 0
        %420 = vmatpush1.bf16.msra.mxu0 %v391
        %421 = vmatprep.subr.bf16.mxu0 0
        %422 = vmatpush1.bf16.msra.mxu0 %v392
        %423 = vmatprep.subr.bf16.mxu0 0
        %424 = vmatpush1.bf16.msra.mxu0 %v393
        %425 = vmatprep.subr.bf16.mxu0 0
        %426 = vmatpush1.bf16.msra.mxu0 %v394
        %427 = vmatprep.subr.bf16.mxu0 0
        %428 = vmatpush1.bf16.msra.mxu0 %v395
        %429 = vmatprep.subr.bf16.mxu0 0
        %430 = vmatpush1.bf16.msra.mxu0 %v396
        %431 = vmatprep.subr.bf16.mxu0 0
        %432 = vmatpush1.bf16.msra.mxu0 0
        %433 = vmatprep.subr.bf16.mxu0 0
        %434 = vmatpush1.bf16.msra.mxu0 0
        %435 = vmatprep.subr.bf16.mxu0 0
        %436 = vmatpush1.bf16.msra.mxu0 0
        %437 = vmatprep.subr.bf16.mxu0 0
        %438 = vmatpush1.bf16.msra.mxu0 0
        %439 = vmatprep.subr.bf16.mxu0 0
        %440 = vmatpush1.bf16.msra.mxu0 0
        %441 = vmatprep.subr.bf16.mxu0 0
        %442 = vmatpush1.bf16.msra.mxu0 0
        %443 = vmatprep.mubr.bf16.mxu0 %v409
        %444 = vmatmul.mubr.bf16.gmra.mrb[0].mxu0 %v344
        %v445 = vpop.f32.mrb[0].mxu0
        %v446 = vadd.f32 0.0, %v445
        %v447 = vpop.f32.mrb[0].mxu0
        %v448 = vpop.f32.mrb[0].mxu0
        %v449 = vpop.f32.mrb[0].mxu0
        %450 = vdwg.mxu0
        %v451 = vpack.c.bf16 %v446, %v446
        %452 = vst [vmem:[%s307] sm:$0xf] %v451
        %v453 = vld [vmem:[%s3] sm:$0xff]
        %454 = vadd.xlane.f32.xlu0 %v446
        %v455 = vpop.xlane.xlu0 %454
        %v456 = vadd.f32 %v453, %v455
        %vm457 = vcmask 7168
        %458 = vst.msk [vmem:[%s3] sm:$0xff] %vm457, %v456
        %v459 = vld [vmem:[%s4] sm:$0xff]
        %v460 = vmul.f32 %v446, %v446
        %461 = vadd.xlane.f32.xlu0 %v460
        %v462 = vpop.xlane.xlu0 %461
        %v463 = vadd.f32 %v459, %v462
        %464 = vst.msk [vmem:[%s4] sm:$0xff] %vm457, %v463
        %p465 = scmp.lt.s32.totalorder %s16, 3
        %s466 = scalar_select %p465, %s16, 3
        %s467 = smul.addr %s466, 4
        %s468 = scalar_lea.vmem %s2, %s467
        // Predicated region
        $region74: #{resnet_generator_forward.19} parent=64 // pred_check
          %p469 = pneg %p81
        $region75: #{resnet_generator_forward.19} parent=64 // pred_check_branch
          %471 = sbr.rel (%p469) target = $region77
        $region76: #{resnet_generator_forward.19} parent=64 // pred_region
          _
        $region77: #{resnet_generator_forward.19} parent=64 // pred_fallthru
          _
        // Predicated region
        $region78: #{resnet_generator_forward.19} parent=64 // pred_check
          %p472 = pneg %p102
        $region79: #{resnet_generator_forward.19} parent=64 // pred_check_branch
          %474 = sbr.rel (%p472) target = $region81
        $region80: #{resnet_generator_forward.19} parent=64 // pred_region
          _
        $region81: #{resnet_generator_forward.19} parent=64 // pred_fallthru
          _
        // Predicated region
        $region82: #{resnet_generator_forward.19} parent=64 // pred_check
          %p475 = pneg %p123
        $region83: #{resnet_generator_forward.19} parent=64 // pred_check_branch
          %477 = sbr.rel (%p475) target = $region85
        $region84: #{resnet_generator_forward.19} parent=64 // pred_region
          _
        $region85: #{resnet_generator_forward.19} parent=64 // pred_fallthru
          _
        // Predicated region
        $region86: #{resnet_generator_forward.19} parent=64 // pred_check
          %p478 = pneg %p102
        $region87: #{resnet_generator_forward.19} parent=64 // pred_check_branch
          %480 = sbr.rel (%p478) target = $region89
        $region88: #{resnet_generator_forward.19} parent=64 // pred_region
          _
        $region89: #{resnet_generator_forward.19} parent=64 // pred_fallthru
          _
        // Predicated region
        $region90: #{resnet_generator_forward.19} parent=64 // pred_check
          %p481 = pneg %p123
        $region91: #{resnet_generator_forward.19} parent=64 // pred_check_branch
          %483 = sbr.rel (%p481) target = $region93
        $region92: #{resnet_generator_forward.19} parent=64 // pred_region
          _
        $region93: #{resnet_generator_forward.19} parent=64 // pred_fallthru
          _
      $region65: #{resnet_generator_forward.19} parent=5 // pred_fallthru
        _
      %p484 = scmp.le.s32.totalorder 2, %s11
      // Predicated region
      $region94: #{resnet_generator_forward.19} parent=5 // pred_check
        %p485 = pneg %p484
      $region95: #{resnet_generator_forward.19} parent=5 // pred_check_branch
        %487 = sbr.rel (%p485) target = $region97
      $region96: #{resnet_generator_forward.19} parent=5 // pred_region
        %s488 = ssub.s32 %s11, 2
        // Predicated region
        $region98: #{resnet_generator_forward.19} parent=96 // pred_check
          %p489 = pneg %p87
        $region99: #{resnet_generator_forward.19} parent=96 // pred_check_branch
          %491 = sbr.rel (%p489) target = $region101
        $region100: #{resnet_generator_forward.19} parent=96 // pred_region
          %p492 = scmp.lt.s32.totalorder %s17, 3
          %s493 = scalar_select %p492, %s17, 3
          %s494 = smul.addr %s493, 4
          %s495 = scalar_lea.vmem %s2, %s494
        $region101: #{resnet_generator_forward.19} parent=96 // pred_fallthru
          _
      $region97: #{resnet_generator_forward.19} parent=5 // pred_fallthru
        _
    $region6: #{resnet_generator_forward.19} parent=1 // loop_footer
      %s15 = sadd.s32 1, %s11
    $region7: #{resnet_generator_forward.19} parent=1 // loop_footer_branch
      %10 = sbr.rel target = $region3
    $region8: #{resnet_generator_forward.19} parent=1 // loop_exit
      _

// kernel: resnet_generator_forward.20
$region0: #{resnet_generator_forward.20}
  #allocation0 [shape = 'u32[]', space=smem, size = 0x4, offset = 0x4, fixed_abs, tag = 'smem constant byte address 0x4 - core index']
  #allocation1 [shape = 'u32[144,128]{1,0:T(1,128)}', space=vmem, size = 0x12000, scoped, tag = 'internal scratch']
  %s0 = inlined_call_operand.vmem [shape: bf16[8,512], index: 0, kind: input, shape index: {}]
  %s1 = inlined_call_operand.vmem [shape: f32[8,1], index: 1, kind: input, shape index: {}]
  %s2 = inlined_call_operand.vmem [shape: f32[8,1], index: 2, kind: input, shape index: {}]
  %s3 = inlined_call_operand.vmem [shape: bf16[8,512], index: 3, kind: output, shape index: {}]
  %s4 = sld [smem:[#allocation0]]
  $region45: #{resnet_generator_forward.20} parent=0
    _
  %s6 = ssub.s32 1, %s4
  %s7 = scalar_select 0, %s6, %s4
  loop: start=0, step=1, limit=6
  $region2: #{resnet_generator_forward.20} parent=0 // loop_pre_header
    _
  $region3: #{resnet_generator_forward.20} parent=0 // loop_header
    %s9 = sphi 0, %s13
    %p10 = scmp.ge.s32.totalorder %s9, 6
    %s19 = sphi 0, %s21
    %s22 = sphi 0, %s19
    %s23 = sphi 0, %s22
    %s39 = sphi 0, %s23
    %s43 = sphi 0, %s43
    %s45 = sphi 0, %s43
    %s46 = sphi 0, %s45
    %s60 = sphi 0, %s46
    %s64 = sphi 0, %s64
    %s66 = sphi 0, %s64
    %s67 = sphi 0, %s66
    %s81 = sphi 0, %s67
    %s87 = sphi 0, %s89
    %s90 = sphi 0, %s87
    %s91 = sphi 0, %s90
    %s107 = sphi 0, %s91
  $region4: #{resnet_generator_forward.20} parent=0 // loop_header_branch
    %12 = sbr.rel (%p10) target = $region8
  $region5: #{resnet_generator_forward.20} parent=0 // loop_body
    %s14 = ssub.s32 %s9, 1
    %s15 = ssub.s32 %s9, 2
    %s16 = sadd.s32 %s9, 1
    %s17 = ssub.s32 %s9, %s16
    %p18 = scmp.eq.s32.totalorder %s17, 0
    %s20 = sadd.s32 %s19, 1
    %s21 = scalar_select %p18, %s19, %s20
    %p24 = pneg %p18
    %p25 = scmp.eq.s32.totalorder %s9, 3
    %p26 = por %p24, %p25
    %p27 = scmp.ne.s32.totalorder %s19, %s22
    %p28 = scmp.eq.s32.totalorder %s9, 0
    %p29 = por %p27, %p28
    %p30 = scmp.ne.s32.totalorder %s19, %s22
    %p31 = scmp.eq.s32.totalorder %s14, 3
    %p32 = por %p30, %p31
    %p33 = scmp.ne.s32.totalorder %s22, %s23
    %p34 = scmp.eq.s32.totalorder %s14, 0
    %p35 = por %p33, %p34
    %p36 = scmp.ne.s32.totalorder %s22, %s23
    %p37 = scmp.eq.s32.totalorder %s15, 3
    %p38 = por %p36, %p37
    %p40 = scmp.ne.s32.totalorder %s23, %s39
    %p41 = scmp.eq.s32.totalorder %s15, 0
    %p42 = por %p40, %p41
    %s44 = sadd.s32 %s43, 1
    %p47 = scmp.eq.s32.totalorder %s9, 3
    %p48 = scmp.ne.s32.totalorder %s43, %s45
    %p49 = scmp.eq.s32.totalorder %s9, 0
    %p50 = por %p48, %p49
    %p51 = scmp.ne.s32.totalorder %s43, %s45
    %p52 = scmp.eq.s32.totalorder %s14, 3
    %p53 = por %p51, %p52
    %p54 = scmp.ne.s32.totalorder %s45, %s46
    %p55 = scmp.eq.s32.totalorder %s14, 0
    %p56 = por %p54, %p55
    %p57 = scmp.ne.s32.totalorder %s45, %s46
    %p58 = scmp.eq.s32.totalorder %s15, 3
    %p59 = por %p57, %p58
    %p61 = scmp.ne.s32.totalorder %s46, %s60
    %p62 = scmp.eq.s32.totalorder %s15, 0
    %p63 = por %p61, %p62
    %s65 = sadd.s32 %s64, 1
    %p68 = scmp.eq.s32.totalorder %s9, 3
    %p69 = scmp.ne.s32.totalorder %s64, %s66
    %p70 = scmp.eq.s32.totalorder %s9, 0
    %p71 = por %p69, %p70
    %p72 = scmp.ne.s32.totalorder %s64, %s66
    %p73 = scmp.eq.s32.totalorder %s14, 3
    %p74 = por %p72, %p73
    %p75 = scmp.ne.s32.totalorder %s66, %s67
    %p76 = scmp.eq.s32.totalorder %s14, 0
    %p77 = por %p75, %p76
    %p78 = scmp.ne.s32.totalorder %s66, %s67
    %p79 = scmp.eq.s32.totalorder %s15, 3
    %p80 = por %p78, %p79
    %p82 = scmp.ne.s32.totalorder %s67, %s81
    %p83 = scmp.eq.s32.totalorder %s15, 0
    %p84 = por %p82, %p83
    %s85 = ssub.s32 %s9, %s16
    %p86 = scmp.eq.s32.totalorder %s85, 0
    %s88 = sadd.s32 %s87, 1
    %s89 = scalar_select %p86, %s87, %s88
    %p92 = pneg %p86
    %p93 = scmp.eq.s32.totalorder %s9, 3
    %p94 = por %p92, %p93
    %p95 = scmp.ne.s32.totalorder %s87, %s90
    %p96 = scmp.eq.s32.totalorder %s9, 0
    %p97 = por %p95, %p96
    %p98 = scmp.ne.s32.totalorder %s87, %s90
    %p99 = scmp.eq.s32.totalorder %s14, 3
    %p100 = por %p98, %p99
    %p101 = scmp.ne.s32.totalorder %s90, %s91
    %p102 = scmp.eq.s32.totalorder %s14, 0
    %p103 = por %p101, %p102
    %p104 = scmp.ne.s32.totalorder %s90, %s91
    %p105 = scmp.eq.s32.totalorder %s15, 3
    %p106 = por %p104, %p105
    %p108 = scmp.ne.s32.totalorder %s91, %s107
    %p109 = scmp.eq.s32.totalorder %s15, 0
    %p110 = por %p108, %p109
    %p111 = scmp.le.s32.totalorder 1, %s9
    %p112 = scmp.lt.s32.totalorder %s9, 5
    %p113 = pnand %p111, %p112
    %p114 = pneg %p113
    // Predicated region
    $region9: #{resnet_generator_forward.20} parent=5 // pred_check
      _
    $region10: #{resnet_generator_forward.20} parent=5 // pred_check_branch
      %116 = sbr.rel (%p113) target = $region12
    $region11: #{resnet_generator_forward.20} parent=5 // pred_region
      %s117 = ssub.s32 %s9, 1
      // Predicated region
      $region13: #{resnet_generator_forward.20} parent=11 // pred_check
        %p118 = pneg %p56
      $region14: #{resnet_generator_forward.20} parent=11 // pred_check_branch
        %120 = sbr.rel (%p118) target = $region16
      $region15: #{resnet_generator_forward.20} parent=11 // pred_region
        _
      $region16: #{resnet_generator_forward.20} parent=11 // pred_fallthru
        _
      // Predicated region
      $region17: #{resnet_generator_forward.20} parent=11 // pred_check
        %p121 = pneg %p77
      $region18: #{resnet_generator_forward.20} parent=11 // pred_check_branch
        %123 = sbr.rel (%p121) target = $region20
      $region19: #{resnet_generator_forward.20} parent=11 // pred_region
        _
      $region20: #{resnet_generator_forward.20} parent=11 // pred_fallthru
        _
    $region12: #{resnet_generator_forward.20} parent=5 // pred_fallthru
      _
    %p124 = scmp.lt.s32.totalorder %s9, 4
    // Predicated region
    $region21: #{resnet_generator_forward.20} parent=5 // pred_check
      %p125 = pneg %p124
    $region22: #{resnet_generator_forward.20} parent=5 // pred_check_branch
      %127 = sbr.rel (%p125) target = $region24
    $region23: #{resnet_generator_forward.20} parent=5 // pred_region
      // Predicated region
      $region25: #{resnet_generator_forward.20} parent=23 // pred_check
        %p128 = pneg %p29
      $region26: #{resnet_generator_forward.20} parent=23 // pred_check_branch
        %130 = sbr.rel (%p128) target = $region28
      $region27: #{resnet_generator_forward.20} parent=23 // pred_region
        %p131 = scmp.lt.s32.totalorder %s9, 3
        %s132 = scalar_select %p131, %s9, 3
        %s133 = smul.addr %s132, 4
        %s134 = scalar_lea.vmem %s0, %s133
      $region28: #{resnet_generator_forward.20} parent=23 // pred_fallthru
        _
    $region24: #{resnet_generator_forward.20} parent=5 // pred_fallthru
      _
    %p135 = scmp.le.s32.totalorder 1, %s9
    %p136 = scmp.lt.s32.totalorder %s9, 5
    %p137 = pnand %p135, %p136
    %p138 = pneg %p137
    // Predicated region
    $region29: #{resnet_generator_forward.20} parent=5 // pred_check
      _
    $region30: #{resnet_generator_forward.20} parent=5 // pred_check_branch
      %140 = sbr.rel (%p137) target = $region32
    $region31: #{resnet_generator_forward.20} parent=5 // pred_region
      %s141 = ssub.s32 %s9, 1
      %p142 = scmp.lt.s32.totalorder %s14, 3
      %s143 = scalar_select %p142, %s14, 3
      %s144 = smul.addr %s143, 4
      %s145 = scalar_lea.vmem %s0, %s144
      %p146 = pneg %p35
      %p147 = pneg %p32
      %p148 = pneg %p56
      %p149 = pneg %p53
      %p150 = pneg %p77
      %p151 = pneg %p74
      %p152 = pneg %p103
      %p153 = pneg %p100
      %p154 = scmp.lt.s32.totalorder %s14, 3
      %s155 = scalar_select %p154, %s14, 3
      %s156 = smul.addr %s155, 4
      %s157 = scalar_lea.vmem %s3, %s156
      %p158 = scmp.lt.s32.totalorder %s14, 3
      %s159 = scalar_select %p158, %s14, 3
      %s160 = smul.addr %s159, 4
      %s161 = scalar_lea.vmem %s0, %s160
      %p162 = scmp.lt.s32.totalorder %s14, 3
      %s163 = scalar_select %p162, %s14, 3
      %s164 = smul.addr %s163, 4
      %s165 = scalar_lea.vmem %s3, %s164
      %v166 = vld [vmem:[%s161] sm:$0xf]
      %v167 = vunpack.c.l.bf16 %v166
      %v168 = vld [vmem:[%s1] sm:$0xff]
      %170 = vset.pattern.permute.xlu0 0
      %171 = vperm.xlu0 %170, %v168
      %v172 = vpop.permute.xlu0 %171
      %v174 = vmul.f32 %v167, %v172
      %v175 = vld [vmem:[%s2] sm:$0xff]
      %177 = vset.pattern.permute.xlu0 0
      %178 = vperm.xlu0 %177, %v175
      %v179 = vpop.permute.xlu0 %178
      %v181 = vadd.f32 %v174, %v179
      %v182 = vmax.f32 %v181, 0.0
      %v183 = vpack.c.bf16 %v182, %v182
      %184 = vst [vmem:[%s165] sm:$0xf] %v183
      %p185 = scmp.lt.s32.totalorder %s14, 3
      %s186 = scalar_select %p185, %s14, 3
      %s187 = smul.addr %s186, 4
      %s188 = scalar_lea.vmem %s3, %s187
      // Predicated region
      $region33: #{resnet_generator_forward.20} parent=31 // pred_check
        %p189 = pneg %p100
      $region34: #{resnet_generator_forward.20} parent=31 // pred_check_branch
        %191 = sbr.rel (%p189) target = $region36
      $region35: #{resnet_generator_forward.20} parent=31 // pred_region
        _
      $region36: #{resnet_generator_forward.20} parent=31 // pred_fallthru
        _
    $region32: #{resnet_generator_forward.20} parent=5 // pred_fallthru
      _
    %p192 = scmp.le.s32.totalorder 2, %s9
    // Predicated region
    $region37: #{resnet_generator_forward.20} parent=5 // pred_check
      %p193 = pneg %p192
    $region38: #{resnet_generator_forward.20} parent=5 // pred_check_branch
      %195 = sbr.rel (%p193) target = $region40
    $region39: #{resnet_generator_forward.20} parent=5 // pred_region
      %s196 = ssub.s32 %s9, 2
      // Predicated region
      $region41: #{resnet_generator_forward.20} parent=39 // pred_check
        %p197 = pneg %p106
      $region42: #{resnet_generator_forward.20} parent=39 // pred_check_branch
        %199 = sbr.rel (%p197) target = $region44
      $region43: #{resnet_generator_forward.20} parent=39 // pred_region
        %p200 = scmp.lt.s32.totalorder %s15, 3
        %s201 = scalar_select %p200, %s15, 3
        %s202 = smul.addr %s201, 4
        %s203 = scalar_lea.vmem %s3, %s202
      $region44: #{resnet_generator_forward.20} parent=39 // pred_fallthru
        _
    $region40: #{resnet_generator_forward.20} parent=5 // pred_fallthru
      _
  $region6: #{resnet_generator_forward.20} parent=0 // loop_footer
    %s13 = sadd.s32 1, %s9
  $region7: #{resnet_generator_forward.20} parent=0 // loop_footer_branch
    %8 = sbr.rel target = $region3
  $region8: #{resnet_generator_forward.20} parent=0 // loop_exit
    _

// kernel: resnet_generator_forward.22
$region0: #{resnet_generator_forward.22}
  #allocation0 [shape = 'u32[]', space=smem, size = 0x4, offset = 0x4, fixed_abs, tag = 'smem constant byte address 0x4 - core index']
  #allocation1 [shape = 'u32[144,128]{1,0:T(1,128)}', space=vmem, size = 0x12000, scoped, tag = 'internal scratch']
  %s0 = inlined_call_operand.vmem [shape: bf16[16,128], index: 0, kind: input, shape index: {}]
  %s1 = inlined_call_operand.vmem [shape: f32[16,1], index: 1, kind: input, shape index: {}]
  %s2 = inlined_call_operand.vmem [shape: f32[16,1], index: 2, kind: input, shape index: {}]
  %s3 = inlined_call_operand.vmem [shape: bf16[16,128], index: 3, kind: output, shape index: {}]
  %s4 = sld [smem:[#allocation0]]
  $region22: #{resnet_generator_forward.22} parent=0
    _
  %s6 = ssub.s32 1, %s4
  %s7 = scalar_select 0, %s6, %s4
  // Predicated region
  $region2: #{resnet_generator_forward.22} parent=0 // pred_check
    _
  $region3: #{resnet_generator_forward.22} parent=0 // pred_check_branch
    %9 = sbr.rel (0) target = $region5
  $region4: #{resnet_generator_forward.22} parent=0 // pred_region
    _
  $region5: #{resnet_generator_forward.22} parent=0 // pred_fallthru
    _
  // Predicated region
  $region6: #{resnet_generator_forward.22} parent=0 // pred_check
    _
  $region7: #{resnet_generator_forward.22} parent=0 // pred_check_branch
    %11 = sbr.rel (0) target = $region9
  $region8: #{resnet_generator_forward.22} parent=0 // pred_region
    _
  $region9: #{resnet_generator_forward.22} parent=0 // pred_fallthru
    _
  // Predicated region
  $region10: #{resnet_generator_forward.22} parent=0 // pred_check
    _
  $region11: #{resnet_generator_forward.22} parent=0 // pred_check_branch
    %13 = sbr.rel (0) target = $region13
  $region12: #{resnet_generator_forward.22} parent=0 // pred_region
    _
  $region13: #{resnet_generator_forward.22} parent=0 // pred_fallthru
    _
  %v14 = vld [vmem:[%s0] sm:$0xf]
  %v15 = vld [vmem:[%s0 + $0x4] sm:$0xf]
  %v16 = vunpack.c.l.bf16 %v14
  %v17 = vunpack.c.l.bf16 %v15
  %v18 = vld [vmem:[%s1] sm:$0xff]
  %v19 = vld [vmem:[%s1 + $0x8] sm:$0xff]
  %21 = vset.pattern.permute.xlu0 0
  %22 = vperm.xlu0 %21, %v18
  %v23 = vpop.permute.xlu0 %22
  %26 = vset.pattern.permute.xlu0 0
  %27 = vperm.xlu0 %26, %v19
  %v28 = vpop.permute.xlu0 %27
  %v30 = vmul.f32 %v16, %v23
  %v31 = vmul.f32 %v17, %v28
  %v32 = vld [vmem:[%s2] sm:$0xff]
  %v33 = vld [vmem:[%s2 + $0x8] sm:$0xff]
  %35 = vset.pattern.permute.xlu0 0
  %36 = vperm.xlu0 %35, %v32
  %v37 = vpop.permute.xlu0 %36
  %40 = vset.pattern.permute.xlu0 0
  %41 = vperm.xlu0 %40, %v33
  %v42 = vpop.permute.xlu0 %41
  %v44 = vadd.f32 %v30, %v37
  %v45 = vadd.f32 %v31, %v42
  %v46 = vmax.f32 %v44, 0.0
  %v47 = vmax.f32 %v45, 0.0
  %v48 = vpack.c.bf16 %v47, %v46
  %v50 = vunpack.c.l.b16 %v48
  %v51 = vunpack.c.h.b16 %v48
  %v52 = vpack.c.b16 %v50, %v50
  %v53 = vpack.c.b16 %v51, %v51
  %56 = vst [vmem:[%s3] sm:$0xf] %v52
  %57 = vst [vmem:[%s3 + $0x4] sm:$0xf] %v53
  // Predicated region
  $region14: #{resnet_generator_forward.22} parent=0 // pred_check
    _
  $region15: #{resnet_generator_forward.22} parent=0 // pred_check_branch
    %59 = sbr.rel (0) target = $region17
  $region16: #{resnet_generator_forward.22} parent=0 // pred_region
    _
  $region17: #{resnet_generator_forward.22} parent=0 // pred_fallthru
    _
  // Predicated region
  $region18: #{resnet_generator_forward.22} parent=0 // pred_check
    _
  $region19: #{resnet_generator_forward.22} parent=0 // pred_check_branch
    %61 = sbr.rel (0) target = $region21
  $region20: #{resnet_generator_forward.22} parent=0 // pred_region
    _
  $region21: #{resnet_generator_forward.22} parent=0 // pred_fallthru
    _

// kernel: resnet_generator_forward.21
$region0: #{resnet_generator_forward.21}
  #allocation0 [shape = 'u32[]', space=smem, size = 0x4, offset = 0x4, fixed_abs, tag = 'smem constant byte address 0x4 - core index']
  #allocation1 [shape = 'u32[144,128]{1,0:T(1,128)}', space=vmem, size = 0x12000, scoped, tag = 'internal scratch']
  %s0 = inlined_call_operand.vmem [shape: bf16[16,80], index: 0, kind: input, shape index: {}]
  %s1 = inlined_call_operand.vmem [shape: bf16[80,128], index: 1, kind: input, shape index: {}]
  %s2 = inlined_call_operand.vmem [shape: bf16[16,128], index: 2, kind: output, shape index: {0}]
  %s3 = inlined_call_operand.vmem [shape: f32[16,1], index: 3, kind: output, shape index: {1}]
  %s4 = inlined_call_operand.vmem [shape: f32[16,1], index: 4, kind: output, shape index: {2}]
  %5 = xla_tuple %s2, %s3, %s4
  %s6 = sld [smem:[#allocation0]]
  $region38: #{resnet_generator_forward.21} parent=0
    _
  %s8 = ssub.s32 1, %s6
  %s9 = scalar_select 0, %s8, %s6
  // Predicated region
  $region2: #{resnet_generator_forward.21} parent=0 // pred_check
    _
  $region3: #{resnet_generator_forward.21} parent=0 // pred_check_branch
    %11 = sbr.rel (0) target = $region5
  $region4: #{resnet_generator_forward.21} parent=0 // pred_region
    _
  $region5: #{resnet_generator_forward.21} parent=0 // pred_fallthru
    _
  // Predicated region
  $region6: #{resnet_generator_forward.21} parent=0 // pred_check
    _
  $region7: #{resnet_generator_forward.21} parent=0 // pred_check_branch
    %13 = sbr.rel (0) target = $region9
  $region8: #{resnet_generator_forward.21} parent=0 // pred_region
    _
  $region9: #{resnet_generator_forward.21} parent=0 // pred_fallthru
    _
  %p15 = scmp.eq.s32.totalorder 0, 0
  // Predicated region
  $region10: #{resnet_generator_forward.21} parent=0 // pred_check
    %p16 = pneg %p15
  $region11: #{resnet_generator_forward.21} parent=0 // pred_check_branch
    %18 = sbr.rel (%p16) target = $region13
  $region12: #{resnet_generator_forward.21} parent=0 // pred_region
    %vm19 = vcmask 7168
    %20 = vst.msk [vmem:[%s3] sm:$0xff] %vm19, 0.0
    %21 = vst.msk [vmem:[%s3 + $0x8] sm:$0xff] %vm19, 0.0
    %22 = vst.msk [vmem:[%s4] sm:$0xff] %vm19, 0.0
    %23 = vst.msk [vmem:[%s4 + $0x8] sm:$0xff] %vm19, 0.0
  $region13: #{resnet_generator_forward.21} parent=0 // pred_fallthru
    _
  %v24 = vld [vmem:[%s0] sm:$0xf]
  %v25 = vld [vmem:[%s0 + $0x4] sm:$0xf]
  %v26 = vld [vmem:[%s1] sm:$0xf]
  %v27 = vld [vmem:[%s1 + $0x4] sm:$0xf]
  %v28 = vld [vmem:[%s1 + $0x8] sm:$0xf]
  %v29 = vld [vmem:[%s1 + $0xc] sm:$0xf]
  %v30 = vld [vmem:[%s1 + $0x10] sm:$0xf]
  %v31 = vld [vmem:[%s1 + $0x14] sm:$0xf]
  %v32 = vld [vmem:[%s1 + $0x18] sm:$0xf]
  %v33 = vld [vmem:[%s1 + $0x1c] sm:$0xf]
  %v34 = vld [vmem:[%s1 + $0x20] sm:$0xf]
  %v35 = vld [vmem:[%s1 + $0x24] sm:$0xf]
  %v38 = vunpack.c.l.b16 %v24
  %v39 = vunpack.c.l.b16 %v25
  %v40 = vpack.c.b16 %v39, %v38
  %v51 = vunpack.c.l.b16 %v26
  %v52 = vunpack.c.l.b16 %v27
  %v53 = vunpack.c.l.b16 %v28
  %v54 = vunpack.c.l.b16 %v29
  %v55 = vunpack.c.l.b16 %v30
  %v56 = vunpack.c.l.b16 %v31
  %v57 = vunpack.c.l.b16 %v32
  %v58 = vunpack.c.l.b16 %v33
  %v59 = vunpack.c.l.b16 %v34
  %v60 = vunpack.c.l.b16 %v35
  %v61 = vpack.c.b16 %v52, %v51
  %v62 = vpack.c.b16 %v54, %v53
  %v63 = vpack.c.b16 %v56, %v55
  %v64 = vpack.c.b16 %v58, %v57
  %v65 = vpack.c.b16 %v60, %v59
  %vm71 = vcmask 654336
  %v73 = vsel %vm71, %v40, 0
  %75 = vmatprep.subr.bf16.mxu0 0
  %76 = vmatpush1.bf16.msra.mxu0 %v61
  %77 = vmatprep.subr.bf16.mxu0 0
  %78 = vmatpush1.bf16.msra.mxu0 %v62
  %79 = vmatprep.subr.bf16.mxu0 0
  %80 = vmatpush1.bf16.msra.mxu0 %v63
  %81 = vmatprep.subr.bf16.mxu0 0
  %82 = vmatpush1.bf16.msra.mxu0 %v64
  %83 = vmatprep.subr.bf16.mxu0 0
  %84 = vmatpush1.bf16.msra.mxu0 %v65
  %85 = vmatprep.subr.bf16.mxu0 0
  %86 = vmatpush1.bf16.msra.mxu0 0
  %87 = vmatprep.subr.bf16.mxu0 0
  %88 = vmatpush1.bf16.msra.mxu0 0
  %89 = vmatprep.subr.bf16.mxu0 0
  %90 = vmatpush1.bf16.msra.mxu0 0
  %91 = vmatprep.subr.bf16.mxu0 0
  %92 = vmatpush1.bf16.msra.mxu0 0
  %93 = vmatprep.subr.bf16.mxu0 0
  %94 = vmatpush1.bf16.msra.mxu0 0
  %95 = vmatprep.subr.bf16.mxu0 0
  %96 = vmatpush1.bf16.msra.mxu0 0
  %97 = vmatprep.subr.bf16.mxu0 0
  %98 = vmatpush1.bf16.msra.mxu0 0
  %99 = vmatprep.subr.bf16.mxu0 0
  %100 = vmatpush1.bf16.msra.mxu0 0
  %101 = vmatprep.subr.bf16.mxu0 0
  %102 = vmatpush1.bf16.msra.mxu0 0
  %103 = vmatprep.subr.bf16.mxu0 0
  %104 = vmatpush1.bf16.msra.mxu0 0
  %105 = vmatprep.subr.bf16.mxu0 0
  %106 = vmatpush1.bf16.msra.mxu0 0
  %107 = vmatprep.mubr.bf16.mxu0 0
  %108 = vmatmul.mubr.bf16.gmra.mrb[0].mxu0 %v73
  %v109 = vpop.f32.mrb[0].mxu0
  %v110 = vadd.f32 0.0, %v109
  %v111 = vpop.f32.mrb[0].mxu0
  %v112 = vpop.f32.mrb[0].mxu0
  %v113 = vadd.f32 0.0, %v112
  %v114 = vpop.f32.mrb[0].mxu0
  %115 = vdwg.mxu0
  %v116 = vpack.c.bf16 %v113, %v110
  %v118 = vunpack.c.l.b16 %v116
  %v119 = vunpack.c.h.b16 %v116
  %v120 = vpack.c.b16 %v118, %v118
  %v121 = vpack.c.b16 %v119, %v119
  %124 = vst [vmem:[%s2] sm:$0xf] %v120
  %125 = vst [vmem:[%s2 + $0x4] sm:$0xf] %v121
  %v126 = vld [vmem:[%s3] sm:$0xff]
  %v127 = vld [vmem:[%s3 + $0x8] sm:$0xff]
  %128 = vadd.xlane.f32.xlu0 %v110
  %v129 = vpop.xlane.xlu0 %128
  %130 = vadd.xlane.f32.xlu0 %v113
  %v131 = vpop.xlane.xlu0 %130
  %v132 = vadd.f32 %v126, %v129
  %v133 = vadd.f32 %v127, %v131
  %vm134 = vcmask 7168
  %135 = vst.msk [vmem:[%s3] sm:$0xff] %vm134, %v132
  %136 = vst.msk [vmem:[%s3 + $0x8] sm:$0xff] %vm134, %v133
  %v137 = vld [vmem:[%s4] sm:$0xff]
  %v138 = vld [vmem:[%s4 + $0x8] sm:$0xff]
  %v139 = vmul.f32 %v110, %v110
  %v140 = vmul.f32 %v113, %v113
  %141 = vadd.xlane.f32.xlu0 %v139
  %v142 = vpop.xlane.xlu0 %141
  %143 = vadd.xlane.f32.xlu0 %v140
  %v144 = vpop.xlane.xlu0 %143
  %v145 = vadd.f32 %v137, %v142
  %v146 = vadd.f32 %v138, %v144
  %147 = vst.msk [vmem:[%s4] sm:$0xff] %vm134, %v145
  %148 = vst.msk [vmem:[%s4 + $0x8] sm:$0xff] %vm134, %v146
  // Predicated region
  $region14: #{resnet_generator_forward.21} parent=0 // pred_check
    _
  $region15: #{resnet_generator_forward.21} parent=0 // pred_check_branch
    %150 = sbr.rel (0) target = $region17
  $region16: #{resnet_generator_forward.21} parent=0 // pred_region
    _
  $region17: #{resnet_generator_forward.21} parent=0 // pred_fallthru
    _
  // Predicated region
  $region18: #{resnet_generator_forward.21} parent=0 // pred_check
    _
  $region19: #{resnet_generator_forward.21} parent=0 // pred_check_branch
    %152 = sbr.rel (0) target = $region21
  $region20: #{resnet_generator_forward.21} parent=0 // pred_region
    _
  $region21: #{resnet_generator_forward.21} parent=0 // pred_fallthru
    _
  // Predicated region
  $region22: #{resnet_generator_forward.21} parent=0 // pred_check
    _
  $region23: #{resnet_generator_forward.21} parent=0 // pred_check_branch
    %154 = sbr.rel (0) target = $region25
  $region24: #{resnet_generator_forward.21} parent=0 // pred_region
    _
  $region25: #{resnet_generator_forward.21} parent=0 // pred_fallthru
    _
  // Predicated region
  $region26: #{resnet_generator_forward.21} parent=0 // pred_check
    _
  $region27: #{resnet_generator_forward.21} parent=0 // pred_check_branch
    %156 = sbr.rel (0) target = $region29
  $region28: #{resnet_generator_forward.21} parent=0 // pred_region
    _
  $region29: #{resnet_generator_forward.21} parent=0 // pred_fallthru
    _
  // Predicated region
  $region30: #{resnet_generator_forward.21} parent=0 // pred_check
    _
  $region31: #{resnet_generator_forward.21} parent=0 // pred_check_branch
    %158 = sbr.rel (0) target = $region33
  $region32: #{resnet_generator_forward.21} parent=0 // pred_region
    _
  $region33: #{resnet_generator_forward.21} parent=0 // pred_fallthru
    _
  // Predicated region
  $region34: #{resnet_generator_forward.21} parent=0 // pred_check
    _
  $region35: #{resnet_generator_forward.21} parent=0 // pred_check_branch
    %160 = sbr.rel (0) target = $region37
  $region36: #{resnet_generator_forward.21} parent=0 // pred_region
    _
  $region37: #{resnet_generator_forward.21} parent=0 // pred_fallthru
    _

// kernel: resnet_generator_forward.24
$region0: #{resnet_generator_forward.24}
  #allocation0 [shape = 'u32[]', space=smem, size = 0x4, offset = 0x4, fixed_abs, tag = 'smem constant byte address 0x4 - core index']
  #allocation1 [shape = 'u32[144,128]{1,0:T(1,128)}', space=vmem, size = 0x12000, scoped, tag = 'internal scratch']
  %s0 = inlined_call_operand.vmem [shape: bf16[32,32], index: 0, kind: input, shape index: {}]
  %s1 = inlined_call_operand.vmem [shape: f32[32,1], index: 1, kind: input, shape index: {}]
  %s2 = inlined_call_operand.vmem [shape: f32[32,1], index: 2, kind: input, shape index: {}]
  %s3 = inlined_call_operand.vmem [shape: bf16[32,32], index: 3, kind: output, shape index: {}]
  %s4 = sld [smem:[#allocation0]]
  $region22: #{resnet_generator_forward.24} parent=0
    _
  %s6 = ssub.s32 1, %s4
  %s7 = scalar_select 0, %s6, %s4
  // Predicated region
  $region2: #{resnet_generator_forward.24} parent=0 // pred_check
    _
  $region3: #{resnet_generator_forward.24} parent=0 // pred_check_branch
    %9 = sbr.rel (0) target = $region5
  $region4: #{resnet_generator_forward.24} parent=0 // pred_region
    _
  $region5: #{resnet_generator_forward.24} parent=0 // pred_fallthru
    _
  // Predicated region
  $region6: #{resnet_generator_forward.24} parent=0 // pred_check
    _
  $region7: #{resnet_generator_forward.24} parent=0 // pred_check_branch
    %11 = sbr.rel (0) target = $region9
  $region8: #{resnet_generator_forward.24} parent=0 // pred_region
    _
  $region9: #{resnet_generator_forward.24} parent=0 // pred_fallthru
    _
  // Predicated region
  $region10: #{resnet_generator_forward.24} parent=0 // pred_check
    _
  $region11: #{resnet_generator_forward.24} parent=0 // pred_check_branch
    %13 = sbr.rel (0) target = $region13
  $region12: #{resnet_generator_forward.24} parent=0 // pred_region
    _
  $region13: #{resnet_generator_forward.24} parent=0 // pred_fallthru
    _
  %v14 = vld [vmem:[%s0] sm:$0xf]
  %v15 = vld [vmem:[%s0 + $0x4] sm:$0xf]
  %v16 = vld [vmem:[%s0 + $0x8] sm:$0xf]
  %v17 = vld [vmem:[%s0 + $0xc] sm:$0xf]
  %v18 = vunpack.c.l.bf16 %v14
  %v19 = vunpack.c.l.bf16 %v15
  %v20 = vunpack.c.l.bf16 %v16
  %v21 = vunpack.c.l.bf16 %v17
  %v22 = vld [vmem:[%s1] sm:$0xff]
  %v23 = vld [vmem:[%s1 + $0x8] sm:$0xff]
  %v24 = vld [vmem:[%s1 + $0x10] sm:$0xff]
  %v25 = vld [vmem:[%s1 + $0x18] sm:$0xff]
  %27 = vset.pattern.permute.xlu0 0
  %28 = vperm.xlu0 %27, %v22
  %v29 = vpop.permute.xlu0 %28
  %32 = vset.pattern.permute.xlu0 0
  %33 = vperm.xlu0 %32, %v23
  %v34 = vpop.permute.xlu0 %33
  %37 = vset.pattern.permute.xlu0 0
  %38 = vperm.xlu0 %37, %v24
  %v39 = vpop.permute.xlu0 %38
  %42 = vset.pattern.permute.xlu0 0
  %43 = vperm.xlu0 %42, %v25
  %v44 = vpop.permute.xlu0 %43
  %v46 = vmul.f32 %v18, %v29
  %v47 = vmul.f32 %v19, %v34
  %v48 = vmul.f32 %v20, %v39
  %v49 = vmul.f32 %v21, %v44
  %v50 = vld [vmem:[%s2] sm:$0xff]
  %v51 = vld [vmem:[%s2 + $0x8] sm:$0xff]
  %v52 = vld [vmem:[%s2 + $0x10] sm:$0xff]
  %v53 = vld [vmem:[%s2 + $0x18] sm:$0xff]
  %55 = vset.pattern.permute.xlu0 0
  %56 = vperm.xlu0 %55, %v50
  %v57 = vpop.permute.xlu0 %56
  %60 = vset.pattern.permute.xlu0 0
  %61 = vperm.xlu0 %60, %v51
  %v62 = vpop.permute.xlu0 %61
  %65 = vset.pattern.permute.xlu0 0
  %66 = vperm.xlu0 %65, %v52
  %v67 = vpop.permute.xlu0 %66
  %70 = vset.pattern.permute.xlu0 0
  %71 = vperm.xlu0 %70, %v53
  %v72 = vpop.permute.xlu0 %71
  %v74 = vadd.f32 %v46, %v57
  %v75 = vadd.f32 %v47, %v62
  %v76 = vadd.f32 %v48, %v67
  %v77 = vadd.f32 %v49, %v72
  %v78 = vmax.f32 %v74, 0.0
  %v79 = vmax.f32 %v75, 0.0
  %v80 = vmax.f32 %v76, 0.0
  %v81 = vmax.f32 %v77, 0.0
  %v82 = vpack.c.bf16 %v79, %v78
  %v83 = vpack.c.bf16 %v81, %v80
  %v86 = vunpack.c.l.b16 %v82
  %v87 = vunpack.c.h.b16 %v82
  %v88 = vunpack.c.l.b16 %v83
  %v89 = vunpack.c.h.b16 %v83
  %v90 = vpack.c.b16 %v86, %v86
  %v91 = vpack.c.b16 %v87, %v87
  %v92 = vpack.c.b16 %v88, %v88
  %v93 = vpack.c.b16 %v89, %v89
  %vm98 = vcmask 257024
  %99 = vst.msk [vmem:[%s3] sm:$0xf] %vm98, %v90
  %100 = vst.msk [vmem:[%s3 + $0x4] sm:$0xf] %vm98, %v91
  %101 = vst.msk [vmem:[%s3 + $0x8] sm:$0xf] %vm98, %v92
  %102 = vst.msk [vmem:[%s3 + $0xc] sm:$0xf] %vm98, %v93
  // Predicated region
  $region14: #{resnet_generator_forward.24} parent=0 // pred_check
    _
  $region15: #{resnet_generator_forward.24} parent=0 // pred_check_branch
    %104 = sbr.rel (0) target = $region17
  $region16: #{resnet_generator_forward.24} parent=0 // pred_region
    _
  $region17: #{resnet_generator_forward.24} parent=0 // pred_fallthru
    _
  // Predicated region
  $region18: #{resnet_generator_forward.24} parent=0 // pred_check
    _
  $region19: #{resnet_generator_forward.24} parent=0 // pred_check_branch
    %106 = sbr.rel (0) target = $region21
  $region20: #{resnet_generator_forward.24} parent=0 // pred_region
    _
  $region21: #{resnet_generator_forward.24} parent=0 // pred_fallthru
    _

// kernel: resnet_generator_forward.23
$region0: #{resnet_generator_forward.23}
  #allocation0 [shape = 'u32[]', space=smem, size = 0x4, offset = 0x4, fixed_abs, tag = 'smem constant byte address 0x4 - core index']
  #allocation1 [shape = 'u32[144,128]{1,0:T(1,128)}', space=vmem, size = 0x12000, scoped, tag = 'internal scratch']
  %s0 = inlined_call_operand.vmem [shape: bf16[32,144], index: 0, kind: input, shape index: {}]
  %s1 = inlined_call_operand.vmem [shape: bf16[144,32], index: 1, kind: input, shape index: {}]
  %s2 = inlined_call_operand.vmem [shape: bf16[32,32], index: 2, kind: output, shape index: {0}]
  %s3 = inlined_call_operand.vmem [shape: f32[32,1], index: 3, kind: output, shape index: {1}]
  %s4 = inlined_call_operand.vmem [shape: f32[32,1], index: 4, kind: output, shape index: {2}]
  %5 = xla_tuple %s2, %s3, %s4
  %s6 = sld [smem:[#allocation0]]
  $region38: #{resnet_generator_forward.23} parent=0
    _
  %s8 = ssub.s32 1, %s6
  %s9 = scalar_select 0, %s8, %s6
  // Predicated region
  $region2: #{resnet_generator_forward.23} parent=0 // pred_check
    _
  $region3: #{resnet_generator_forward.23} parent=0 // pred_check_branch
    %11 = sbr.rel (0) target = $region5
  $region4: #{resnet_generator_forward.23} parent=0 // pred_region
    _
  $region5: #{resnet_generator_forward.23} parent=0 // pred_fallthru
    _
  // Predicated region
  $region6: #{resnet_generator_forward.23} parent=0 // pred_check
    _
  $region7: #{resnet_generator_forward.23} parent=0 // pred_check_branch
    %13 = sbr.rel (0) target = $region9
  $region8: #{resnet_generator_forward.23} parent=0 // pred_region
    _
  $region9: #{resnet_generator_forward.23} parent=0 // pred_fallthru
    _
  %p15 = scmp.eq.s32.totalorder 0, 0
  // Predicated region
  $region10: #{resnet_generator_forward.23} parent=0 // pred_check
    %p16 = pneg %p15
  $region11: #{resnet_generator_forward.23} parent=0 // pred_check_branch
    %18 = sbr.rel (%p16) target = $region13
  $region12: #{resnet_generator_forward.23} parent=0 // pred_region
    %vm19 = vcmask 7168
    %20 = vst.msk [vmem:[%s3] sm:$0xff] %vm19, 0.0
    %21 = vst.msk [vmem:[%s3 + $0x8] sm:$0xff] %vm19, 0.0
    %22 = vst.msk [vmem:[%s3 + $0x10] sm:$0xff] %vm19, 0.0
    %23 = vst.msk [vmem:[%s3 + $0x18] sm:$0xff] %vm19, 0.0
    %24 = vst.msk [vmem:[%s4] sm:$0xff] %vm19, 0.0
    %25 = vst.msk [vmem:[%s4 + $0x8] sm:$0xff] %vm19, 0.0
    %26 = vst.msk [vmem:[%s4 + $0x10] sm:$0xff] %vm19, 0.0
    %27 = vst.msk [vmem:[%s4 + $0x18] sm:$0xff] %vm19, 0.0
  $region13: #{resnet_generator_forward.23} parent=0 // pred_fallthru
    _
  %v28 = vld [vmem:[%s0] sm:$0xff]
  %v29 = vld [vmem:[%s0 + $0x8] sm:$0xff]
  %v30 = vld [vmem:[%s0 + $0x10] sm:$0xff]
  %v31 = vld [vmem:[%s0 + $0x18] sm:$0xff]
  %v32 = vld [vmem:[%s1] sm:$0xf]
  %v33 = vld [vmem:[%s1 + $0x4] sm:$0xf]
  %v34 = vld [vmem:[%s1 + $0x8] sm:$0xf]
  %v35 = vld [vmem:[%s1 + $0xc] sm:$0xf]
  %v36 = vld [vmem:[%s1 + $0x10] sm:$0xf]
  %v37 = vld [vmem:[%s1 + $0x14] sm:$0xf]
  %v38 = vld [vmem:[%s1 + $0x18] sm:$0xf]
  %v39 = vld [vmem:[%s1 + $0x1c] sm:$0xf]
  %v40 = vld [vmem:[%s1 + $0x20] sm:$0xf]
  %v41 = vld [vmem:[%s1 + $0x24] sm:$0xf]
  %v42 = vld [vmem:[%s1 + $0x28] sm:$0xf]
  %v43 = vld [vmem:[%s1 + $0x2c] sm:$0xf]
  %v44 = vld [vmem:[%s1 + $0x30] sm:$0xf]
  %v45 = vld [vmem:[%s1 + $0x34] sm:$0xf]
  %v46 = vld [vmem:[%s1 + $0x38] sm:$0xf]
  %v47 = vld [vmem:[%s1 + $0x3c] sm:$0xf]
  %v48 = vld [vmem:[%s1 + $0x40] sm:$0xf]
  %v49 = vld [vmem:[%s1 + $0x44] sm:$0xf]
  %v54 = vunpack.c.l.b16 %v28
  %v55 = vunpack.c.h.b16 %v28
  %v56 = vunpack.c.l.b16 %v29
  %v57 = vunpack.c.h.b16 %v29
  %v58 = vunpack.c.l.b16 %v30
  %v59 = vunpack.c.h.b16 %v30
  %v60 = vunpack.c.l.b16 %v31
  %v61 = vunpack.c.h.b16 %v31
  %v62 = vpack.c.b16 %v56, %v54
  %v63 = vpack.c.b16 %v57, %v55
  %v64 = vpack.c.b16 %v60, %v58
  %v65 = vpack.c.b16 %v61, %v59
  %v86 = vunpack.c.l.b16 %v32
  %v87 = vunpack.c.l.b16 %v33
  %v88 = vunpack.c.l.b16 %v34
  %v89 = vunpack.c.l.b16 %v35
  %v90 = vunpack.c.l.b16 %v36
  %v91 = vunpack.c.l.b16 %v37
  %v92 = vunpack.c.l.b16 %v38
  %v93 = vunpack.c.l.b16 %v39
  %v94 = vunpack.c.l.b16 %v40
  %v95 = vunpack.c.l.b16 %v41
  %v96 = vunpack.c.l.b16 %v42
  %v97 = vunpack.c.l.b16 %v43
  %v98 = vunpack.c.l.b16 %v44
  %v99 = vunpack.c.l.b16 %v45
  %v100 = vunpack.c.l.b16 %v46
  %v101 = vunpack.c.l.b16 %v47
  %v102 = vunpack.c.l.b16 %v48
  %v103 = vunpack.c.l.b16 %v49
  %v104 = vpack.c.b16 %v87, %v86
  %v105 = vpack.c.b16 %v89, %v88
  %v106 = vpack.c.b16 %v91, %v90
  %v107 = vpack.c.b16 %v93, %v92
  %v108 = vpack.c.b16 %v95, %v94
  %v109 = vpack.c.b16 %v97, %v96
  %v110 = vpack.c.b16 %v99, %v98
  %v111 = vpack.c.b16 %v101, %v100
  %v112 = vpack.c.b16 %v103, %v102
  %vm122 = vcmask 130048
  %v124 = vsel %vm122, %v63, 0
  %v127 = vsel %vm122, %v65, 0
  %129 = vmatprep.subr.bf16.mxu0 0
  %130 = vmatpush1.bf16.msra.mxu0 %v104
  %131 = vmatprep.subr.bf16.mxu0 0
  %132 = vmatpush1.bf16.msra.mxu0 %v105
  %133 = vmatprep.subr.bf16.mxu0 0
  %134 = vmatpush1.bf16.msra.mxu0 %v106
  %135 = vmatprep.subr.bf16.mxu0 0
  %136 = vmatpush1.bf16.msra.mxu0 %v107
  %137 = vmatprep.subr.bf16.mxu0 0
  %138 = vmatpush1.bf16.msra.mxu0 %v108
  %139 = vmatprep.subr.bf16.mxu0 0
  %140 = vmatpush1.bf16.msra.mxu0 %v109
  %141 = vmatprep.subr.bf16.mxu0 0
  %142 = vmatpush1.bf16.msra.mxu0 %v110
  %143 = vmatprep.subr.bf16.mxu0 0
  %144 = vmatpush1.bf16.msra.mxu0 %v111
  %145 = vmatprep.subr.bf16.mxu0 0
  %146 = vmatpush1.bf16.msra.mxu0 %v112
  %147 = vmatprep.subr.bf16.mxu0 0
  %148 = vmatpush1.bf16.msra.mxu0 0
  %149 = vmatprep.subr.bf16.mxu0 0
  %150 = vmatpush1.bf16.msra.mxu0 0
  %151 = vmatprep.subr.bf16.mxu0 0
  %152 = vmatpush1.bf16.msra.mxu0 0
  %153 = vmatprep.subr.bf16.mxu0 0
  %154 = vmatpush1.bf16.msra.mxu0 0
  %155 = vmatprep.subr.bf16.mxu0 0
  %156 = vmatpush1.bf16.msra.mxu0 0
  %157 = vmatprep.subr.bf16.mxu0 0
  %158 = vmatpush1.bf16.msra.mxu0 0
  %159 = vmatprep.subr.bf16.mxu0 0
  %160 = vmatpush1.bf16.msra.mxu0 0
  %161 = vmatprep.mubr.bf16.mxu0 %v124
  %162 = vmatmul.mubr.bf16.gmra.mrb[0].mxu0 %v62
  %v163 = vpop.f32.mrb[0].mxu0
  %v164 = vadd.f32 0.0, %v163
  %v165 = vpop.f32.mrb[0].mxu0
  %v166 = vpop.f32.mrb[0].mxu0
  %v167 = vadd.f32 0.0, %v166
  %v168 = vpop.f32.mrb[0].mxu0
  %169 = vmatprep.mubr.bf16.mxu0 %v127
  %170 = vmatmul.mubr.bf16.gmra.mrb[0].mxu0 %v64
  %v171 = vpop.f32.mrb[0].mxu0
  %v172 = vadd.f32 0.0, %v171
  %v173 = vpop.f32.mrb[0].mxu0
  %v174 = vpop.f32.mrb[0].mxu0
  %v175 = vadd.f32 0.0, %v174
  %v176 = vpop.f32.mrb[0].mxu0
  %177 = vdwg.mxu0
  %v178 = vpack.c.bf16 %v167, %v164
  %v179 = vpack.c.bf16 %v175, %v172
  %v182 = vunpack.c.l.b16 %v178
  %v183 = vunpack.c.h.b16 %v178
  %v184 = vunpack.c.l.b16 %v179
  %v185 = vunpack.c.h.b16 %v179
  %v186 = vpack.c.b16 %v182, %v182
  %v187 = vpack.c.b16 %v183, %v183
  %v188 = vpack.c.b16 %v184, %v184
  %v189 = vpack.c.b16 %v185, %v185
  %vm194 = vcmask 257024
  %195 = vst.msk [vmem:[%s2] sm:$0xf] %vm194, %v186
  %196 = vst.msk [vmem:[%s2 + $0x4] sm:$0xf] %vm194, %v187
  %197 = vst.msk [vmem:[%s2 + $0x8] sm:$0xf] %vm194, %v188
  %198 = vst.msk [vmem:[%s2 + $0xc] sm:$0xf] %vm194, %v189
  %v199 = vld [vmem:[%s3] sm:$0xff]
  %v200 = vld [vmem:[%s3 + $0x8] sm:$0xff]
  %v201 = vld [vmem:[%s3 + $0x10] sm:$0xff]
  %v202 = vld [vmem:[%s3 + $0x18] sm:$0xff]
  %vm203 = vcmask 261120
  %v204 = vsel %vm203, %v164, 0.0
  %205 = vadd.xlane.f32.xlu0 %v204
  %v206 = vpop.xlane.xlu0 %205
  %v207 = vsel %vm203, %v167, 0.0
  %208 = vadd.xlane.f32.xlu0 %v207
  %v209 = vpop.xlane.xlu0 %208
  %v210 = vsel %vm203, %v172, 0.0
  %211 = vadd.xlane.f32.xlu0 %v210
  %v212 = vpop.xlane.xlu0 %211
  %v213 = vsel %vm203, %v175, 0.0
  %214 = vadd.xlane.f32.xlu0 %v213
  %v215 = vpop.xlane.xlu0 %214
  %v216 = vadd.f32 %v199, %v206
  %v217 = vadd.f32 %v200, %v209
  %v218 = vadd.f32 %v201, %v212
  %v219 = vadd.f32 %v202, %v215
  %vm220 = vcmask 7168
  %221 = vst.msk [vmem:[%s3] sm:$0xff] %vm220, %v216
  %222 = vst.msk [vmem:[%s3 + $0x8] sm:$0xff] %vm220, %v217
  %223 = vst.msk [vmem:[%s3 + $0x10] sm:$0xff] %vm220, %v218
  %224 = vst.msk [vmem:[%s3 + $0x18] sm:$0xff] %vm220, %v219
  %v225 = vld [vmem:[%s4] sm:$0xff]
  %v226 = vld [vmem:[%s4 + $0x8] sm:$0xff]
  %v227 = vld [vmem:[%s4 + $0x10] sm:$0xff]
  %v228 = vld [vmem:[%s4 + $0x18] sm:$0xff]
  %v229 = vmul.f32 %v164, %v164
  %v230 = vmul.f32 %v167, %v167
  %v231 = vmul.f32 %v172, %v172
  %v232 = vmul.f32 %v175, %v175
  %v233 = vsel %vm203, %v229, 0.0
  %234 = vadd.xlane.f32.xlu0 %v233
  %v235 = vpop.xlane.xlu0 %234
  %v236 = vsel %vm203, %v230, 0.0
  %237 = vadd.xlane.f32.xlu0 %v236
  %v238 = vpop.xlane.xlu0 %237
  %v239 = vsel %vm203, %v231, 0.0
  %240 = vadd.xlane.f32.xlu0 %v239
  %v241 = vpop.xlane.xlu0 %240
  %v242 = vsel %vm203, %v232, 0.0
  %243 = vadd.xlane.f32.xlu0 %v242
  %v244 = vpop.xlane.xlu0 %243
  %v245 = vadd.f32 %v225, %v235
  %v246 = vadd.f32 %v226, %v238
  %v247 = vadd.f32 %v227, %v241
  %v248 = vadd.f32 %v228, %v244
  %249 = vst.msk [vmem:[%s4] sm:$0xff] %vm220, %v245
  %250 = vst.msk [vmem:[%s4 + $0x8] sm:$0xff] %vm220, %v246
  %251 = vst.msk [vmem:[%s4 + $0x10] sm:$0xff] %vm220, %v247
  %252 = vst.msk [vmem:[%s4 + $0x18] sm:$0xff] %vm220, %v248
  // Predicated region
  $region14: #{resnet_generator_forward.23} parent=0 // pred_check
    _
  $region15: #{resnet_generator_forward.23} parent=0 // pred_check_branch
    %254 = sbr.rel (0) target = $region17
  $region16: #{resnet_generator_forward.23} parent=0 // pred_region
    _
  $region17: #{resnet_generator_forward.23} parent=0 // pred_fallthru
    _
  // Predicated region
  $region18: #{resnet_generator_forward.23} parent=0 // pred_check
    _
  $region19: #{resnet_generator_forward.23} parent=0 // pred_check_branch
    %256 = sbr.rel (0) target = $region21
  $region20: #{resnet_generator_forward.23} parent=0 // pred_region
    _
  $region21: #{resnet_generator_forward.23} parent=0 // pred_fallthru
    _
  // Predicated region
  $region22: #{resnet_generator_forward.23} parent=0 // pred_check
    _
  $region23: #{resnet_generator_forward.23} parent=0 // pred_check_branch
    %258 = sbr.rel (0) target = $region25
  $region24: #{resnet_generator_forward.23} parent=0 // pred_region
    _
  $region25: #{resnet_generator_forward.23} parent=0 // pred_fallthru
    _
  // Predicated region
  $region26: #{resnet_generator_forward.23} parent=0 // pred_check
    _
  $region27: #{resnet_generator_forward.23} parent=0 // pred_check_branch
    %260 = sbr.rel (0) target = $region29
  $region28: #{resnet_generator_forward.23} parent=0 // pred_region
    _
  $region29: #{resnet_generator_forward.23} parent=0 // pred_fallthru
    _
  // Predicated region
  $region30: #{resnet_generator_forward.23} parent=0 // pred_check
    _
  $region31: #{resnet_generator_forward.23} parent=0 // pred_check_branch
    %262 = sbr.rel (0) target = $region33
  $region32: #{resnet_generator_forward.23} parent=0 // pred_region
    _
  $region33: #{resnet_generator_forward.23} parent=0 // pred_fallthru
    _
  // Predicated region
  $region34: #{resnet_generator_forward.23} parent=0 // pred_check
    _
  $region35: #{resnet_generator_forward.23} parent=0 // pred_check_branch
    %264 = sbr.rel (0) target = $region37
  $region36: #{resnet_generator_forward.23} parent=0 // pred_region
    _
  $region37: #{resnet_generator_forward.23} parent=0 // pred_fallthru
    _

// kernel: squeeze.32
$region0: #{squeeze.32}
  %s0 = inlined_call_operand.vmem [shape: f32[64], index: 0, kind: input, shape index: {}]
  %s1 = inlined_call_operand.vmem [shape: f32[4,16], index: 1, kind: output, shape index: {}]
  $region1: #{squeeze.32} parent=0
    #allocation0 [shape = 'u8[4096]{0}', space=vmem, size = 0x1000, scoped, tag = 'scoped mem for output reshape']
    #allocation1 [shape = 'u8[4096]{0}', space=vmem, size = 0x1000, scoped, tag = 'scoped mem for input reshape']
    %s3 = sshllo.u32 0, 1
    %v4 = vld [vmem:[%s0] sm:%s3]
    %5 = vst [vmem:[#allocation1] sm:%s3] %v4
    %v6 = vld [vmem:[#allocation1] sm:$0x1]
    %vm7 = vcmask 130048
    %8 = vst.msk [vmem:[#allocation0] sm:$0x1] %vm7, %v6
    %v9 = vld [vmem:[#allocation1] sm:$0x1]
    %10 = vrot.lane.b32.xlu0 %v9, 112
    %v11 = vpop.permute.xlu0 %10
    %vm12 = vcmask 130048
    %s13 = scalar_lea.vmem [#allocation0], 1
    %14 = vst.msk [vmem:[%s13] sm:$0x1] %vm12, %v11
    %v15 = vld [vmem:[#allocation1] sm:$0x1]
    %16 = vrot.lane.b32.xlu0 %v15, 96
    %v17 = vpop.permute.xlu0 %16
    %vm18 = vcmask 130048
    %s19 = scalar_lea.vmem [#allocation0], 2
    %20 = vst.msk [vmem:[%s19] sm:$0x1] %vm18, %v17
    %v21 = vld [vmem:[#allocation1] sm:$0x1]
    %22 = vrot.lane.b32.xlu0 %v21, 80
    %v23 = vpop.permute.xlu0 %22
    %vm24 = vcmask 130048
    %s25 = scalar_lea.vmem [#allocation0], 3
    %26 = vst.msk [vmem:[%s25] sm:$0x1] %vm24, %v23
    %s28 = sshllo.u32 0, 4
    %v30 = vld [vmem:[#allocation0] sm:%s28]
    %s31 = sshllo.u32 0, 4
    %32 = vst [vmem:[%s1] sm:%s31] %v30

// kernel: resnet_generator_forward.25
$region0: #{resnet_generator_forward.25}
  #allocation0 [shape = 'u32[]', space=smem, size = 0x4, offset = 0x4, fixed_abs, tag = 'smem constant byte address 0x4 - core index']
  #allocation1 [shape = 'u32[144,128]{1,0:T(1,128)}', space=vmem, size = 0x12000, scoped, tag = 'internal scratch']
  %s0 = inlined_call_operand.vmem [shape: bf16[32,288], index: 0, kind: input, shape index: {}]
  %s1 = inlined_call_operand.vmem [shape: bf16[288,32], index: 1, kind: input, shape index: {}]
  %s2 = inlined_call_operand.vmem [shape: bf16[32,32], index: 2, kind: output, shape index: {0}]
  %s3 = inlined_call_operand.vmem [shape: f32[32,1], index: 3, kind: output, shape index: {1}]
  %s4 = inlined_call_operand.vmem [shape: f32[32,1], index: 4, kind: output, shape index: {2}]
  %5 = xla_tuple %s2, %s3, %s4
  %s6 = sld [smem:[#allocation0]]
  $region38: #{resnet_generator_forward.25} parent=0
    _
  %s8 = ssub.s32 1, %s6
  %s9 = scalar_select 0, %s8, %s6
  // Predicated region
  $region2: #{resnet_generator_forward.25} parent=0 // pred_check
    _
  $region3: #{resnet_generator_forward.25} parent=0 // pred_check_branch
    %11 = sbr.rel (0) target = $region5
  $region4: #{resnet_generator_forward.25} parent=0 // pred_region
    _
  $region5: #{resnet_generator_forward.25} parent=0 // pred_fallthru
    _
  // Predicated region
  $region6: #{resnet_generator_forward.25} parent=0 // pred_check
    _
  $region7: #{resnet_generator_forward.25} parent=0 // pred_check_branch
    %13 = sbr.rel (0) target = $region9
  $region8: #{resnet_generator_forward.25} parent=0 // pred_region
    _
  $region9: #{resnet_generator_forward.25} parent=0 // pred_fallthru
    _
  %p15 = scmp.eq.s32.totalorder 0, 0
  // Predicated region
  $region10: #{resnet_generator_forward.25} parent=0 // pred_check
    %p16 = pneg %p15
  $region11: #{resnet_generator_forward.25} parent=0 // pred_check_branch
    %18 = sbr.rel (%p16) target = $region13
  $region12: #{resnet_generator_forward.25} parent=0 // pred_region
    %vm19 = vcmask 7168
    %20 = vst.msk [vmem:[%s3] sm:$0xff] %vm19, 0.0
    %21 = vst.msk [vmem:[%s3 + $0x8] sm:$0xff] %vm19, 0.0
    %22 = vst.msk [vmem:[%s3 + $0x10] sm:$0xff] %vm19, 0.0
    %23 = vst.msk [vmem:[%s3 + $0x18] sm:$0xff] %vm19, 0.0
    %24 = vst.msk [vmem:[%s4] sm:$0xff] %vm19, 0.0
    %25 = vst.msk [vmem:[%s4 + $0x8] sm:$0xff] %vm19, 0.0
    %26 = vst.msk [vmem:[%s4 + $0x10] sm:$0xff] %vm19, 0.0
    %27 = vst.msk [vmem:[%s4 + $0x18] sm:$0xff] %vm19, 0.0
  $region13: #{resnet_generator_forward.25} parent=0 // pred_fallthru
    _
  %v28 = vld [vmem:[%s0] sm:$0xff]
  %v29 = vld [vmem:[%s0 + $0x8] sm:$0xf]
  %v30 = vld [vmem:[%s0 + $0xc] sm:$0xff]
  %v31 = vld [vmem:[%s0 + $0x14] sm:$0xf]
  %v32 = vld [vmem:[%s0 + $0x18] sm:$0xff]
  %v33 = vld [vmem:[%s0 + $0x20] sm:$0xf]
  %v34 = vld [vmem:[%s0 + $0x24] sm:$0xff]
  %v35 = vld [vmem:[%s0 + $0x2c] sm:$0xf]
  %v36 = vld [vmem:[%s1] sm:$0xf]
  %v37 = vld [vmem:[%s1 + $0x4] sm:$0xf]
  %v38 = vld [vmem:[%s1 + $0x8] sm:$0xf]
  %v39 = vld [vmem:[%s1 + $0xc] sm:$0xf]
  %v40 = vld [vmem:[%s1 + $0x10] sm:$0xf]
  %v41 = vld [vmem:[%s1 + $0x14] sm:$0xf]
  %v42 = vld [vmem:[%s1 + $0x18] sm:$0xf]
  %v43 = vld [vmem:[%s1 + $0x1c] sm:$0xf]
  %v44 = vld [vmem:[%s1 + $0x20] sm:$0xf]
  %v45 = vld [vmem:[%s1 + $0x24] sm:$0xf]
  %v46 = vld [vmem:[%s1 + $0x28] sm:$0xf]
  %v47 = vld [vmem:[%s1 + $0x2c] sm:$0xf]
  %v48 = vld [vmem:[%s1 + $0x30] sm:$0xf]
  %v49 = vld [vmem:[%s1 + $0x34] sm:$0xf]
  %v50 = vld [vmem:[%s1 + $0x38] sm:$0xf]
  %v51 = vld [vmem:[%s1 + $0x3c] sm:$0xf]
  %v52 = vld [vmem:[%s1 + $0x40] sm:$0xf]
  %v53 = vld [vmem:[%s1 + $0x44] sm:$0xf]
  %v54 = vld [vmem:[%s1 + $0x48] sm:$0xf]
  %v55 = vld [vmem:[%s1 + $0x4c] sm:$0xf]
  %v56 = vld [vmem:[%s1 + $0x50] sm:$0xf]
  %v57 = vld [vmem:[%s1 + $0x54] sm:$0xf]
  %v58 = vld [vmem:[%s1 + $0x58] sm:$0xf]
  %v59 = vld [vmem:[%s1 + $0x5c] sm:$0xf]
  %v60 = vld [vmem:[%s1 + $0x60] sm:$0xf]
  %v61 = vld [vmem:[%s1 + $0x64] sm:$0xf]
  %v62 = vld [vmem:[%s1 + $0x68] sm:$0xf]
  %v63 = vld [vmem:[%s1 + $0x6c] sm:$0xf]
  %v64 = vld [vmem:[%s1 + $0x70] sm:$0xf]
  %v65 = vld [vmem:[%s1 + $0x74] sm:$0xf]
  %v66 = vld [vmem:[%s1 + $0x78] sm:$0xf]
  %v67 = vld [vmem:[%s1 + $0x7c] sm:$0xf]
  %v68 = vld [vmem:[%s1 + $0x80] sm:$0xf]
  %v69 = vld [vmem:[%s1 + $0x84] sm:$0xf]
  %v70 = vld [vmem:[%s1 + $0x88] sm:$0xf]
  %v71 = vld [vmem:[%s1 + $0x8c] sm:$0xf]
  %v80 = vunpack.c.l.b16 %v28
  %v81 = vunpack.c.h.b16 %v28
  %v82 = vunpack.c.l.b16 %v29
  %v83 = vunpack.c.l.b16 %v30
  %v84 = vunpack.c.h.b16 %v30
  %v85 = vunpack.c.l.b16 %v31
  %v86 = vunpack.c.l.b16 %v32
  %v87 = vunpack.c.h.b16 %v32
  %v88 = vunpack.c.l.b16 %v33
  %v89 = vunpack.c.l.b16 %v34
  %v90 = vunpack.c.h.b16 %v34
  %v91 = vunpack.c.l.b16 %v35
  %v92 = vpack.c.b16 %v83, %v80
  %v93 = vpack.c.b16 %v84, %v81
  %v94 = vpack.c.b16 %v85, %v82
  %v95 = vpack.c.b16 %v89, %v86
  %v96 = vpack.c.b16 %v90, %v87
  %v97 = vpack.c.b16 %v91, %v88
  %v138 = vunpack.c.l.b16 %v36
  %v139 = vunpack.c.l.b16 %v37
  %v140 = vunpack.c.l.b16 %v38
  %v141 = vunpack.c.l.b16 %v39
  %v142 = vunpack.c.l.b16 %v40
  %v143 = vunpack.c.l.b16 %v41
  %v144 = vunpack.c.l.b16 %v42
  %v145 = vunpack.c.l.b16 %v43
  %v146 = vunpack.c.l.b16 %v44
  %v147 = vunpack.c.l.b16 %v45
  %v148 = vunpack.c.l.b16 %v46
  %v149 = vunpack.c.l.b16 %v47
  %v150 = vunpack.c.l.b16 %v48
  %v151 = vunpack.c.l.b16 %v49
  %v152 = vunpack.c.l.b16 %v50
  %v153 = vunpack.c.l.b16 %v51
  %v154 = vunpack.c.l.b16 %v52
  %v155 = vunpack.c.l.b16 %v53
  %v156 = vunpack.c.l.b16 %v54
  %v157 = vunpack.c.l.b16 %v55
  %v158 = vunpack.c.l.b16 %v56
  %v159 = vunpack.c.l.b16 %v57
  %v160 = vunpack.c.l.b16 %v58
  %v161 = vunpack.c.l.b16 %v59
  %v162 = vunpack.c.l.b16 %v60
  %v163 = vunpack.c.l.b16 %v61
  %v164 = vunpack.c.l.b16 %v62
  %v165 = vunpack.c.l.b16 %v63
  %v166 = vunpack.c.l.b16 %v64
  %v167 = vunpack.c.l.b16 %v65
  %v168 = vunpack.c.l.b16 %v66
  %v169 = vunpack.c.l.b16 %v67
  %v170 = vunpack.c.l.b16 %v68
  %v171 = vunpack.c.l.b16 %v69
  %v172 = vunpack.c.l.b16 %v70
  %v173 = vunpack.c.l.b16 %v71
  %v174 = vpack.c.b16 %v139, %v138
  %v175 = vpack.c.b16 %v141, %v140
  %v176 = vpack.c.b16 %v143, %v142
  %v177 = vpack.c.b16 %v145, %v144
  %v178 = vpack.c.b16 %v147, %v146
  %v179 = vpack.c.b16 %v149, %v148
  %v180 = vpack.c.b16 %v151, %v150
  %v181 = vpack.c.b16 %v153, %v152
  %v182 = vpack.c.b16 %v155, %v154
  %v183 = vpack.c.b16 %v157, %v156
  %v184 = vpack.c.b16 %v159, %v158
  %v185 = vpack.c.b16 %v161, %v160
  %v186 = vpack.c.b16 %v163, %v162
  %v187 = vpack.c.b16 %v165, %v164
  %v188 = vpack.c.b16 %v167, %v166
  %v189 = vpack.c.b16 %v169, %v168
  %v190 = vpack.c.b16 %v171, %v170
  %v191 = vpack.c.b16 %v173, %v172
  %vm210 = vcmask 261120
  %v212 = vsel %vm210, %v94, 0
  %v215 = vsel %vm210, %v97, 0
  %217 = vmatprep.subr.bf16.mxu0 0
  %218 = vmatpush1.bf16.msra.mxu0 %v174
  %219 = vmatprep.subr.bf16.mxu0 0
  %220 = vmatpush1.bf16.msra.mxu0 %v175
  %221 = vmatprep.subr.bf16.mxu0 0
  %222 = vmatpush1.bf16.msra.mxu0 %v176
  %223 = vmatprep.subr.bf16.mxu0 0
  %224 = vmatpush1.bf16.msra.mxu0 %v177
  %225 = vmatprep.subr.bf16.mxu0 0
  %226 = vmatpush1.bf16.msra.mxu0 %v178
  %227 = vmatprep.subr.bf16.mxu0 0
  %228 = vmatpush1.bf16.msra.mxu0 %v179
  %229 = vmatprep.subr.bf16.mxu0 0
  %230 = vmatpush1.bf16.msra.mxu0 %v180
  %231 = vmatprep.subr.bf16.mxu0 0
  %232 = vmatpush1.bf16.msra.mxu0 %v181
  %233 = vmatprep.subr.bf16.mxu0 0
  %234 = vmatpush1.bf16.msra.mxu0 %v182
  %235 = vmatprep.subr.bf16.mxu0 0
  %236 = vmatpush1.bf16.msra.mxu0 %v183
  %237 = vmatprep.subr.bf16.mxu0 0
  %238 = vmatpush1.bf16.msra.mxu0 %v184
  %239 = vmatprep.subr.bf16.mxu0 0
  %240 = vmatpush1.bf16.msra.mxu0 %v185
  %241 = vmatprep.subr.bf16.mxu0 0
  %242 = vmatpush1.bf16.msra.mxu0 %v186
  %243 = vmatprep.subr.bf16.mxu0 0
  %244 = vmatpush1.bf16.msra.mxu0 %v187
  %245 = vmatprep.subr.bf16.mxu0 0
  %246 = vmatpush1.bf16.msra.mxu0 %v188
  %247 = vmatprep.subr.bf16.mxu0 0
  %248 = vmatpush1.bf16.msra.mxu0 %v189
  %249 = vmatprep.mubr.bf16.mxu0 %v93
  %250 = vmatmul.mubr.bf16.gmra.mrb[0].mxu0 %v92
  %v251 = vpop.f32.mrb[0].mxu0
  %v252 = vadd.f32 0.0, %v251
  %v253 = vpop.f32.mrb[0].mxu0
  %v254 = vpop.f32.mrb[0].mxu0
  %v255 = vadd.f32 0.0, %v254
  %v256 = vpop.f32.mrb[0].mxu0
  %257 = vmatprep.mubr.bf16.mxu0 %v96
  %258 = vmatmul.mubr.bf16.gmra.mrb[0].mxu0 %v95
  %v259 = vpop.f32.mrb[0].mxu0
  %v260 = vadd.f32 0.0, %v259
  %v261 = vpop.f32.mrb[0].mxu0
  %v262 = vpop.f32.mrb[0].mxu0
  %v263 = vadd.f32 0.0, %v262
  %v264 = vpop.f32.mrb[0].mxu0
  %265 = vdwg.mxu0
  %266 = vmatprep.subr.bf16.mxu0 0
  %267 = vmatpush1.bf16.msra.mxu0 %v190
  %268 = vmatprep.subr.bf16.mxu0 0
  %269 = vmatpush1.bf16.msra.mxu0 %v191
  %270 = vmatprep.subr.bf16.mxu0 0
  %271 = vmatpush1.bf16.msra.mxu0 0
  %272 = vmatprep.subr.bf16.mxu0 0
  %273 = vmatpush1.bf16.msra.mxu0 0
  %274 = vmatprep.subr.bf16.mxu0 0
  %275 = vmatpush1.bf16.msra.mxu0 0
  %276 = vmatprep.subr.bf16.mxu0 0
  %277 = vmatpush1.bf16.msra.mxu0 0
  %278 = vmatprep.subr.bf16.mxu0 0
  %279 = vmatpush1.bf16.msra.mxu0 0
  %280 = vmatprep.subr.bf16.mxu0 0
  %281 = vmatpush1.bf16.msra.mxu0 0
  %282 = vmatprep.subr.bf16.mxu0 0
  %283 = vmatpush1.bf16.msra.mxu0 0
  %284 = vmatprep.subr.bf16.mxu0 0
  %285 = vmatpush1.bf16.msra.mxu0 0
  %286 = vmatprep.subr.bf16.mxu0 0
  %287 = vmatpush1.bf16.msra.mxu0 0
  %288 = vmatprep.subr.bf16.mxu0 0
  %289 = vmatpush1.bf16.msra.mxu0 0
  %290 = vmatprep.subr.bf16.mxu0 0
  %291 = vmatpush1.bf16.msra.mxu0 0
  %292 = vmatprep.subr.bf16.mxu0 0
  %293 = vmatpush1.bf16.msra.mxu0 0
  %294 = vmatprep.subr.bf16.mxu0 0
  %295 = vmatpush1.bf16.msra.mxu0 0
  %296 = vmatprep.subr.bf16.mxu0 0
  %297 = vmatpush1.bf16.msra.mxu0 0
  %298 = vmatprep.mubr.bf16.mxu0 0
  %299 = vmatmul.mubr.bf16.gmra.mrb[0].mxu0 %v212
  %v300 = vpop.f32.mrb[0].mxu0
  %v301 = vadd.f32 %v252, %v300
  %v302 = vpop.f32.mrb[0].mxu0
  %v303 = vpop.f32.mrb[0].mxu0
  %v304 = vadd.f32 %v255, %v303
  %v305 = vpop.f32.mrb[0].mxu0
  %306 = vmatprep.mubr.bf16.mxu0 0
  %307 = vmatmul.mubr.bf16.gmra.mrb[0].mxu0 %v215
  %v308 = vpop.f32.mrb[0].mxu0
  %v309 = vadd.f32 %v260, %v308
  %v310 = vpop.f32.mrb[0].mxu0
  %v311 = vpop.f32.mrb[0].mxu0
  %v312 = vadd.f32 %v263, %v311
  %v313 = vpop.f32.mrb[0].mxu0
  %314 = vdwg.mxu0
  %v315 = vpack.c.bf16 %v304, %v301
  %v316 = vpack.c.bf16 %v312, %v309
  %v319 = vunpack.c.l.b16 %v315
  %v320 = vunpack.c.h.b16 %v315
  %v321 = vunpack.c.l.b16 %v316
  %v322 = vunpack.c.h.b16 %v316
  %v323 = vpack.c.b16 %v319, %v319
  %v324 = vpack.c.b16 %v320, %v320
  %v325 = vpack.c.b16 %v321, %v321
  %v326 = vpack.c.b16 %v322, %v322
  %vm331 = vcmask 257024
  %332 = vst.msk [vmem:[%s2] sm:$0xf] %vm331, %v323
  %333 = vst.msk [vmem:[%s2 + $0x4] sm:$0xf] %vm331, %v324
  %334 = vst.msk [vmem:[%s2 + $0x8] sm:$0xf] %vm331, %v325
  %335 = vst.msk [vmem:[%s2 + $0xc] sm:$0xf] %vm331, %v326
  %v336 = vld [vmem:[%s3] sm:$0xff]
  %v337 = vld [vmem:[%s3 + $0x8] sm:$0xff]
  %v338 = vld [vmem:[%s3 + $0x10] sm:$0xff]
  %v339 = vld [vmem:[%s3 + $0x18] sm:$0xff]
  %v340 = vsel %vm210, %v301, 0.0
  %341 = vadd.xlane.f32.xlu0 %v340
  %v342 = vpop.xlane.xlu0 %341
  %v343 = vsel %vm210, %v304, 0.0
  %344 = vadd.xlane.f32.xlu0 %v343
  %v345 = vpop.xlane.xlu0 %344
  %v346 = vsel %vm210, %v309, 0.0
  %347 = vadd.xlane.f32.xlu0 %v346
  %v348 = vpop.xlane.xlu0 %347
  %v349 = vsel %vm210, %v312, 0.0
  %350 = vadd.xlane.f32.xlu0 %v349
  %v351 = vpop.xlane.xlu0 %350
  %v352 = vadd.f32 %v336, %v342
  %v353 = vadd.f32 %v337, %v345
  %v354 = vadd.f32 %v338, %v348
  %v355 = vadd.f32 %v339, %v351
  %vm356 = vcmask 7168
  %357 = vst.msk [vmem:[%s3] sm:$0xff] %vm356, %v352
  %358 = vst.msk [vmem:[%s3 + $0x8] sm:$0xff] %vm356, %v353
  %359 = vst.msk [vmem:[%s3 + $0x10] sm:$0xff] %vm356, %v354
  %360 = vst.msk [vmem:[%s3 + $0x18] sm:$0xff] %vm356, %v355
  %v361 = vld [vmem:[%s4] sm:$0xff]
  %v362 = vld [vmem:[%s4 + $0x8] sm:$0xff]
  %v363 = vld [vmem:[%s4 + $0x10] sm:$0xff]
  %v364 = vld [vmem:[%s4 + $0x18] sm:$0xff]
  %v365 = vmul.f32 %v301, %v301
  %v366 = vmul.f32 %v304, %v304
  %v367 = vmul.f32 %v309, %v309
  %v368 = vmul.f32 %v312, %v312
  %v369 = vsel %vm210, %v365, 0.0
  %370 = vadd.xlane.f32.xlu0 %v369
  %v371 = vpop.xlane.xlu0 %370
  %v372 = vsel %vm210, %v366, 0.0
  %373 = vadd.xlane.f32.xlu0 %v372
  %v374 = vpop.xlane.xlu0 %373
  %v375 = vsel %vm210, %v367, 0.0
  %376 = vadd.xlane.f32.xlu0 %v375
  %v377 = vpop.xlane.xlu0 %376
  %v378 = vsel %vm210, %v368, 0.0
  %379 = vadd.xlane.f32.xlu0 %v378
  %v380 = vpop.xlane.xlu0 %379
  %v381 = vadd.f32 %v361, %v371
  %v382 = vadd.f32 %v362, %v374
  %v383 = vadd.f32 %v363, %v377
  %v384 = vadd.f32 %v364, %v380
  %385 = vst.msk [vmem:[%s4] sm:$0xff] %vm356, %v381
  %386 = vst.msk [vmem:[%s4 + $0x8] sm:$0xff] %vm356, %v382
  %387 = vst.msk [vmem:[%s4 + $0x10] sm:$0xff] %vm356, %v383
  %388 = vst.msk [vmem:[%s4 + $0x18] sm:$0xff] %vm356, %v384
  // Predicated region
  $region14: #{resnet_generator_forward.25} parent=0 // pred_check
    _
  $region15: #{resnet_generator_forward.25} parent=0 // pred_check_branch
    %390 = sbr.rel (0) target = $region17
  $region16: #{resnet_generator_forward.25} parent=0 // pred_region
    _
  $region17: #{resnet_generator_forward.25} parent=0 // pred_fallthru
    _
  // Predicated region
  $region18: #{resnet_generator_forward.25} parent=0 // pred_check
    _
  $region19: #{resnet_generator_forward.25} parent=0 // pred_check_branch
    %392 = sbr.rel (0) target = $region21
  $region20: #{resnet_generator_forward.25} parent=0 // pred_region
    _
  $region21: #{resnet_generator_forward.25} parent=0 // pred_fallthru
    _
  // Predicated region
  $region22: #{resnet_generator_forward.25} parent=0 // pred_check
    _
  $region23: #{resnet_generator_forward.25} parent=0 // pred_check_branch
    %394 = sbr.rel (0) target = $region25
  $region24: #{resnet_generator_forward.25} parent=0 // pred_region
    _
  $region25: #{resnet_generator_forward.25} parent=0 // pred_fallthru
    _
  // Predicated region
  $region26: #{resnet_generator_forward.25} parent=0 // pred_check
    _
  $region27: #{resnet_generator_forward.25} parent=0 // pred_check_branch
    %396 = sbr.rel (0) target = $region29
  $region28: #{resnet_generator_forward.25} parent=0 // pred_region
    _
  $region29: #{resnet_generator_forward.25} parent=0 // pred_fallthru
    _
  // Predicated region
  $region30: #{resnet_generator_forward.25} parent=0 // pred_check
    _
  $region31: #{resnet_generator_forward.25} parent=0 // pred_check_branch
    %398 = sbr.rel (0) target = $region33
  $region32: #{resnet_generator_forward.25} parent=0 // pred_region
    _
  $region33: #{resnet_generator_forward.25} parent=0 // pred_fallthru
    _
  // Predicated region
  $region34: #{resnet_generator_forward.25} parent=0 // pred_check
    _
  $region35: #{resnet_generator_forward.25} parent=0 // pred_check_branch
    %400 = sbr.rel (0) target = $region37
  $region36: #{resnet_generator_forward.25} parent=0 // pred_region
    _
  $region37: #{resnet_generator_forward.25} parent=0 // pred_fallthru
    _

// kernel: tile.27
$region0: #{tile.27}
  #allocation0 [shape = 's32[1]{0}', space=sflag, size = 0x4, scoped, tag = 'scoped memory for tile.27']
  %s0 = inlined_call_operand.vmem [shape: f32[16], index: 0, kind: input, shape index: {}]
  %s1 = inlined_call_operand.vmem [shape: f32[4,16], index: 1, kind: output, shape index: {}]
  // Predicated region
  $region2: #{tile.27} parent=0 // pred_check
    _
  $region3: #{tile.27} parent=0 // pred_check_branch
    %3 = sbr.rel (0) target = $region5
  $region4: #{tile.27} parent=0 // pred_region
    _
  $region5: #{tile.27} parent=0 // pred_fallthru
    _
  %v4 = vld [vmem:[%s0] ss:$0 sm:$0xff]
  %5 = vst [vmem:[%s1] sm:$0xf] %v4

// kernel: tile.0
$region0: #{tile.0}
  %s0 = inlined_call_operand.vmem [shape: f32[4,16], index: 0, kind: input, shape index: {}]
  %s1 = inlined_call_operand.vmem [shape: f32[64,1], index: 1, kind: output, shape index: {}]
  $region1: #{tile.0} parent=0
    #allocation0 [shape = 'u8[4096]{0}', space=vmem, size = 0x1000, scoped, tag = 'scoped mem for input reshape']
    %s3 = sshllo.u32 0, 4
    %v4 = vld [vmem:[%s0] sm:%s3]
    %5 = vst [vmem:[#allocation0] sm:%s3] %v4
    %v6 = vld [vmem:[#allocation0] sm:$0xf]
    %vm7 = vcmask 7168
    %8 = vst.msk [vmem:[%s1] ss:$16 sm:$0x3] %vm7, %v6
    %9 = vst.msk [vmem:[%s1] ss:$16 sm:$0xc] %vm7, %v6
    %v10 = vld [vmem:[#allocation0] sm:$0xf]
    %11 = vrot.lane.b32.xlu0 %v10, 127
    %v12 = vpop.permute.xlu0 %11
    %vm13 = vcmask 7168
    %s14 = scalar_lea.vmem %s1, 1
    %15 = vst.msk [vmem:[%s14] ss:$16 sm:$0x3] %vm13, %v12
    %s16 = scalar_lea.vmem %s1, 1
    %17 = vst.msk [vmem:[%s16] ss:$16 sm:$0xc] %vm13, %v12
    %v18 = vld [vmem:[#allocation0] sm:$0xf]
    %19 = vrot.lane.b32.xlu0 %v18, 126
    %v20 = vpop.permute.xlu0 %19
    %vm21 = vcmask 7168
    %s22 = scalar_lea.vmem %s1, 2
    %23 = vst.msk [vmem:[%s22] ss:$16 sm:$0x3] %vm21, %v20
    %s24 = scalar_lea.vmem %s1, 2
    %25 = vst.msk [vmem:[%s24] ss:$16 sm:$0xc] %vm21, %v20
    %v26 = vld [vmem:[#allocation0] sm:$0xf]
    %27 = vrot.lane.b32.xlu0 %v26, 125
    %v28 = vpop.permute.xlu0 %27
    %vm29 = vcmask 7168
    %s30 = scalar_lea.vmem %s1, 3
    %31 = vst.msk [vmem:[%s30] ss:$16 sm:$0x3] %vm29, %v28
    %s32 = scalar_lea.vmem %s1, 3
    %33 = vst.msk [vmem:[%s32] ss:$16 sm:$0xc] %vm29, %v28
    %v34 = vld [vmem:[#allocation0] sm:$0xf]
    %35 = vrot.lane.b32.xlu0 %v34, 124
    %v36 = vpop.permute.xlu0 %35
    %vm37 = vcmask 7168
    %s38 = scalar_lea.vmem %s1, 4
    %39 = vst.msk [vmem:[%s38] ss:$16 sm:$0x3] %vm37, %v36
    %s40 = scalar_lea.vmem %s1, 4
    %41 = vst.msk [vmem:[%s40] ss:$16 sm:$0xc] %vm37, %v36
    %v42 = vld [vmem:[#allocation0] sm:$0xf]
    %43 = vrot.lane.b32.xlu0 %v42, 123
    %v44 = vpop.permute.xlu0 %43
    %vm45 = vcmask 7168
    %s46 = scalar_lea.vmem %s1, 5
    %47 = vst.msk [vmem:[%s46] ss:$16 sm:$0x3] %vm45, %v44
    %s48 = scalar_lea.vmem %s1, 5
    %49 = vst.msk [vmem:[%s48] ss:$16 sm:$0xc] %vm45, %v44
    %v50 = vld [vmem:[#allocation0] sm:$0xf]
    %51 = vrot.lane.b32.xlu0 %v50, 122
    %v52 = vpop.permute.xlu0 %51
    %vm53 = vcmask 7168
    %s54 = scalar_lea.vmem %s1, 6
    %55 = vst.msk [vmem:[%s54] ss:$16 sm:$0x3] %vm53, %v52
    %s56 = scalar_lea.vmem %s1, 6
    %57 = vst.msk [vmem:[%s56] ss:$16 sm:$0xc] %vm53, %v52
    %v58 = vld [vmem:[#allocation0] sm:$0xf]
    %59 = vrot.lane.b32.xlu0 %v58, 121
    %v60 = vpop.permute.xlu0 %59
    %vm61 = vcmask 7168
    %s62 = scalar_lea.vmem %s1, 7
    %63 = vst.msk [vmem:[%s62] ss:$16 sm:$0x3] %vm61, %v60
    %s64 = scalar_lea.vmem %s1, 7
    %65 = vst.msk [vmem:[%s64] ss:$16 sm:$0xc] %vm61, %v60
    %v66 = vld [vmem:[#allocation0] sm:$0xf]
    %67 = vrot.lane.b32.xlu0 %v66, 120
    %v68 = vpop.permute.xlu0 %67
    %vm69 = vcmask 7168
    %s70 = scalar_lea.vmem %s1, 8
    %71 = vst.msk [vmem:[%s70] ss:$16 sm:$0x3] %vm69, %v68
    %s72 = scalar_lea.vmem %s1, 8
    %73 = vst.msk [vmem:[%s72] ss:$16 sm:$0xc] %vm69, %v68
    %v74 = vld [vmem:[#allocation0] sm:$0xf]
    %75 = vrot.lane.b32.xlu0 %v74, 119
    %v76 = vpop.permute.xlu0 %75
    %vm77 = vcmask 7168
    %s78 = scalar_lea.vmem %s1, 9
    %79 = vst.msk [vmem:[%s78] ss:$16 sm:$0x3] %vm77, %v76
    %s80 = scalar_lea.vmem %s1, 9
    %81 = vst.msk [vmem:[%s80] ss:$16 sm:$0xc] %vm77, %v76
    %v82 = vld [vmem:[#allocation0] sm:$0xf]
    %83 = vrot.lane.b32.xlu0 %v82, 118
    %v84 = vpop.permute.xlu0 %83
    %vm85 = vcmask 7168
    %s86 = scalar_lea.vmem %s1, 10
    %87 = vst.msk [vmem:[%s86] ss:$16 sm:$0x3] %vm85, %v84
    %s88 = scalar_lea.vmem %s1, 10
    %89 = vst.msk [vmem:[%s88] ss:$16 sm:$0xc] %vm85, %v84
    %v90 = vld [vmem:[#allocation0] sm:$0xf]
    %91 = vrot.lane.b32.xlu0 %v90, 117
    %v92 = vpop.permute.xlu0 %91
    %vm93 = vcmask 7168
    %s94 = scalar_lea.vmem %s1, 11
    %95 = vst.msk [vmem:[%s94] ss:$16 sm:$0x3] %vm93, %v92
    %s96 = scalar_lea.vmem %s1, 11
    %97 = vst.msk [vmem:[%s96] ss:$16 sm:$0xc] %vm93, %v92
    %v98 = vld [vmem:[#allocation0] sm:$0xf]
    %99 = vrot.lane.b32.xlu0 %v98, 116
    %v100 = vpop.permute.xlu0 %99
    %vm101 = vcmask 7168
    %s102 = scalar_lea.vmem %s1, 12
    %103 = vst.msk [vmem:[%s102] ss:$16 sm:$0x3] %vm101, %v100
    %s104 = scalar_lea.vmem %s1, 12
    %105 = vst.msk [vmem:[%s104] ss:$16 sm:$0xc] %vm101, %v100
    %v106 = vld [vmem:[#allocation0] sm:$0xf]
    %107 = vrot.lane.b32.xlu0 %v106, 115
    %v108 = vpop.permute.xlu0 %107
    %vm109 = vcmask 7168
    %s110 = scalar_lea.vmem %s1, 13
    %111 = vst.msk [vmem:[%s110] ss:$16 sm:$0x3] %vm109, %v108
    %s112 = scalar_lea.vmem %s1, 13
    %113 = vst.msk [vmem:[%s112] ss:$16 sm:$0xc] %vm109, %v108
    %v114 = vld [vmem:[#allocation0] sm:$0xf]
    %115 = vrot.lane.b32.xlu0 %v114, 114
    %v116 = vpop.permute.xlu0 %115
    %vm117 = vcmask 7168
    %s118 = scalar_lea.vmem %s1, 14
    %119 = vst.msk [vmem:[%s118] ss:$16 sm:$0x3] %vm117, %v116
    %s120 = scalar_lea.vmem %s1, 14
    %121 = vst.msk [vmem:[%s120] ss:$16 sm:$0xc] %vm117, %v116
    %v122 = vld [vmem:[#allocation0] sm:$0xf]
    %123 = vrot.lane.b32.xlu0 %v122, 113
    %v124 = vpop.permute.xlu0 %123
    %vm125 = vcmask 7168
    %s126 = scalar_lea.vmem %s1, 15
    %127 = vst.msk [vmem:[%s126] ss:$16 sm:$0x3] %vm125, %v124
    %s128 = scalar_lea.vmem %s1, 15
    %129 = vst.msk [vmem:[%s128] ss:$16 sm:$0xc] %vm125, %v124

// kernel: resnet_generator_forward.28
$region0: #{resnet_generator_forward.28}
  #allocation0 [shape = 'u32[]', space=smem, size = 0x4, offset = 0x4, fixed_abs, tag = 'smem constant byte address 0x4 - core index']
  #allocation1 [shape = 'u32[144,128]{1,0:T(1,128)}', space=vmem, size = 0x12000, scoped, tag = 'internal scratch']
  %s0 = inlined_call_operand.vmem [shape: bf16[32,32], index: 0, kind: input, shape index: {}]
  %s1 = inlined_call_operand.vmem [shape: f32[32,1], index: 1, kind: input, shape index: {}]
  %s2 = inlined_call_operand.vmem [shape: f32[32,1], index: 2, kind: input, shape index: {}]
  %s3 = inlined_call_operand.vmem [shape: bf16[32,32], index: 3, kind: input, shape index: {}]
  %s4 = inlined_call_operand.vmem [shape: bf16[32,32], index: 4, kind: output, shape index: {}]
  %s5 = sld [smem:[#allocation0]]
  $region26: #{resnet_generator_forward.28} parent=0
    _
  %s7 = ssub.s32 1, %s5
  %s8 = scalar_select 0, %s7, %s5
  // Predicated region
  $region2: #{resnet_generator_forward.28} parent=0 // pred_check
    _
  $region3: #{resnet_generator_forward.28} parent=0 // pred_check_branch
    %10 = sbr.rel (0) target = $region5
  $region4: #{resnet_generator_forward.28} parent=0 // pred_region
    _
  $region5: #{resnet_generator_forward.28} parent=0 // pred_fallthru
    _
  // Predicated region
  $region6: #{resnet_generator_forward.28} parent=0 // pred_check
    _
  $region7: #{resnet_generator_forward.28} parent=0 // pred_check_branch
    %12 = sbr.rel (0) target = $region9
  $region8: #{resnet_generator_forward.28} parent=0 // pred_region
    _
  $region9: #{resnet_generator_forward.28} parent=0 // pred_fallthru
    _
  // Predicated region
  $region10: #{resnet_generator_forward.28} parent=0 // pred_check
    _
  $region11: #{resnet_generator_forward.28} parent=0 // pred_check_branch
    %14 = sbr.rel (0) target = $region13
  $region12: #{resnet_generator_forward.28} parent=0 // pred_region
    _
  $region13: #{resnet_generator_forward.28} parent=0 // pred_fallthru
    _
  // Predicated region
  $region14: #{resnet_generator_forward.28} parent=0 // pred_check
    _
  $region15: #{resnet_generator_forward.28} parent=0 // pred_check_branch
    %16 = sbr.rel (0) target = $region17
  $region16: #{resnet_generator_forward.28} parent=0 // pred_region
    _
  $region17: #{resnet_generator_forward.28} parent=0 // pred_fallthru
    _
  %v17 = vld [vmem:[%s0] sm:$0xf]
  %v18 = vld [vmem:[%s0 + $0x4] sm:$0xf]
  %v19 = vld [vmem:[%s0 + $0x8] sm:$0xf]
  %v20 = vld [vmem:[%s0 + $0xc] sm:$0xf]
  %v21 = vunpack.c.l.bf16 %v17
  %v22 = vunpack.c.l.bf16 %v18
  %v23 = vunpack.c.l.bf16 %v19
  %v24 = vunpack.c.l.bf16 %v20
  %v25 = vld [vmem:[%s1] sm:$0xff]
  %v26 = vld [vmem:[%s1 + $0x8] sm:$0xff]
  %v27 = vld [vmem:[%s1 + $0x10] sm:$0xff]
  %v28 = vld [vmem:[%s1 + $0x18] sm:$0xff]
  %30 = vset.pattern.permute.xlu0 0
  %31 = vperm.xlu0 %30, %v25
  %v32 = vpop.permute.xlu0 %31
  %35 = vset.pattern.permute.xlu0 0
  %36 = vperm.xlu0 %35, %v26
  %v37 = vpop.permute.xlu0 %36
  %40 = vset.pattern.permute.xlu0 0
  %41 = vperm.xlu0 %40, %v27
  %v42 = vpop.permute.xlu0 %41
  %45 = vset.pattern.permute.xlu0 0
  %46 = vperm.xlu0 %45, %v28
  %v47 = vpop.permute.xlu0 %46
  %v49 = vmul.f32 %v21, %v32
  %v50 = vmul.f32 %v22, %v37
  %v51 = vmul.f32 %v23, %v42
  %v52 = vmul.f32 %v24, %v47
  %v53 = vld [vmem:[%s2] sm:$0xff]
  %v54 = vld [vmem:[%s2 + $0x8] sm:$0xff]
  %v55 = vld [vmem:[%s2 + $0x10] sm:$0xff]
  %v56 = vld [vmem:[%s2 + $0x18] sm:$0xff]
  %58 = vset.pattern.permute.xlu0 0
  %59 = vperm.xlu0 %58, %v53
  %v60 = vpop.permute.xlu0 %59
  %63 = vset.pattern.permute.xlu0 0
  %64 = vperm.xlu0 %63, %v54
  %v65 = vpop.permute.xlu0 %64
  %68 = vset.pattern.permute.xlu0 0
  %69 = vperm.xlu0 %68, %v55
  %v70 = vpop.permute.xlu0 %69
  %73 = vset.pattern.permute.xlu0 0
  %74 = vperm.xlu0 %73, %v56
  %v75 = vpop.permute.xlu0 %74
  %v77 = vadd.f32 %v49, %v60
  %v78 = vadd.f32 %v50, %v65
  %v79 = vadd.f32 %v51, %v70
  %v80 = vadd.f32 %v52, %v75
  %v81 = vld [vmem:[%s3] sm:$0xf]
  %v82 = vld [vmem:[%s3 + $0x4] sm:$0xf]
  %v83 = vld [vmem:[%s3 + $0x8] sm:$0xf]
  %v84 = vld [vmem:[%s3 + $0xc] sm:$0xf]
  %v85 = vunpack.c.l.bf16 %v81
  %v86 = vunpack.c.l.bf16 %v82
  %v87 = vunpack.c.l.bf16 %v83
  %v88 = vunpack.c.l.bf16 %v84
  %v89 = vadd.f32 %v77, %v85
  %v90 = vadd.f32 %v78, %v86
  %v91 = vadd.f32 %v79, %v87
  %v92 = vadd.f32 %v80, %v88
  %v93 = vpack.c.bf16 %v90, %v89
  %v94 = vpack.c.bf16 %v92, %v91
  %v97 = vunpack.c.l.b16 %v93
  %v98 = vunpack.c.h.b16 %v93
  %v99 = vunpack.c.l.b16 %v94
  %v100 = vunpack.c.h.b16 %v94
  %v101 = vpack.c.b16 %v97, %v97
  %v102 = vpack.c.b16 %v98, %v98
  %v103 = vpack.c.b16 %v99, %v99
  %v104 = vpack.c.b16 %v100, %v100
  %vm109 = vcmask 257024
  %110 = vst.msk [vmem:[%s4] sm:$0xf] %vm109, %v101
  %111 = vst.msk [vmem:[%s4 + $0x4] sm:$0xf] %vm109, %v102
  %112 = vst.msk [vmem:[%s4 + $0x8] sm:$0xf] %vm109, %v103
  %113 = vst.msk [vmem:[%s4 + $0xc] sm:$0xf] %vm109, %v104
  // Predicated region
  $region18: #{resnet_generator_forward.28} parent=0 // pred_check
    _
  $region19: #{resnet_generator_forward.28} parent=0 // pred_check_branch
    %115 = sbr.rel (0) target = $region21
  $region20: #{resnet_generator_forward.28} parent=0 // pred_region
    _
  $region21: #{resnet_generator_forward.28} parent=0 // pred_fallthru
    _
  // Predicated region
  $region22: #{resnet_generator_forward.28} parent=0 // pred_check
    _
  $region23: #{resnet_generator_forward.28} parent=0 // pred_check_branch
    %117 = sbr.rel (0) target = $region25
  $region24: #{resnet_generator_forward.28} parent=0 // pred_region
    _
  $region25: #{resnet_generator_forward.28} parent=0 // pred_fallthru
    _

// kernel: resnet_generator_forward.33
$region0: #{resnet_generator_forward.33}
  #allocation0 [shape = 'u32[]', space=smem, size = 0x4, offset = 0x4, fixed_abs, tag = 'smem constant byte address 0x4 - core index']
  #allocation1 [shape = 'u32[144,128]{1,0:T(1,128)}', space=vmem, size = 0x12000, scoped, tag = 'internal scratch']
  %s0 = inlined_call_operand.vmem [shape: bf16[64,128], index: 0, kind: input, shape index: {}]
  %s1 = inlined_call_operand.vmem [shape: bf16[128,32], index: 1, kind: input, shape index: {}]
  %s2 = inlined_call_operand.vmem [shape: bf16[64,32], index: 2, kind: output, shape index: {0}]
  %s3 = inlined_call_operand.vmem [shape: f32[64,1], index: 3, kind: output, shape index: {1}]
  %s4 = inlined_call_operand.vmem [shape: f32[64,1], index: 4, kind: output, shape index: {2}]
  %5 = xla_tuple %s2, %s3, %s4
  %s6 = sld [smem:[#allocation0]]
  $region38: #{resnet_generator_forward.33} parent=0
    _
  %s8 = ssub.s32 1, %s6
  %s9 = scalar_select 0, %s8, %s6
  // Predicated region
  $region2: #{resnet_generator_forward.33} parent=0 // pred_check
    _
  $region3: #{resnet_generator_forward.33} parent=0 // pred_check_branch
    %11 = sbr.rel (0) target = $region5
  $region4: #{resnet_generator_forward.33} parent=0 // pred_region
    _
  $region5: #{resnet_generator_forward.33} parent=0 // pred_fallthru
    _
  // Predicated region
  $region6: #{resnet_generator_forward.33} parent=0 // pred_check
    _
  $region7: #{resnet_generator_forward.33} parent=0 // pred_check_branch
    %13 = sbr.rel (0) target = $region9
  $region8: #{resnet_generator_forward.33} parent=0 // pred_region
    _
  $region9: #{resnet_generator_forward.33} parent=0 // pred_fallthru
    _
  %p15 = scmp.eq.s32.totalorder 0, 0
  // Predicated region
  $region10: #{resnet_generator_forward.33} parent=0 // pred_check
    %p16 = pneg %p15
  $region11: #{resnet_generator_forward.33} parent=0 // pred_check_branch
    %18 = sbr.rel (%p16) target = $region13
  $region12: #{resnet_generator_forward.33} parent=0 // pred_region
    %vm19 = vcmask 7168
    %20 = vst.msk [vmem:[%s3] sm:$0xff] %vm19, 0.0
    %21 = vst.msk [vmem:[%s3 + $0x8] sm:$0xff] %vm19, 0.0
    %22 = vst.msk [vmem:[%s3 + $0x10] sm:$0xff] %vm19, 0.0
    %23 = vst.msk [vmem:[%s3 + $0x18] sm:$0xff] %vm19, 0.0
    %24 = vst.msk [vmem:[%s3 + $0x20] sm:$0xff] %vm19, 0.0
    %25 = vst.msk [vmem:[%s3 + $0x28] sm:$0xff] %vm19, 0.0
    %26 = vst.msk [vmem:[%s3 + $0x30] sm:$0xff] %vm19, 0.0
    %27 = vst.msk [vmem:[%s3 + $0x38] sm:$0xff] %vm19, 0.0
    %28 = vst.msk [vmem:[%s4] sm:$0xff] %vm19, 0.0
    %29 = vst.msk [vmem:[%s4 + $0x8] sm:$0xff] %vm19, 0.0
    %30 = vst.msk [vmem:[%s4 + $0x10] sm:$0xff] %vm19, 0.0
    %31 = vst.msk [vmem:[%s4 + $0x18] sm:$0xff] %vm19, 0.0
    %32 = vst.msk [vmem:[%s4 + $0x20] sm:$0xff] %vm19, 0.0
    %33 = vst.msk [vmem:[%s4 + $0x28] sm:$0xff] %vm19, 0.0
    %34 = vst.msk [vmem:[%s4 + $0x30] sm:$0xff] %vm19, 0.0
    %35 = vst.msk [vmem:[%s4 + $0x38] sm:$0xff] %vm19, 0.0
  $region13: #{resnet_generator_forward.33} parent=0 // pred_fallthru
    _
  %v36 = vld [vmem:[%s0] sm:$0xf]
  %v37 = vld [vmem:[%s0 + $0x4] sm:$0xf]
  %v38 = vld [vmem:[%s0 + $0x8] sm:$0xf]
  %v39 = vld [vmem:[%s0 + $0xc] sm:$0xf]
  %v40 = vld [vmem:[%s0 + $0x10] sm:$0xf]
  %v41 = vld [vmem:[%s0 + $0x14] sm:$0xf]
  %v42 = vld [vmem:[%s0 + $0x18] sm:$0xf]
  %v43 = vld [vmem:[%s0 + $0x1c] sm:$0xf]
  %v44 = vld [vmem:[%s1] sm:$0xf]
  %v45 = vld [vmem:[%s1 + $0x4] sm:$0xf]
  %v46 = vld [vmem:[%s1 + $0x8] sm:$0xf]
  %v47 = vld [vmem:[%s1 + $0xc] sm:$0xf]
  %v48 = vld [vmem:[%s1 + $0x10] sm:$0xf]
  %v49 = vld [vmem:[%s1 + $0x14] sm:$0xf]
  %v50 = vld [vmem:[%s1 + $0x18] sm:$0xf]
  %v51 = vld [vmem:[%s1 + $0x1c] sm:$0xf]
  %v52 = vld [vmem:[%s1 + $0x20] sm:$0xf]
  %v53 = vld [vmem:[%s1 + $0x24] sm:$0xf]
  %v54 = vld [vmem:[%s1 + $0x28] sm:$0xf]
  %v55 = vld [vmem:[%s1 + $0x2c] sm:$0xf]
  %v56 = vld [vmem:[%s1 + $0x30] sm:$0xf]
  %v57 = vld [vmem:[%s1 + $0x34] sm:$0xf]
  %v58 = vld [vmem:[%s1 + $0x38] sm:$0xf]
  %v59 = vld [vmem:[%s1 + $0x3c] sm:$0xf]
  %v68 = vunpack.c.l.b16 %v36
  %v69 = vunpack.c.l.b16 %v37
  %v70 = vunpack.c.l.b16 %v38
  %v71 = vunpack.c.l.b16 %v39
  %v72 = vunpack.c.l.b16 %v40
  %v73 = vunpack.c.l.b16 %v41
  %v74 = vunpack.c.l.b16 %v42
  %v75 = vunpack.c.l.b16 %v43
  %v76 = vpack.c.b16 %v69, %v68
  %v77 = vpack.c.b16 %v71, %v70
  %v78 = vpack.c.b16 %v73, %v72
  %v79 = vpack.c.b16 %v75, %v74
  %v100 = vunpack.c.l.b16 %v44
  %v101 = vunpack.c.l.b16 %v45
  %v102 = vunpack.c.l.b16 %v46
  %v103 = vunpack.c.l.b16 %v47
  %v104 = vunpack.c.l.b16 %v48
  %v105 = vunpack.c.l.b16 %v49
  %v106 = vunpack.c.l.b16 %v50
  %v107 = vunpack.c.l.b16 %v51
  %v108 = vunpack.c.l.b16 %v52
  %v109 = vunpack.c.l.b16 %v53
  %v110 = vunpack.c.l.b16 %v54
  %v111 = vunpack.c.l.b16 %v55
  %v112 = vunpack.c.l.b16 %v56
  %v113 = vunpack.c.l.b16 %v57
  %v114 = vunpack.c.l.b16 %v58
  %v115 = vunpack.c.l.b16 %v59
  %v116 = vpack.c.b16 %v101, %v100
  %v117 = vpack.c.b16 %v103, %v102
  %v118 = vpack.c.b16 %v105, %v104
  %v119 = vpack.c.b16 %v107, %v106
  %v120 = vpack.c.b16 %v109, %v108
  %v121 = vpack.c.b16 %v111, %v110
  %v122 = vpack.c.b16 %v113, %v112
  %v123 = vpack.c.b16 %v115, %v114
  %132 = vmatprep.subr.bf16.mxu0 0
  %133 = vmatpush1.bf16.msra.mxu0 %v116
  %134 = vmatprep.subr.bf16.mxu0 0
  %135 = vmatpush1.bf16.msra.mxu0 %v117
  %136 = vmatprep.subr.bf16.mxu0 0
  %137 = vmatpush1.bf16.msra.mxu0 %v118
  %138 = vmatprep.subr.bf16.mxu0 0
  %139 = vmatpush1.bf16.msra.mxu0 %v119
  %140 = vmatprep.subr.bf16.mxu0 0
  %141 = vmatpush1.bf16.msra.mxu0 %v120
  %142 = vmatprep.subr.bf16.mxu0 0
  %143 = vmatpush1.bf16.msra.mxu0 %v121
  %144 = vmatprep.subr.bf16.mxu0 0
  %145 = vmatpush1.bf16.msra.mxu0 %v122
  %146 = vmatprep.subr.bf16.mxu0 0
  %147 = vmatpush1.bf16.msra.mxu0 %v123
  %148 = vmatprep.subr.bf16.mxu0 0
  %149 = vmatpush1.bf16.msra.mxu0 0
  %150 = vmatprep.subr.bf16.mxu0 0
  %151 = vmatpush1.bf16.msra.mxu0 0
  %152 = vmatprep.subr.bf16.mxu0 0
  %153 = vmatpush1.bf16.msra.mxu0 0
  %154 = vmatprep.subr.bf16.mxu0 0
  %155 = vmatpush1.bf16.msra.mxu0 0
  %156 = vmatprep.subr.bf16.mxu0 0
  %157 = vmatpush1.bf16.msra.mxu0 0
  %158 = vmatprep.subr.bf16.mxu0 0
  %159 = vmatpush1.bf16.msra.mxu0 0
  %160 = vmatprep.subr.bf16.mxu0 0
  %161 = vmatpush1.bf16.msra.mxu0 0
  %162 = vmatprep.subr.bf16.mxu0 0
  %163 = vmatpush1.bf16.msra.mxu0 0
  %164 = vmatprep.mubr.bf16.mxu0 0
  %165 = vmatmul.mubr.bf16.gmra.mrb[0].mxu0 %v76
  %v166 = vpop.f32.mrb[0].mxu0
  %v167 = vadd.f32 0.0, %v166
  %v168 = vpop.f32.mrb[0].mxu0
  %v169 = vpop.f32.mrb[0].mxu0
  %v170 = vadd.f32 0.0, %v169
  %v171 = vpop.f32.mrb[0].mxu0
  %172 = vmatprep.mubr.bf16.mxu0 0
  %173 = vmatmul.mubr.bf16.gmra.mrb[0].mxu0 %v77
  %v174 = vpop.f32.mrb[0].mxu0
  %v175 = vadd.f32 0.0, %v174
  %v176 = vpop.f32.mrb[0].mxu0
  %v177 = vpop.f32.mrb[0].mxu0
  %v178 = vadd.f32 0.0, %v177
  %v179 = vpop.f32.mrb[0].mxu0
  %180 = vmatprep.mubr.bf16.mxu0 0
  %181 = vmatmul.mubr.bf16.gmra.mrb[0].mxu0 %v78
  %v182 = vpop.f32.mrb[0].mxu0
  %v183 = vadd.f32 0.0, %v182
  %v184 = vpop.f32.mrb[0].mxu0
  %v185 = vpop.f32.mrb[0].mxu0
  %v186 = vadd.f32 0.0, %v185
  %v187 = vpop.f32.mrb[0].mxu0
  %188 = vmatprep.mubr.bf16.mxu0 0
  %189 = vmatmul.mubr.bf16.gmra.mrb[0].mxu0 %v79
  %v190 = vpop.f32.mrb[0].mxu0
  %v191 = vadd.f32 0.0, %v190
  %v192 = vpop.f32.mrb[0].mxu0
  %v193 = vpop.f32.mrb[0].mxu0
  %v194 = vadd.f32 0.0, %v193
  %v195 = vpop.f32.mrb[0].mxu0
  %196 = vdwg.mxu0
  %v197 = vpack.c.bf16 %v170, %v167
  %v198 = vpack.c.bf16 %v178, %v175
  %v199 = vpack.c.bf16 %v186, %v183
  %v200 = vpack.c.bf16 %v194, %v191
  %v205 = vunpack.c.l.b16 %v197
  %v206 = vunpack.c.h.b16 %v197
  %v207 = vunpack.c.l.b16 %v198
  %v208 = vunpack.c.h.b16 %v198
  %v209 = vunpack.c.l.b16 %v199
  %v210 = vunpack.c.h.b16 %v199
  %v211 = vunpack.c.l.b16 %v200
  %v212 = vunpack.c.h.b16 %v200
  %v213 = vpack.c.b16 %v205, %v205
  %v214 = vpack.c.b16 %v206, %v206
  %v215 = vpack.c.b16 %v207, %v207
  %v216 = vpack.c.b16 %v208, %v208
  %v217 = vpack.c.b16 %v209, %v209
  %v218 = vpack.c.b16 %v210, %v210
  %v219 = vpack.c.b16 %v211, %v211
  %v220 = vpack.c.b16 %v212, %v212
  %vm229 = vcmask 257024
  %230 = vst.msk [vmem:[%s2] sm:$0xf] %vm229, %v213
  %231 = vst.msk [vmem:[%s2 + $0x4] sm:$0xf] %vm229, %v214
  %232 = vst.msk [vmem:[%s2 + $0x8] sm:$0xf] %vm229, %v215
  %233 = vst.msk [vmem:[%s2 + $0xc] sm:$0xf] %vm229, %v216
  %234 = vst.msk [vmem:[%s2 + $0x10] sm:$0xf] %vm229, %v217
  %235 = vst.msk [vmem:[%s2 + $0x14] sm:$0xf] %vm229, %v218
  %236 = vst.msk [vmem:[%s2 + $0x18] sm:$0xf] %vm229, %v219
  %237 = vst.msk [vmem:[%s2 + $0x1c] sm:$0xf] %vm229, %v220
  %v238 = vld [vmem:[%s3] sm:$0xff]
  %v239 = vld [vmem:[%s3 + $0x8] sm:$0xff]
  %v240 = vld [vmem:[%s3 + $0x10] sm:$0xff]
  %v241 = vld [vmem:[%s3 + $0x18] sm:$0xff]
  %v242 = vld [vmem:[%s3 + $0x20] sm:$0xff]
  %v243 = vld [vmem:[%s3 + $0x28] sm:$0xff]
  %v244 = vld [vmem:[%s3 + $0x30] sm:$0xff]
  %v245 = vld [vmem:[%s3 + $0x38] sm:$0xff]
  %vm246 = vcmask 261120
  %v247 = vsel %vm246, %v167, 0.0
  %248 = vadd.xlane.f32.xlu0 %v247
  %v249 = vpop.xlane.xlu0 %248
  %v250 = vsel %vm246, %v170, 0.0
  %251 = vadd.xlane.f32.xlu0 %v250
  %v252 = vpop.xlane.xlu0 %251
  %v253 = vsel %vm246, %v175, 0.0
  %254 = vadd.xlane.f32.xlu0 %v253
  %v255 = vpop.xlane.xlu0 %254
  %v256 = vsel %vm246, %v178, 0.0
  %257 = vadd.xlane.f32.xlu0 %v256
  %v258 = vpop.xlane.xlu0 %257
  %v259 = vsel %vm246, %v183, 0.0
  %260 = vadd.xlane.f32.xlu0 %v259
  %v261 = vpop.xlane.xlu0 %260
  %v262 = vsel %vm246, %v186, 0.0
  %263 = vadd.xlane.f32.xlu0 %v262
  %v264 = vpop.xlane.xlu0 %263
  %v265 = vsel %vm246, %v191, 0.0
  %266 = vadd.xlane.f32.xlu0 %v265
  %v267 = vpop.xlane.xlu0 %266
  %v268 = vsel %vm246, %v194, 0.0
  %269 = vadd.xlane.f32.xlu0 %v268
  %v270 = vpop.xlane.xlu0 %269
  %v271 = vadd.f32 %v238, %v249
  %v272 = vadd.f32 %v239, %v252
  %v273 = vadd.f32 %v240, %v255
  %v274 = vadd.f32 %v241, %v258
  %v275 = vadd.f32 %v242, %v261
  %v276 = vadd.f32 %v243, %v264
  %v277 = vadd.f32 %v244, %v267
  %v278 = vadd.f32 %v245, %v270
  %vm279 = vcmask 7168
  %280 = vst.msk [vmem:[%s3] sm:$0xff] %vm279, %v271
  %281 = vst.msk [vmem:[%s3 + $0x8] sm:$0xff] %vm279, %v272
  %282 = vst.msk [vmem:[%s3 + $0x10] sm:$0xff] %vm279, %v273
  %283 = vst.msk [vmem:[%s3 + $0x18] sm:$0xff] %vm279, %v274
  %284 = vst.msk [vmem:[%s3 + $0x20] sm:$0xff] %vm279, %v275
  %285 = vst.msk [vmem:[%s3 + $0x28] sm:$0xff] %vm279, %v276
  %286 = vst.msk [vmem:[%s3 + $0x30] sm:$0xff] %vm279, %v277
  %287 = vst.msk [vmem:[%s3 + $0x38] sm:$0xff] %vm279, %v278
  %v288 = vld [vmem:[%s4] sm:$0xff]
  %v289 = vld [vmem:[%s4 + $0x8] sm:$0xff]
  %v290 = vld [vmem:[%s4 + $0x10] sm:$0xff]
  %v291 = vld [vmem:[%s4 + $0x18] sm:$0xff]
  %v292 = vld [vmem:[%s4 + $0x20] sm:$0xff]
  %v293 = vld [vmem:[%s4 + $0x28] sm:$0xff]
  %v294 = vld [vmem:[%s4 + $0x30] sm:$0xff]
  %v295 = vld [vmem:[%s4 + $0x38] sm:$0xff]
  %v296 = vmul.f32 %v167, %v167
  %v297 = vmul.f32 %v170, %v170
  %v298 = vmul.f32 %v175, %v175
  %v299 = vmul.f32 %v178, %v178
  %v300 = vmul.f32 %v183, %v183
  %v301 = vmul.f32 %v186, %v186
  %v302 = vmul.f32 %v191, %v191
  %v303 = vmul.f32 %v194, %v194
  %v304 = vsel %vm246, %v296, 0.0
  %305 = vadd.xlane.f32.xlu0 %v304
  %v306 = vpop.xlane.xlu0 %305
  %v307 = vsel %vm246, %v297, 0.0
  %308 = vadd.xlane.f32.xlu0 %v307
  %v309 = vpop.xlane.xlu0 %308
  %v310 = vsel %vm246, %v298, 0.0
  %311 = vadd.xlane.f32.xlu0 %v310
  %v312 = vpop.xlane.xlu0 %311
  %v313 = vsel %vm246, %v299, 0.0
  %314 = vadd.xlane.f32.xlu0 %v313
  %v315 = vpop.xlane.xlu0 %314
  %v316 = vsel %vm246, %v300, 0.0
  %317 = vadd.xlane.f32.xlu0 %v316
  %v318 = vpop.xlane.xlu0 %317
  %v319 = vsel %vm246, %v301, 0.0
  %320 = vadd.xlane.f32.xlu0 %v319
  %v321 = vpop.xlane.xlu0 %320
  %v322 = vsel %vm246, %v302, 0.0
  %323 = vadd.xlane.f32.xlu0 %v322
  %v324 = vpop.xlane.xlu0 %323
  %v325 = vsel %vm246, %v303, 0.0
  %326 = vadd.xlane.f32.xlu0 %v325
  %v327 = vpop.xlane.xlu0 %326
  %v328 = vadd.f32 %v288, %v306
  %v329 = vadd.f32 %v289, %v309
  %v330 = vadd.f32 %v290, %v312
  %v331 = vadd.f32 %v291, %v315
  %v332 = vadd.f32 %v292, %v318
  %v333 = vadd.f32 %v293, %v321
  %v334 = vadd.f32 %v294, %v324
  %v335 = vadd.f32 %v295, %v327
  %336 = vst.msk [vmem:[%s4] sm:$0xff] %vm279, %v328
  %337 = vst.msk [vmem:[%s4 + $0x8] sm:$0xff] %vm279, %v329
  %338 = vst.msk [vmem:[%s4 + $0x10] sm:$0xff] %vm279, %v330
  %339 = vst.msk [vmem:[%s4 + $0x18] sm:$0xff] %vm279, %v331
  %340 = vst.msk [vmem:[%s4 + $0x20] sm:$0xff] %vm279, %v332
  %341 = vst.msk [vmem:[%s4 + $0x28] sm:$0xff] %vm279, %v333
  %342 = vst.msk [vmem:[%s4 + $0x30] sm:$0xff] %vm279, %v334
  %343 = vst.msk [vmem:[%s4 + $0x38] sm:$0xff] %vm279, %v335
  // Predicated region
  $region14: #{resnet_generator_forward.33} parent=0 // pred_check
    _
  $region15: #{resnet_generator_forward.33} parent=0 // pred_check_branch
    %345 = sbr.rel (0) target = $region17
  $region16: #{resnet_generator_forward.33} parent=0 // pred_region
    _
  $region17: #{resnet_generator_forward.33} parent=0 // pred_fallthru
    _
  // Predicated region
  $region18: #{resnet_generator_forward.33} parent=0 // pred_check
    _
  $region19: #{resnet_generator_forward.33} parent=0 // pred_check_branch
    %347 = sbr.rel (0) target = $region21
  $region20: #{resnet_generator_forward.33} parent=0 // pred_region
    _
  $region21: #{resnet_generator_forward.33} parent=0 // pred_fallthru
    _
  // Predicated region
  $region22: #{resnet_generator_forward.33} parent=0 // pred_check
    _
  $region23: #{resnet_generator_forward.33} parent=0 // pred_check_branch
    %349 = sbr.rel (0) target = $region25
  $region24: #{resnet_generator_forward.33} parent=0 // pred_region
    _
  $region25: #{resnet_generator_forward.33} parent=0 // pred_fallthru
    _
  // Predicated region
  $region26: #{resnet_generator_forward.33} parent=0 // pred_check
    _
  $region27: #{resnet_generator_forward.33} parent=0 // pred_check_branch
    %351 = sbr.rel (0) target = $region29
  $region28: #{resnet_generator_forward.33} parent=0 // pred_region
    _
  $region29: #{resnet_generator_forward.33} parent=0 // pred_fallthru
    _
  // Predicated region
  $region30: #{resnet_generator_forward.33} parent=0 // pred_check
    _
  $region31: #{resnet_generator_forward.33} parent=0 // pred_check_branch
    %353 = sbr.rel (0) target = $region33
  $region32: #{resnet_generator_forward.33} parent=0 // pred_region
    _
  $region33: #{resnet_generator_forward.33} parent=0 // pred_fallthru
    _
  // Predicated region
  $region34: #{resnet_generator_forward.33} parent=0 // pred_check
    _
  $region35: #{resnet_generator_forward.33} parent=0 // pred_check_branch
    %355 = sbr.rel (0) target = $region37
  $region36: #{resnet_generator_forward.33} parent=0 // pred_region
    _
  $region37: #{resnet_generator_forward.33} parent=0 // pred_fallthru
    _

// kernel: squeeze.34
$region0: #{squeeze.34}
  %s0 = inlined_call_operand.vmem [shape: f32[32], index: 0, kind: input, shape index: {}]
  %s1 = inlined_call_operand.vmem [shape: f32[4,8], index: 1, kind: output, shape index: {}]
  $region1: #{squeeze.34} parent=0
    #allocation0 [shape = 'u8[4096]{0}', space=vmem, size = 0x1000, scoped, tag = 'scoped mem for output reshape']
    #allocation1 [shape = 'u8[4096]{0}', space=vmem, size = 0x1000, scoped, tag = 'scoped mem for input reshape']
    %s3 = sshllo.u32 0, 1
    %v4 = vld [vmem:[%s0] sm:%s3]
    %5 = vst [vmem:[#allocation1] sm:%s3] %v4
    %v6 = vld [vmem:[#allocation1] sm:$0x1]
    %vm7 = vcmask 64512
    %8 = vst.msk [vmem:[#allocation0] sm:$0x1] %vm7, %v6
    %v9 = vld [vmem:[#allocation1] sm:$0x1]
    %10 = vrot.lane.b32.xlu0 %v9, 120
    %v11 = vpop.permute.xlu0 %10
    %vm12 = vcmask 64512
    %s13 = scalar_lea.vmem [#allocation0], 1
    %14 = vst.msk [vmem:[%s13] sm:$0x1] %vm12, %v11
    %v15 = vld [vmem:[#allocation1] sm:$0x1]
    %16 = vrot.lane.b32.xlu0 %v15, 112
    %v17 = vpop.permute.xlu0 %16
    %vm18 = vcmask 64512
    %s19 = scalar_lea.vmem [#allocation0], 2
    %20 = vst.msk [vmem:[%s19] sm:$0x1] %vm18, %v17
    %v21 = vld [vmem:[#allocation1] sm:$0x1]
    %22 = vrot.lane.b32.xlu0 %v21, 104
    %v23 = vpop.permute.xlu0 %22
    %vm24 = vcmask 64512
    %s25 = scalar_lea.vmem [#allocation0], 3
    %26 = vst.msk [vmem:[%s25] sm:$0x1] %vm24, %v23
    %s28 = sshllo.u32 0, 4
    %v30 = vld [vmem:[#allocation0] sm:%s28]
    %s31 = sshllo.u32 0, 4
    %32 = vst [vmem:[%s1] sm:%s31] %v30

// kernel: tile.37
$region0: #{tile.37}
  #allocation0 [shape = 's32[1]{0}', space=sflag, size = 0x4, scoped, tag = 'scoped memory for tile.37']
  %s0 = inlined_call_operand.vmem [shape: f32[8], index: 0, kind: input, shape index: {}]
  %s1 = inlined_call_operand.vmem [shape: f32[4,8], index: 1, kind: output, shape index: {}]
  // Predicated region
  $region2: #{tile.37} parent=0 // pred_check
    _
  $region3: #{tile.37} parent=0 // pred_check_branch
    %3 = sbr.rel (0) target = $region5
  $region4: #{tile.37} parent=0 // pred_region
    _
  $region5: #{tile.37} parent=0 // pred_fallthru
    _
  %v4 = vld [vmem:[%s0] ss:$0 sm:$0xff]
  %5 = vst [vmem:[%s1] sm:$0xf] %v4

// kernel: tile.2
$region0: #{tile.2}
  %s0 = inlined_call_operand.vmem [shape: f32[4,8], index: 0, kind: input, shape index: {}]
  %s1 = inlined_call_operand.vmem [shape: f32[32,1], index: 1, kind: output, shape index: {}]
  $region1: #{tile.2} parent=0
    #allocation0 [shape = 'u8[4096]{0}', space=vmem, size = 0x1000, scoped, tag = 'scoped mem for input reshape']
    %s3 = sshllo.u32 0, 4
    %v4 = vld [vmem:[%s0] sm:%s3]
    %5 = vst [vmem:[#allocation0] sm:%s3] %v4
    %v6 = vld [vmem:[#allocation0] sm:$0xf]
    %vm7 = vcmask 7168
    %8 = vst.msk [vmem:[%s1] ss:$8 sm:$0xf] %vm7, %v6
    %v9 = vld [vmem:[#allocation0] sm:$0xf]
    %10 = vrot.lane.b32.xlu0 %v9, 127
    %v11 = vpop.permute.xlu0 %10
    %vm12 = vcmask 7168
    %s13 = scalar_lea.vmem %s1, 1
    %14 = vst.msk [vmem:[%s13] ss:$8 sm:$0xf] %vm12, %v11
    %v15 = vld [vmem:[#allocation0] sm:$0xf]
    %16 = vrot.lane.b32.xlu0 %v15, 126
    %v17 = vpop.permute.xlu0 %16
    %vm18 = vcmask 7168
    %s19 = scalar_lea.vmem %s1, 2
    %20 = vst.msk [vmem:[%s19] ss:$8 sm:$0xf] %vm18, %v17
    %v21 = vld [vmem:[#allocation0] sm:$0xf]
    %22 = vrot.lane.b32.xlu0 %v21, 125
    %v23 = vpop.permute.xlu0 %22
    %vm24 = vcmask 7168
    %s25 = scalar_lea.vmem %s1, 3
    %26 = vst.msk [vmem:[%s25] ss:$8 sm:$0xf] %vm24, %v23
    %v27 = vld [vmem:[#allocation0] sm:$0xf]
    %28 = vrot.lane.b32.xlu0 %v27, 124
    %v29 = vpop.permute.xlu0 %28
    %vm30 = vcmask 7168
    %s31 = scalar_lea.vmem %s1, 4
    %32 = vst.msk [vmem:[%s31] ss:$8 sm:$0xf] %vm30, %v29
    %v33 = vld [vmem:[#allocation0] sm:$0xf]
    %34 = vrot.lane.b32.xlu0 %v33, 123
    %v35 = vpop.permute.xlu0 %34
    %vm36 = vcmask 7168
    %s37 = scalar_lea.vmem %s1, 5
    %38 = vst.msk [vmem:[%s37] ss:$8 sm:$0xf] %vm36, %v35
    %v39 = vld [vmem:[#allocation0] sm:$0xf]
    %40 = vrot.lane.b32.xlu0 %v39, 122
    %v41 = vpop.permute.xlu0 %40
    %vm42 = vcmask 7168
    %s43 = scalar_lea.vmem %s1, 6
    %44 = vst.msk [vmem:[%s43] ss:$8 sm:$0xf] %vm42, %v41
    %v45 = vld [vmem:[#allocation0] sm:$0xf]
    %46 = vrot.lane.b32.xlu0 %v45, 121
    %v47 = vpop.permute.xlu0 %46
    %vm48 = vcmask 7168
    %s49 = scalar_lea.vmem %s1, 7
    %50 = vst.msk [vmem:[%s49] ss:$8 sm:$0xf] %vm48, %v47

// kernel: resnet_generator_forward.34
$region0: #{resnet_generator_forward.34}
  #allocation0 [shape = 'u32[]', space=smem, size = 0x4, offset = 0x4, fixed_abs, tag = 'smem constant byte address 0x4 - core index']
  #allocation1 [shape = 'u32[144,128]{1,0:T(1,128)}', space=vmem, size = 0x12000, scoped, tag = 'internal scratch']
  %s0 = inlined_call_operand.vmem [shape: bf16[64,32], index: 0, kind: input, shape index: {}]
  %s1 = inlined_call_operand.vmem [shape: f32[64,1], index: 1, kind: input, shape index: {}]
  %s2 = inlined_call_operand.vmem [shape: f32[64,1], index: 2, kind: input, shape index: {}]
  %s3 = inlined_call_operand.vmem [shape: bf16[64,32], index: 3, kind: output, shape index: {}]
  %s4 = sld [smem:[#allocation0]]
  $region22: #{resnet_generator_forward.34} parent=0
    _
  %s6 = ssub.s32 1, %s4
  %s7 = scalar_select 0, %s6, %s4
  // Predicated region
  $region2: #{resnet_generator_forward.34} parent=0 // pred_check
    _
  $region3: #{resnet_generator_forward.34} parent=0 // pred_check_branch
    %9 = sbr.rel (0) target = $region5
  $region4: #{resnet_generator_forward.34} parent=0 // pred_region
    _
  $region5: #{resnet_generator_forward.34} parent=0 // pred_fallthru
    _
  // Predicated region
  $region6: #{resnet_generator_forward.34} parent=0 // pred_check
    _
  $region7: #{resnet_generator_forward.34} parent=0 // pred_check_branch
    %11 = sbr.rel (0) target = $region9
  $region8: #{resnet_generator_forward.34} parent=0 // pred_region
    _
  $region9: #{resnet_generator_forward.34} parent=0 // pred_fallthru
    _
  // Predicated region
  $region10: #{resnet_generator_forward.34} parent=0 // pred_check
    _
  $region11: #{resnet_generator_forward.34} parent=0 // pred_check_branch
    %13 = sbr.rel (0) target = $region13
  $region12: #{resnet_generator_forward.34} parent=0 // pred_region
    _
  $region13: #{resnet_generator_forward.34} parent=0 // pred_fallthru
    _
  %v14 = vld [vmem:[%s0] sm:$0xf]
  %v15 = vld [vmem:[%s0 + $0x4] sm:$0xf]
  %v16 = vld [vmem:[%s0 + $0x8] sm:$0xf]
  %v17 = vld [vmem:[%s0 + $0xc] sm:$0xf]
  %v18 = vld [vmem:[%s0 + $0x10] sm:$0xf]
  %v19 = vld [vmem:[%s0 + $0x14] sm:$0xf]
  %v20 = vld [vmem:[%s0 + $0x18] sm:$0xf]
  %v21 = vld [vmem:[%s0 + $0x1c] sm:$0xf]
  %v22 = vunpack.c.l.bf16 %v14
  %v23 = vunpack.c.l.bf16 %v15
  %v24 = vunpack.c.l.bf16 %v16
  %v25 = vunpack.c.l.bf16 %v17
  %v26 = vunpack.c.l.bf16 %v18
  %v27 = vunpack.c.l.bf16 %v19
  %v28 = vunpack.c.l.bf16 %v20
  %v29 = vunpack.c.l.bf16 %v21
  %v30 = vld [vmem:[%s1] sm:$0xff]
  %v31 = vld [vmem:[%s1 + $0x8] sm:$0xff]
  %v32 = vld [vmem:[%s1 + $0x10] sm:$0xff]
  %v33 = vld [vmem:[%s1 + $0x18] sm:$0xff]
  %v34 = vld [vmem:[%s1 + $0x20] sm:$0xff]
  %v35 = vld [vmem:[%s1 + $0x28] sm:$0xff]
  %v36 = vld [vmem:[%s1 + $0x30] sm:$0xff]
  %v37 = vld [vmem:[%s1 + $0x38] sm:$0xff]
  %39 = vset.pattern.permute.xlu0 0
  %40 = vperm.xlu0 %39, %v30
  %v41 = vpop.permute.xlu0 %40
  %44 = vset.pattern.permute.xlu0 0
  %45 = vperm.xlu0 %44, %v31
  %v46 = vpop.permute.xlu0 %45
  %49 = vset.pattern.permute.xlu0 0
  %50 = vperm.xlu0 %49, %v32
  %v51 = vpop.permute.xlu0 %50
  %54 = vset.pattern.permute.xlu0 0
  %55 = vperm.xlu0 %54, %v33
  %v56 = vpop.permute.xlu0 %55
  %59 = vset.pattern.permute.xlu0 0
  %60 = vperm.xlu0 %59, %v34
  %v61 = vpop.permute.xlu0 %60
  %64 = vset.pattern.permute.xlu0 0
  %65 = vperm.xlu0 %64, %v35
  %v66 = vpop.permute.xlu0 %65
  %69 = vset.pattern.permute.xlu0 0
  %70 = vperm.xlu0 %69, %v36
  %v71 = vpop.permute.xlu0 %70
  %74 = vset.pattern.permute.xlu0 0
  %75 = vperm.xlu0 %74, %v37
  %v76 = vpop.permute.xlu0 %75
  %v78 = vmul.f32 %v22, %v41
  %v79 = vmul.f32 %v23, %v46
  %v80 = vmul.f32 %v24, %v51
  %v81 = vmul.f32 %v25, %v56
  %v82 = vmul.f32 %v26, %v61
  %v83 = vmul.f32 %v27, %v66
  %v84 = vmul.f32 %v28, %v71
  %v85 = vmul.f32 %v29, %v76
  %v86 = vld [vmem:[%s2] sm:$0xff]
  %v87 = vld [vmem:[%s2 + $0x8] sm:$0xff]
  %v88 = vld [vmem:[%s2 + $0x10] sm:$0xff]
  %v89 = vld [vmem:[%s2 + $0x18] sm:$0xff]
  %v90 = vld [vmem:[%s2 + $0x20] sm:$0xff]
  %v91 = vld [vmem:[%s2 + $0x28] sm:$0xff]
  %v92 = vld [vmem:[%s2 + $0x30] sm:$0xff]
  %v93 = vld [vmem:[%s2 + $0x38] sm:$0xff]
  %95 = vset.pattern.permute.xlu0 0
  %96 = vperm.xlu0 %95, %v86
  %v97 = vpop.permute.xlu0 %96
  %100 = vset.pattern.permute.xlu0 0
  %101 = vperm.xlu0 %100, %v87
  %v102 = vpop.permute.xlu0 %101
  %105 = vset.pattern.permute.xlu0 0
  %106 = vperm.xlu0 %105, %v88
  %v107 = vpop.permute.xlu0 %106
  %110 = vset.pattern.permute.xlu0 0
  %111 = vperm.xlu0 %110, %v89
  %v112 = vpop.permute.xlu0 %111
  %115 = vset.pattern.permute.xlu0 0
  %116 = vperm.xlu0 %115, %v90
  %v117 = vpop.permute.xlu0 %116
  %120 = vset.pattern.permute.xlu0 0
  %121 = vperm.xlu0 %120, %v91
  %v122 = vpop.permute.xlu0 %121
  %125 = vset.pattern.permute.xlu0 0
  %126 = vperm.xlu0 %125, %v92
  %v127 = vpop.permute.xlu0 %126
  %130 = vset.pattern.permute.xlu0 0
  %131 = vperm.xlu0 %130, %v93
  %v132 = vpop.permute.xlu0 %131
  %v134 = vadd.f32 %v78, %v97
  %v135 = vadd.f32 %v79, %v102
  %v136 = vadd.f32 %v80, %v107
  %v137 = vadd.f32 %v81, %v112
  %v138 = vadd.f32 %v82, %v117
  %v139 = vadd.f32 %v83, %v122
  %v140 = vadd.f32 %v84, %v127
  %v141 = vadd.f32 %v85, %v132
  %v142 = vmax.f32 %v134, 0.0
  %v143 = vmax.f32 %v135, 0.0
  %v144 = vmax.f32 %v136, 0.0
  %v145 = vmax.f32 %v137, 0.0
  %v146 = vmax.f32 %v138, 0.0
  %v147 = vmax.f32 %v139, 0.0
  %v148 = vmax.f32 %v140, 0.0
  %v149 = vmax.f32 %v141, 0.0
  %v150 = vpack.c.bf16 %v143, %v142
  %v151 = vpack.c.bf16 %v145, %v144
  %v152 = vpack.c.bf16 %v147, %v146
  %v153 = vpack.c.bf16 %v149, %v148
  %v158 = vunpack.c.l.b16 %v150
  %v159 = vunpack.c.h.b16 %v150
  %v160 = vunpack.c.l.b16 %v151
  %v161 = vunpack.c.h.b16 %v151
  %v162 = vunpack.c.l.b16 %v152
  %v163 = vunpack.c.h.b16 %v152
  %v164 = vunpack.c.l.b16 %v153
  %v165 = vunpack.c.h.b16 %v153
  %v166 = vpack.c.b16 %v158, %v158
  %v167 = vpack.c.b16 %v159, %v159
  %v168 = vpack.c.b16 %v160, %v160
  %v169 = vpack.c.b16 %v161, %v161
  %v170 = vpack.c.b16 %v162, %v162
  %v171 = vpack.c.b16 %v163, %v163
  %v172 = vpack.c.b16 %v164, %v164
  %v173 = vpack.c.b16 %v165, %v165
  %vm182 = vcmask 257024
  %183 = vst.msk [vmem:[%s3] sm:$0xf] %vm182, %v166
  %184 = vst.msk [vmem:[%s3 + $0x4] sm:$0xf] %vm182, %v167
  %185 = vst.msk [vmem:[%s3 + $0x8] sm:$0xf] %vm182, %v168
  %186 = vst.msk [vmem:[%s3 + $0xc] sm:$0xf] %vm182, %v169
  %187 = vst.msk [vmem:[%s3 + $0x10] sm:$0xf] %vm182, %v170
  %188 = vst.msk [vmem:[%s3 + $0x14] sm:$0xf] %vm182, %v171
  %189 = vst.msk [vmem:[%s3 + $0x18] sm:$0xf] %vm182, %v172
  %190 = vst.msk [vmem:[%s3 + $0x1c] sm:$0xf] %vm182, %v173
  // Predicated region
  $region14: #{resnet_generator_forward.34} parent=0 // pred_check
    _
  $region15: #{resnet_generator_forward.34} parent=0 // pred_check_branch
    %192 = sbr.rel (0) target = $region17
  $region16: #{resnet_generator_forward.34} parent=0 // pred_region
    _
  $region17: #{resnet_generator_forward.34} parent=0 // pred_fallthru
    _
  // Predicated region
  $region18: #{resnet_generator_forward.34} parent=0 // pred_check
    _
  $region19: #{resnet_generator_forward.34} parent=0 // pred_check_branch
    %194 = sbr.rel (0) target = $region21
  $region20: #{resnet_generator_forward.34} parent=0 // pred_region
    _
  $region21: #{resnet_generator_forward.34} parent=0 // pred_fallthru
    _

// kernel: resnet_generator_forward.35
$region0: #{resnet_generator_forward.35}
  #allocation0 [shape = 'u32[]', space=smem, size = 0x4, offset = 0x4, fixed_abs, tag = 'smem constant byte address 0x4 - core index']
  #allocation1 [shape = 'u32[144,128]{1,0:T(1,128)}', space=vmem, size = 0x12000, scoped, tag = 'internal scratch']
  %s0 = inlined_call_operand.vmem [shape: bf16[32,64], index: 0, kind: input, shape index: {}]
  %s1 = inlined_call_operand.vmem [shape: bf16[64,128], index: 1, kind: input, shape index: {}]
  %s2 = inlined_call_operand.vmem [shape: bf16[32,128], index: 2, kind: output, shape index: {0}]
  %s3 = inlined_call_operand.vmem [shape: f32[32,1], index: 3, kind: output, shape index: {1}]
  %s4 = inlined_call_operand.vmem [shape: f32[32,1], index: 4, kind: output, shape index: {2}]
  %5 = xla_tuple %s2, %s3, %s4
  %s6 = sld [smem:[#allocation0]]
  $region38: #{resnet_generator_forward.35} parent=0
    _
  %s8 = ssub.s32 1, %s6
  %s9 = scalar_select 0, %s8, %s6
  // Predicated region
  $region2: #{resnet_generator_forward.35} parent=0 // pred_check
    _
  $region3: #{resnet_generator_forward.35} parent=0 // pred_check_branch
    %11 = sbr.rel (0) target = $region5
  $region4: #{resnet_generator_forward.35} parent=0 // pred_region
    _
  $region5: #{resnet_generator_forward.35} parent=0 // pred_fallthru
    _
  // Predicated region
  $region6: #{resnet_generator_forward.35} parent=0 // pred_check
    _
  $region7: #{resnet_generator_forward.35} parent=0 // pred_check_branch
    %13 = sbr.rel (0) target = $region9
  $region8: #{resnet_generator_forward.35} parent=0 // pred_region
    _
  $region9: #{resnet_generator_forward.35} parent=0 // pred_fallthru
    _
  %p15 = scmp.eq.s32.totalorder 0, 0
  // Predicated region
  $region10: #{resnet_generator_forward.35} parent=0 // pred_check
    %p16 = pneg %p15
  $region11: #{resnet_generator_forward.35} parent=0 // pred_check_branch
    %18 = sbr.rel (%p16) target = $region13
  $region12: #{resnet_generator_forward.35} parent=0 // pred_region
    %vm19 = vcmask 7168
    %20 = vst.msk [vmem:[%s3] sm:$0xff] %vm19, 0.0
    %21 = vst.msk [vmem:[%s3 + $0x8] sm:$0xff] %vm19, 0.0
    %22 = vst.msk [vmem:[%s3 + $0x10] sm:$0xff] %vm19, 0.0
    %23 = vst.msk [vmem:[%s3 + $0x18] sm:$0xff] %vm19, 0.0
    %24 = vst.msk [vmem:[%s4] sm:$0xff] %vm19, 0.0
    %25 = vst.msk [vmem:[%s4 + $0x8] sm:$0xff] %vm19, 0.0
    %26 = vst.msk [vmem:[%s4 + $0x10] sm:$0xff] %vm19, 0.0
    %27 = vst.msk [vmem:[%s4 + $0x18] sm:$0xff] %vm19, 0.0
  $region13: #{resnet_generator_forward.35} parent=0 // pred_fallthru
    _
  %v28 = vld [vmem:[%s0] sm:$0xf]
  %v29 = vld [vmem:[%s0 + $0x4] sm:$0xf]
  %v30 = vld [vmem:[%s0 + $0x8] sm:$0xf]
  %v31 = vld [vmem:[%s0 + $0xc] sm:$0xf]
  %v32 = vld [vmem:[%s1] sm:$0xf]
  %v33 = vld [vmem:[%s1 + $0x4] sm:$0xf]
  %v34 = vld [vmem:[%s1 + $0x8] sm:$0xf]
  %v35 = vld [vmem:[%s1 + $0xc] sm:$0xf]
  %v36 = vld [vmem:[%s1 + $0x10] sm:$0xf]
  %v37 = vld [vmem:[%s1 + $0x14] sm:$0xf]
  %v38 = vld [vmem:[%s1 + $0x18] sm:$0xf]
  %v39 = vld [vmem:[%s1 + $0x1c] sm:$0xf]
  %v44 = vunpack.c.l.b16 %v28
  %v45 = vunpack.c.l.b16 %v29
  %v46 = vunpack.c.l.b16 %v30
  %v47 = vunpack.c.l.b16 %v31
  %v48 = vpack.c.b16 %v45, %v44
  %v49 = vpack.c.b16 %v47, %v46
  %v58 = vunpack.c.l.b16 %v32
  %v59 = vunpack.c.l.b16 %v33
  %v60 = vunpack.c.l.b16 %v34
  %v61 = vunpack.c.l.b16 %v35
  %v62 = vunpack.c.l.b16 %v36
  %v63 = vunpack.c.l.b16 %v37
  %v64 = vunpack.c.l.b16 %v38
  %v65 = vunpack.c.l.b16 %v39
  %v66 = vpack.c.b16 %v59, %v58
  %v67 = vpack.c.b16 %v61, %v60
  %v68 = vpack.c.b16 %v63, %v62
  %v69 = vpack.c.b16 %v65, %v64
  %vm74 = vcmask 523264
  %v76 = vsel %vm74, %v48, 0
  %v79 = vsel %vm74, %v49, 0
  %81 = vmatprep.subr.bf16.mxu0 0
  %82 = vmatpush1.bf16.msra.mxu0 %v66
  %83 = vmatprep.subr.bf16.mxu0 0
  %84 = vmatpush1.bf16.msra.mxu0 %v67
  %85 = vmatprep.subr.bf16.mxu0 0
  %86 = vmatpush1.bf16.msra.mxu0 %v68
  %87 = vmatprep.subr.bf16.mxu0 0
  %88 = vmatpush1.bf16.msra.mxu0 %v69
  %89 = vmatprep.subr.bf16.mxu0 0
  %90 = vmatpush1.bf16.msra.mxu0 0
  %91 = vmatprep.subr.bf16.mxu0 0
  %92 = vmatpush1.bf16.msra.mxu0 0
  %93 = vmatprep.subr.bf16.mxu0 0
  %94 = vmatpush1.bf16.msra.mxu0 0
  %95 = vmatprep.subr.bf16.mxu0 0
  %96 = vmatpush1.bf16.msra.mxu0 0
  %97 = vmatprep.subr.bf16.mxu0 0
  %98 = vmatpush1.bf16.msra.mxu0 0
  %99 = vmatprep.subr.bf16.mxu0 0
  %100 = vmatpush1.bf16.msra.mxu0 0
  %101 = vmatprep.subr.bf16.mxu0 0
  %102 = vmatpush1.bf16.msra.mxu0 0
  %103 = vmatprep.subr.bf16.mxu0 0
  %104 = vmatpush1.bf16.msra.mxu0 0
  %105 = vmatprep.subr.bf16.mxu0 0
  %106 = vmatpush1.bf16.msra.mxu0 0
  %107 = vmatprep.subr.bf16.mxu0 0
  %108 = vmatpush1.bf16.msra.mxu0 0
  %109 = vmatprep.subr.bf16.mxu0 0
  %110 = vmatpush1.bf16.msra.mxu0 0
  %111 = vmatprep.subr.bf16.mxu0 0
  %112 = vmatpush1.bf16.msra.mxu0 0
  %113 = vmatprep.mubr.bf16.mxu0 0
  %114 = vmatmul.mubr.bf16.gmra.mrb[0].mxu0 %v76
  %v115 = vpop.f32.mrb[0].mxu0
  %v116 = vadd.f32 0.0, %v115
  %v117 = vpop.f32.mrb[0].mxu0
  %v118 = vpop.f32.mrb[0].mxu0
  %v119 = vadd.f32 0.0, %v118
  %v120 = vpop.f32.mrb[0].mxu0
  %121 = vmatprep.mubr.bf16.mxu0 0
  %122 = vmatmul.mubr.bf16.gmra.mrb[0].mxu0 %v79
  %v123 = vpop.f32.mrb[0].mxu0
  %v124 = vadd.f32 0.0, %v123
  %v125 = vpop.f32.mrb[0].mxu0
  %v126 = vpop.f32.mrb[0].mxu0
  %v127 = vadd.f32 0.0, %v126
  %v128 = vpop.f32.mrb[0].mxu0
  %129 = vdwg.mxu0
  %v130 = vpack.c.bf16 %v119, %v116
  %v131 = vpack.c.bf16 %v127, %v124
  %v134 = vunpack.c.l.b16 %v130
  %v135 = vunpack.c.h.b16 %v130
  %v136 = vunpack.c.l.b16 %v131
  %v137 = vunpack.c.h.b16 %v131
  %v138 = vpack.c.b16 %v134, %v134
  %v139 = vpack.c.b16 %v135, %v135
  %v140 = vpack.c.b16 %v136, %v136
  %v141 = vpack.c.b16 %v137, %v137
  %146 = vst [vmem:[%s2] sm:$0xf] %v138
  %147 = vst [vmem:[%s2 + $0x4] sm:$0xf] %v139
  %148 = vst [vmem:[%s2 + $0x8] sm:$0xf] %v140
  %149 = vst [vmem:[%s2 + $0xc] sm:$0xf] %v141
  %v150 = vld [vmem:[%s3] sm:$0xff]
  %v151 = vld [vmem:[%s3 + $0x8] sm:$0xff]
  %v152 = vld [vmem:[%s3 + $0x10] sm:$0xff]
  %v153 = vld [vmem:[%s3 + $0x18] sm:$0xff]
  %154 = vadd.xlane.f32.xlu0 %v116
  %v155 = vpop.xlane.xlu0 %154
  %156 = vadd.xlane.f32.xlu0 %v119
  %v157 = vpop.xlane.xlu0 %156
  %158 = vadd.xlane.f32.xlu0 %v124
  %v159 = vpop.xlane.xlu0 %158
  %160 = vadd.xlane.f32.xlu0 %v127
  %v161 = vpop.xlane.xlu0 %160
  %v162 = vadd.f32 %v150, %v155
  %v163 = vadd.f32 %v151, %v157
  %v164 = vadd.f32 %v152, %v159
  %v165 = vadd.f32 %v153, %v161
  %vm166 = vcmask 7168
  %167 = vst.msk [vmem:[%s3] sm:$0xff] %vm166, %v162
  %168 = vst.msk [vmem:[%s3 + $0x8] sm:$0xff] %vm166, %v163
  %169 = vst.msk [vmem:[%s3 + $0x10] sm:$0xff] %vm166, %v164
  %170 = vst.msk [vmem:[%s3 + $0x18] sm:$0xff] %vm166, %v165
  %v171 = vld [vmem:[%s4] sm:$0xff]
  %v172 = vld [vmem:[%s4 + $0x8] sm:$0xff]
  %v173 = vld [vmem:[%s4 + $0x10] sm:$0xff]
  %v174 = vld [vmem:[%s4 + $0x18] sm:$0xff]
  %v175 = vmul.f32 %v116, %v116
  %v176 = vmul.f32 %v119, %v119
  %v177 = vmul.f32 %v124, %v124
  %v178 = vmul.f32 %v127, %v127
  %179 = vadd.xlane.f32.xlu0 %v175
  %v180 = vpop.xlane.xlu0 %179
  %181 = vadd.xlane.f32.xlu0 %v176
  %v182 = vpop.xlane.xlu0 %181
  %183 = vadd.xlane.f32.xlu0 %v177
  %v184 = vpop.xlane.xlu0 %183
  %185 = vadd.xlane.f32.xlu0 %v178
  %v186 = vpop.xlane.xlu0 %185
  %v187 = vadd.f32 %v171, %v180
  %v188 = vadd.f32 %v172, %v182
  %v189 = vadd.f32 %v173, %v184
  %v190 = vadd.f32 %v174, %v186
  %191 = vst.msk [vmem:[%s4] sm:$0xff] %vm166, %v187
  %192 = vst.msk [vmem:[%s4 + $0x8] sm:$0xff] %vm166, %v188
  %193 = vst.msk [vmem:[%s4 + $0x10] sm:$0xff] %vm166, %v189
  %194 = vst.msk [vmem:[%s4 + $0x18] sm:$0xff] %vm166, %v190
  // Predicated region
  $region14: #{resnet_generator_forward.35} parent=0 // pred_check
    _
  $region15: #{resnet_generator_forward.35} parent=0 // pred_check_branch
    %196 = sbr.rel (0) target = $region17
  $region16: #{resnet_generator_forward.35} parent=0 // pred_region
    _
  $region17: #{resnet_generator_forward.35} parent=0 // pred_fallthru
    _
  // Predicated region
  $region18: #{resnet_generator_forward.35} parent=0 // pred_check
    _
  $region19: #{resnet_generator_forward.35} parent=0 // pred_check_branch
    %198 = sbr.rel (0) target = $region21
  $region20: #{resnet_generator_forward.35} parent=0 // pred_region
    _
  $region21: #{resnet_generator_forward.35} parent=0 // pred_fallthru
    _
  // Predicated region
  $region22: #{resnet_generator_forward.35} parent=0 // pred_check
    _
  $region23: #{resnet_generator_forward.35} parent=0 // pred_check_branch
    %200 = sbr.rel (0) target = $region25
  $region24: #{resnet_generator_forward.35} parent=0 // pred_region
    _
  $region25: #{resnet_generator_forward.35} parent=0 // pred_fallthru
    _
  // Predicated region
  $region26: #{resnet_generator_forward.35} parent=0 // pred_check
    _
  $region27: #{resnet_generator_forward.35} parent=0 // pred_check_branch
    %202 = sbr.rel (0) target = $region29
  $region28: #{resnet_generator_forward.35} parent=0 // pred_region
    _
  $region29: #{resnet_generator_forward.35} parent=0 // pred_fallthru
    _
  // Predicated region
  $region30: #{resnet_generator_forward.35} parent=0 // pred_check
    _
  $region31: #{resnet_generator_forward.35} parent=0 // pred_check_branch
    %204 = sbr.rel (0) target = $region33
  $region32: #{resnet_generator_forward.35} parent=0 // pred_region
    _
  $region33: #{resnet_generator_forward.35} parent=0 // pred_fallthru
    _
  // Predicated region
  $region34: #{resnet_generator_forward.35} parent=0 // pred_check
    _
  $region35: #{resnet_generator_forward.35} parent=0 // pred_check_branch
    %206 = sbr.rel (0) target = $region37
  $region36: #{resnet_generator_forward.35} parent=0 // pred_region
    _
  $region37: #{resnet_generator_forward.35} parent=0 // pred_fallthru
    _

// kernel: resnet_generator_forward.36
$region0: #{resnet_generator_forward.36}
  #allocation0 [shape = 'u32[]', space=smem, size = 0x4, offset = 0x4, fixed_abs, tag = 'smem constant byte address 0x4 - core index']
  #allocation1 [shape = 'u32[144,128]{1,0:T(1,128)}', space=vmem, size = 0x12000, scoped, tag = 'internal scratch']
  %s0 = inlined_call_operand.vmem [shape: bf16[32,128], index: 0, kind: input, shape index: {}]
  %s1 = inlined_call_operand.vmem [shape: f32[32,1], index: 1, kind: input, shape index: {}]
  %s2 = inlined_call_operand.vmem [shape: f32[32,1], index: 2, kind: input, shape index: {}]
  %s3 = inlined_call_operand.vmem [shape: bf16[32,128], index: 3, kind: output, shape index: {}]
  %s4 = sld [smem:[#allocation0]]
  $region22: #{resnet_generator_forward.36} parent=0
    _
  %s6 = ssub.s32 1, %s4
  %s7 = scalar_select 0, %s6, %s4
  // Predicated region
  $region2: #{resnet_generator_forward.36} parent=0 // pred_check
    _
  $region3: #{resnet_generator_forward.36} parent=0 // pred_check_branch
    %9 = sbr.rel (0) target = $region5
  $region4: #{resnet_generator_forward.36} parent=0 // pred_region
    _
  $region5: #{resnet_generator_forward.36} parent=0 // pred_fallthru
    _
  // Predicated region
  $region6: #{resnet_generator_forward.36} parent=0 // pred_check
    _
  $region7: #{resnet_generator_forward.36} parent=0 // pred_check_branch
    %11 = sbr.rel (0) target = $region9
  $region8: #{resnet_generator_forward.36} parent=0 // pred_region
    _
  $region9: #{resnet_generator_forward.36} parent=0 // pred_fallthru
    _
  // Predicated region
  $region10: #{resnet_generator_forward.36} parent=0 // pred_check
    _
  $region11: #{resnet_generator_forward.36} parent=0 // pred_check_branch
    %13 = sbr.rel (0) target = $region13
  $region12: #{resnet_generator_forward.36} parent=0 // pred_region
    _
  $region13: #{resnet_generator_forward.36} parent=0 // pred_fallthru
    _
  %v14 = vld [vmem:[%s0] sm:$0xf]
  %v15 = vld [vmem:[%s0 + $0x4] sm:$0xf]
  %v16 = vld [vmem:[%s0 + $0x8] sm:$0xf]
  %v17 = vld [vmem:[%s0 + $0xc] sm:$0xf]
  %v18 = vunpack.c.l.bf16 %v14
  %v19 = vunpack.c.l.bf16 %v15
  %v20 = vunpack.c.l.bf16 %v16
  %v21 = vunpack.c.l.bf16 %v17
  %v22 = vld [vmem:[%s1] sm:$0xff]
  %v23 = vld [vmem:[%s1 + $0x8] sm:$0xff]
  %v24 = vld [vmem:[%s1 + $0x10] sm:$0xff]
  %v25 = vld [vmem:[%s1 + $0x18] sm:$0xff]
  %27 = vset.pattern.permute.xlu0 0
  %28 = vperm.xlu0 %27, %v22
  %v29 = vpop.permute.xlu0 %28
  %32 = vset.pattern.permute.xlu0 0
  %33 = vperm.xlu0 %32, %v23
  %v34 = vpop.permute.xlu0 %33
  %37 = vset.pattern.permute.xlu0 0
  %38 = vperm.xlu0 %37, %v24
  %v39 = vpop.permute.xlu0 %38
  %42 = vset.pattern.permute.xlu0 0
  %43 = vperm.xlu0 %42, %v25
  %v44 = vpop.permute.xlu0 %43
  %v46 = vmul.f32 %v18, %v29
  %v47 = vmul.f32 %v19, %v34
  %v48 = vmul.f32 %v20, %v39
  %v49 = vmul.f32 %v21, %v44
  %v50 = vld [vmem:[%s2] sm:$0xff]
  %v51 = vld [vmem:[%s2 + $0x8] sm:$0xff]
  %v52 = vld [vmem:[%s2 + $0x10] sm:$0xff]
  %v53 = vld [vmem:[%s2 + $0x18] sm:$0xff]
  %55 = vset.pattern.permute.xlu0 0
  %56 = vperm.xlu0 %55, %v50
  %v57 = vpop.permute.xlu0 %56
  %60 = vset.pattern.permute.xlu0 0
  %61 = vperm.xlu0 %60, %v51
  %v62 = vpop.permute.xlu0 %61
  %65 = vset.pattern.permute.xlu0 0
  %66 = vperm.xlu0 %65, %v52
  %v67 = vpop.permute.xlu0 %66
  %70 = vset.pattern.permute.xlu0 0
  %71 = vperm.xlu0 %70, %v53
  %v72 = vpop.permute.xlu0 %71
  %v74 = vadd.f32 %v46, %v57
  %v75 = vadd.f32 %v47, %v62
  %v76 = vadd.f32 %v48, %v67
  %v77 = vadd.f32 %v49, %v72
  %v78 = vmax.f32 %v74, 0.0
  %v79 = vmax.f32 %v75, 0.0
  %v80 = vmax.f32 %v76, 0.0
  %v81 = vmax.f32 %v77, 0.0
  %v82 = vpack.c.bf16 %v79, %v78
  %v83 = vpack.c.bf16 %v81, %v80
  %v86 = vunpack.c.l.b16 %v82
  %v87 = vunpack.c.h.b16 %v82
  %v88 = vunpack.c.l.b16 %v83
  %v89 = vunpack.c.h.b16 %v83
  %v90 = vpack.c.b16 %v86, %v86
  %v91 = vpack.c.b16 %v87, %v87
  %v92 = vpack.c.b16 %v88, %v88
  %v93 = vpack.c.b16 %v89, %v89
  %98 = vst [vmem:[%s3] sm:$0xf] %v90
  %99 = vst [vmem:[%s3 + $0x4] sm:$0xf] %v91
  %100 = vst [vmem:[%s3 + $0x8] sm:$0xf] %v92
  %101 = vst [vmem:[%s3 + $0xc] sm:$0xf] %v93
  // Predicated region
  $region14: #{resnet_generator_forward.36} parent=0 // pred_check
    _
  $region15: #{resnet_generator_forward.36} parent=0 // pred_check_branch
    %103 = sbr.rel (0) target = $region17
  $region16: #{resnet_generator_forward.36} parent=0 // pred_region
    _
  $region17: #{resnet_generator_forward.36} parent=0 // pred_fallthru
    _
  // Predicated region
  $region18: #{resnet_generator_forward.36} parent=0 // pred_check
    _
  $region19: #{resnet_generator_forward.36} parent=0 // pred_check_branch
    %105 = sbr.rel (0) target = $region21
  $region20: #{resnet_generator_forward.36} parent=0 // pred_region
    _
  $region21: #{resnet_generator_forward.36} parent=0 // pred_fallthru
    _

// kernel: resnet_generator_forward.37
$region0: #{resnet_generator_forward.37}
  #allocation0 [shape = 'u32[]', space=smem, size = 0x4, offset = 0x4, fixed_abs, tag = 'smem constant byte address 0x4 - core index']
  #allocation1 [shape = 'u32[144,128]{1,0:T(1,128)}', space=vmem, size = 0x12000, scoped, tag = 'internal scratch']
  %s0 = inlined_call_operand.vmem [shape: bf16[16,400], index: 0, kind: input, shape index: {}]
  %s1 = inlined_call_operand.vmem [shape: bf16[400,512], index: 1, kind: input, shape index: {}]
  %s2 = inlined_call_operand.vmem [shape: f32[8,1], index: 2, kind: input, shape index: {}]
  %s3 = inlined_call_operand.vmem [shape: f32[8,512], index: 3, kind: output, shape index: {}]
  %s4 = sld [smem:[#allocation0]]
  $region86: #{resnet_generator_forward.37} parent=0
    _
  %s6 = ssub.s32 1, %s4
  %s7 = scalar_select 0, %s6, %s4
  $region1: #{resnet_generator_forward.37} parent=0
    #allocation2 [shape = 'u8[204800]{0}', space=vmem, size = 0x32000, scoped, tag = 'input window, operand 1']
    loop: start=0, step=1, limit=6
    $region2: #{resnet_generator_forward.37} parent=1 // loop_pre_header
      _
    $region3: #{resnet_generator_forward.37} parent=1 // loop_header
      %s9 = sphi 0, %s13
      %p10 = scmp.ge.s32.totalorder %s9, 6
      %s17 = sphi 0, %s17
      %s19 = sphi 0, %s17
      %s20 = sphi 0, %s19
      %s34 = sphi 0, %s20
      %s40 = sphi 0, %s42
      %s43 = sphi 0, %s40
      %s44 = sphi 0, %s43
      %s60 = sphi 0, %s44
      %s64 = sphi 0, %s64
      %s66 = sphi 0, %s64
      %s67 = sphi 0, %s66
      %s81 = sphi 0, %s67
      %s87 = sphi 0, %s89
      %s90 = sphi 0, %s87
      %s91 = sphi 0, %s90
      %s107 = sphi 0, %s91
    $region4: #{resnet_generator_forward.37} parent=1 // loop_header_branch
      %12 = sbr.rel (%p10) target = $region8
    $region5: #{resnet_generator_forward.37} parent=1 // loop_body
      %s14 = ssub.s32 %s9, 1
      %s15 = ssub.s32 %s9, 2
      %s16 = sadd.s32 %s9, 1
      %s18 = sadd.s32 %s17, 1
      %p21 = scmp.eq.s32.totalorder %s9, 3
      %p22 = scmp.ne.s32.totalorder %s17, %s19
      %p23 = scmp.eq.s32.totalorder %s9, 0
      %p24 = por %p22, %p23
      %p25 = scmp.ne.s32.totalorder %s17, %s19
      %p26 = scmp.eq.s32.totalorder %s14, 3
      %p27 = por %p25, %p26
      %p28 = scmp.ne.s32.totalorder %s19, %s20
      %p29 = scmp.eq.s32.totalorder %s14, 0
      %p30 = por %p28, %p29
      %p31 = scmp.ne.s32.totalorder %s19, %s20
      %p32 = scmp.eq.s32.totalorder %s15, 3
      %p33 = por %p31, %p32
      %p35 = scmp.ne.s32.totalorder %s20, %s34
      %p36 = scmp.eq.s32.totalorder %s15, 0
      %p37 = por %p35, %p36
      %s38 = ssub.s32 %s9, %s16
      %p39 = scmp.eq.s32.totalorder %s38, 0
      %s41 = sadd.s32 %s40, 1
      %s42 = scalar_select %p39, %s40, %s41
      %p45 = pneg %p39
      %p46 = scmp.eq.s32.totalorder %s9, 3
      %p47 = por %p45, %p46
      %p48 = scmp.ne.s32.totalorder %s40, %s43
      %p49 = scmp.eq.s32.totalorder %s9, 0
      %p50 = por %p48, %p49
      %p51 = scmp.ne.s32.totalorder %s40, %s43
      %p52 = scmp.eq.s32.totalorder %s14, 3
      %p53 = por %p51, %p52
      %p54 = scmp.ne.s32.totalorder %s43, %s44
      %p55 = scmp.eq.s32.totalorder %s14, 0
      %p56 = por %p54, %p55
      %p57 = scmp.ne.s32.totalorder %s43, %s44
      %p58 = scmp.eq.s32.totalorder %s15, 3
      %p59 = por %p57, %p58
      %p61 = scmp.ne.s32.totalorder %s44, %s60
      %p62 = scmp.eq.s32.totalorder %s15, 0
      %p63 = por %p61, %p62
      %s65 = sadd.s32 %s64, 1
      %p68 = scmp.eq.s32.totalorder %s9, 3
      %p69 = scmp.ne.s32.totalorder %s64, %s66
      %p70 = scmp.eq.s32.totalorder %s9, 0
      %p71 = por %p69, %p70
      %p72 = scmp.ne.s32.totalorder %s64, %s66
      %p73 = scmp.eq.s32.totalorder %s14, 3
      %p74 = por %p72, %p73
      %p75 = scmp.ne.s32.totalorder %s66, %s67
      %p76 = scmp.eq.s32.totalorder %s14, 0
      %p77 = por %p75, %p76
      %p78 = scmp.ne.s32.totalorder %s66, %s67
      %p79 = scmp.eq.s32.totalorder %s15, 3
      %p80 = por %p78, %p79
      %p82 = scmp.ne.s32.totalorder %s67, %s81
      %p83 = scmp.eq.s32.totalorder %s15, 0
      %p84 = por %p82, %p83
      %s85 = ssub.s32 %s9, %s16
      %p86 = scmp.eq.s32.totalorder %s85, 0
      %s88 = sadd.s32 %s87, 1
      %s89 = scalar_select %p86, %s87, %s88
      %p92 = pneg %p86
      %p93 = scmp.eq.s32.totalorder %s9, 3
      %p94 = por %p92, %p93
      %p95 = scmp.ne.s32.totalorder %s87, %s90
      %p96 = scmp.eq.s32.totalorder %s9, 0
      %p97 = por %p95, %p96
      %p98 = scmp.ne.s32.totalorder %s87, %s90
      %p99 = scmp.eq.s32.totalorder %s14, 3
      %p100 = por %p98, %p99
      %p101 = scmp.ne.s32.totalorder %s90, %s91
      %p102 = scmp.eq.s32.totalorder %s14, 0
      %p103 = por %p101, %p102
      %p104 = scmp.ne.s32.totalorder %s90, %s91
      %p105 = scmp.eq.s32.totalorder %s15, 3
      %p106 = por %p104, %p105
      %p108 = scmp.ne.s32.totalorder %s91, %s107
      %p109 = scmp.eq.s32.totalorder %s15, 0
      %p110 = por %p108, %p109
      %p111 = scmp.le.s32.totalorder 1, %s9
      %p112 = scmp.lt.s32.totalorder %s9, 5
      %p113 = pnand %p111, %p112
      %p114 = pneg %p113
      // Predicated region
      $region9: #{resnet_generator_forward.37} parent=5 // pred_check
        _
      $region10: #{resnet_generator_forward.37} parent=5 // pred_check_branch
        %116 = sbr.rel (%p113) target = $region12
      $region11: #{resnet_generator_forward.37} parent=5 // pred_region
        %s117 = ssub.s32 %s9, 1
        // Predicated region
        $region13: #{resnet_generator_forward.37} parent=11 // pred_check
          %p118 = pneg %p30
        $region14: #{resnet_generator_forward.37} parent=11 // pred_check_branch
          %120 = sbr.rel (%p118) target = $region16
        $region15: #{resnet_generator_forward.37} parent=11 // pred_region
          _
        $region16: #{resnet_generator_forward.37} parent=11 // pred_fallthru
          _
        // Predicated region
        $region17: #{resnet_generator_forward.37} parent=11 // pred_check
          %p121 = pneg %p77
        $region18: #{resnet_generator_forward.37} parent=11 // pred_check_branch
          %123 = sbr.rel (%p121) target = $region20
        $region19: #{resnet_generator_forward.37} parent=11 // pred_region
          _
        $region20: #{resnet_generator_forward.37} parent=11 // pred_fallthru
          _
      $region12: #{resnet_generator_forward.37} parent=5 // pred_fallthru
        _
      %p124 = scmp.lt.s32.totalorder %s9, 4
      // Predicated region
      $region21: #{resnet_generator_forward.37} parent=5 // pred_check
        %p125 = pneg %p124
      $region22: #{resnet_generator_forward.37} parent=5 // pred_check_branch
        %127 = sbr.rel (%p125) target = $region24
      $region23: #{resnet_generator_forward.37} parent=5 // pred_region
        // Predicated region
        $region25: #{resnet_generator_forward.37} parent=23 // pred_check
          %p128 = pneg %p50
        $region26: #{resnet_generator_forward.37} parent=23 // pred_check_branch
          %130 = sbr.rel (%p128) target = $region28
        $region27: #{resnet_generator_forward.37} parent=23 // pred_region
          %s131 = sand.u32 %s40, 1
          %s132 = sand.u32 %s40, 1
          %s133 = smul.addr %s132, 200
          %s134 = scalar_lea.vmem [#allocation2], %s133
          %s135 = smul.addr %s9, 4
          %s136 = scalar_lea.vmem %s1, %s135
          // Predicated region
          $region29: #{resnet_generator_forward.37} parent=27 // pred_check
            _
          $region30: #{resnet_generator_forward.37} parent=27 // pred_check_branch
            %138 = sbr.rel (0) target = $region32
          $region31: #{resnet_generator_forward.37} parent=27 // pred_region
            // Predicated region
            $region33: #{resnet_generator_forward.37} parent=31 // pred_check
              _
            $region34: #{resnet_generator_forward.37} parent=31 // pred_check_branch
              %140 = sbr.rel target = $region36
            $region35: #{resnet_generator_forward.37} parent=31 // pred_region
              // Predicated region
              $region48: #{resnet_generator_forward.37} parent=35 // pred_check
                _
              $region49: #{resnet_generator_forward.37} parent=35 // pred_check_branch
                %253 = sbr.rel (0) target = $region51
              $region50: #{resnet_generator_forward.37} parent=35 // pred_region
                loop: start=0, step=1, limit=1
                $region52: #{resnet_generator_forward.37} parent=50 // loop_pre_header
                  _
                $region53: #{resnet_generator_forward.37} parent=50 // loop_header
                  %s255 = sphi 0, %s259
                  %p256 = scmp.ge.s32.totalorder %s255, 1
                  %s260 = sphi %s136, %s136
                  %s261 = sphi %s134, %s134
                $region54: #{resnet_generator_forward.37} parent=50 // loop_header_branch
                  %258 = sbr.rel (%p256) target = $region58
                $region55: #{resnet_generator_forward.37} parent=50 // loop_body
                  _
                $region56: #{resnet_generator_forward.37} parent=50 // loop_footer
                  %s259 = sadd.s32 1, %s255
                $region57: #{resnet_generator_forward.37} parent=50 // loop_footer_branch
                  %254 = sbr.rel target = $region53
                $region58: #{resnet_generator_forward.37} parent=50 // loop_exit
                  _
                loop: start=0, step=1, limit=1
                $region59: #{resnet_generator_forward.37} parent=50 // loop_pre_header
                  _
                $region60: #{resnet_generator_forward.37} parent=50 // loop_header
                  %s264 = sphi 0, %s268
                  %p265 = scmp.ge.s32.totalorder %s264, 1
                  %s269 = sphi %s136, %s136
                  %s270 = sphi %s134, %s134
                $region61: #{resnet_generator_forward.37} parent=50 // loop_header_branch
                  %267 = sbr.rel (%p265) target = $region65
                $region62: #{resnet_generator_forward.37} parent=50 // loop_body
                  %v271 = vld [vmem:[%s269] sm:$0xf]
                  %272 = vst [vmem:[%s270] sm:$0xf] %v271
                  %v273 = vld [vmem:[%s269 + $0x10] sm:$0xf]
                  %274 = vst [vmem:[%s270 + $0x4] sm:$0xf] %v273
                  %v275 = vld [vmem:[%s269 + $0x20] sm:$0xf]
                  %276 = vst [vmem:[%s270 + $0x8] sm:$0xf] %v275
                  %v277 = vld [vmem:[%s269 + $0x30] sm:$0xf]
                  %278 = vst [vmem:[%s270 + $0xc] sm:$0xf] %v277
                  %v279 = vld [vmem:[%s269 + $0x40] sm:$0xf]
                  %280 = vst [vmem:[%s270 + $0x10] sm:$0xf] %v279
                  %v281 = vld [vmem:[%s269 + $0x50] sm:$0xf]
                  %282 = vst [vmem:[%s270 + $0x14] sm:$0xf] %v281
                  %v283 = vld [vmem:[%s269 + $0x60] sm:$0xf]
                  %284 = vst [vmem:[%s270 + $0x18] sm:$0xf] %v283
                  %v285 = vld [vmem:[%s269 + $0x70] sm:$0xf]
                  %286 = vst [vmem:[%s270 + $0x1c] sm:$0xf] %v285
                  %v287 = vld [vmem:[%s269 + $0x80] sm:$0xf]
                  %288 = vst [vmem:[%s270 + $0x20] sm:$0xf] %v287
                  %v289 = vld [vmem:[%s269 + $0x90] sm:$0xf]
                  %290 = vst [vmem:[%s270 + $0x24] sm:$0xf] %v289
                  %v291 = vld [vmem:[%s269 + $0xa0] sm:$0xf]
                  %292 = vst [vmem:[%s270 + $0x28] sm:$0xf] %v291
                  %v293 = vld [vmem:[%s269 + $0xb0] sm:$0xf]
                  %294 = vst [vmem:[%s270 + $0x2c] sm:$0xf] %v293
                  %v295 = vld [vmem:[%s269 + $0xc0] sm:$0xf]
                  %296 = vst [vmem:[%s270 + $0x30] sm:$0xf] %v295
                  %v297 = vld [vmem:[%s269 + $0xd0] sm:$0xf]
                  %298 = vst [vmem:[%s270 + $0x34] sm:$0xf] %v297
                  %v299 = vld [vmem:[%s269 + $0xe0] sm:$0xf]
                  %300 = vst [vmem:[%s270 + $0x38] sm:$0xf] %v299
                  %v301 = vld [vmem:[%s269 + $0xf0] sm:$0xf]
                  %302 = vst [vmem:[%s270 + $0x3c] sm:$0xf] %v301
                  %v303 = vld [vmem:[%s269 + $0x100] sm:$0xf]
                  %304 = vst [vmem:[%s270 + $0x40] sm:$0xf] %v303
                  %v305 = vld [vmem:[%s269 + $0x110] sm:$0xf]
                  %306 = vst [vmem:[%s270 + $0x44] sm:$0xf] %v305
                  %v307 = vld [vmem:[%s269 + $0x120] sm:$0xf]
                  %308 = vst [vmem:[%s270 + $0x48] sm:$0xf] %v307
                  %v309 = vld [vmem:[%s269 + $0x130] sm:$0xf]
                  %310 = vst [vmem:[%s270 + $0x4c] sm:$0xf] %v309
                  %v311 = vld [vmem:[%s269 + $0x140] sm:$0xf]
                  %312 = vst [vmem:[%s270 + $0x50] sm:$0xf] %v311
                  %v313 = vld [vmem:[%s269 + $0x150] sm:$0xf]
                  %314 = vst [vmem:[%s270 + $0x54] sm:$0xf] %v313
                  %v315 = vld [vmem:[%s269 + $0x160] sm:$0xf]
                  %316 = vst [vmem:[%s270 + $0x58] sm:$0xf] %v315
                  %v317 = vld [vmem:[%s269 + $0x170] sm:$0xf]
                  %318 = vst [vmem:[%s270 + $0x5c] sm:$0xf] %v317
                  %v319 = vld [vmem:[%s269 + $0x180] sm:$0xf]
                  %320 = vst [vmem:[%s270 + $0x60] sm:$0xf] %v319
                  %v321 = vld [vmem:[%s269 + $0x190] sm:$0xf]
                  %322 = vst [vmem:[%s270 + $0x64] sm:$0xf] %v321
                  %v323 = vld [vmem:[%s269 + $0x1a0] sm:$0xf]
                  %324 = vst [vmem:[%s270 + $0x68] sm:$0xf] %v323
                  %v325 = vld [vmem:[%s269 + $0x1b0] sm:$0xf]
                  %326 = vst [vmem:[%s270 + $0x6c] sm:$0xf] %v325
                  %v327 = vld [vmem:[%s269 + $0x1c0] sm:$0xf]
                  %328 = vst [vmem:[%s270 + $0x70] sm:$0xf] %v327
                  %v329 = vld [vmem:[%s269 + $0x1d0] sm:$0xf]
                  %330 = vst [vmem:[%s270 + $0x74] sm:$0xf] %v329
                  %v331 = vld [vmem:[%s269 + $0x1e0] sm:$0xf]
                  %332 = vst [vmem:[%s270 + $0x78] sm:$0xf] %v331
                  %v333 = vld [vmem:[%s269 + $0x1f0] sm:$0xf]
                  %334 = vst [vmem:[%s270 + $0x7c] sm:$0xf] %v333
                  %v335 = vld [vmem:[%s269 + $0x200] sm:$0xf]
                  %336 = vst [vmem:[%s270 + $0x80] sm:$0xf] %v335
                  %v337 = vld [vmem:[%s269 + $0x210] sm:$0xf]
                  %338 = vst [vmem:[%s270 + $0x84] sm:$0xf] %v337
                  %v339 = vld [vmem:[%s269 + $0x220] sm:$0xf]
                  %340 = vst [vmem:[%s270 + $0x88] sm:$0xf] %v339
                  %v341 = vld [vmem:[%s269 + $0x230] sm:$0xf]
                  %342 = vst [vmem:[%s270 + $0x8c] sm:$0xf] %v341
                  %v343 = vld [vmem:[%s269 + $0x240] sm:$0xf]
                  %344 = vst [vmem:[%s270 + $0x90] sm:$0xf] %v343
                  %v345 = vld [vmem:[%s269 + $0x250] sm:$0xf]
                  %346 = vst [vmem:[%s270 + $0x94] sm:$0xf] %v345
                  %v347 = vld [vmem:[%s269 + $0x260] sm:$0xf]
                  %348 = vst [vmem:[%s270 + $0x98] sm:$0xf] %v347
                  %v349 = vld [vmem:[%s269 + $0x270] sm:$0xf]
                  %350 = vst [vmem:[%s270 + $0x9c] sm:$0xf] %v349
                  %v351 = vld [vmem:[%s269 + $0x280] sm:$0xf]
                  %352 = vst [vmem:[%s270 + $0xa0] sm:$0xf] %v351
                  %v353 = vld [vmem:[%s269 + $0x290] sm:$0xf]
                  %354 = vst [vmem:[%s270 + $0xa4] sm:$0xf] %v353
                  %v355 = vld [vmem:[%s269 + $0x2a0] sm:$0xf]
                  %356 = vst [vmem:[%s270 + $0xa8] sm:$0xf] %v355
                  %v357 = vld [vmem:[%s269 + $0x2b0] sm:$0xf]
                  %358 = vst [vmem:[%s270 + $0xac] sm:$0xf] %v357
                  %v359 = vld [vmem:[%s269 + $0x2c0] sm:$0xf]
                  %360 = vst [vmem:[%s270 + $0xb0] sm:$0xf] %v359
                  %v361 = vld [vmem:[%s269 + $0x2d0] sm:$0xf]
                  %362 = vst [vmem:[%s270 + $0xb4] sm:$0xf] %v361
                  %v363 = vld [vmem:[%s269 + $0x2e0] sm:$0xf]
                  %364 = vst [vmem:[%s270 + $0xb8] sm:$0xf] %v363
                  %v365 = vld [vmem:[%s269 + $0x2f0] sm:$0xf]
                  %366 = vst [vmem:[%s270 + $0xbc] sm:$0xf] %v365
                  %v367 = vld [vmem:[%s269 + $0x300] sm:$0xf]
                  %368 = vst [vmem:[%s270 + $0xc0] sm:$0xf] %v367
                  %v369 = vld [vmem:[%s269 + $0x310] sm:$0xf]
                  %370 = vst [vmem:[%s270 + $0xc4] sm:$0xf] %v369
                $region63: #{resnet_generator_forward.37} parent=50 // loop_footer
                  %s268 = sadd.s32 1, %s264
                $region64: #{resnet_generator_forward.37} parent=50 // loop_footer_branch
                  %263 = sbr.rel target = $region60
                $region65: #{resnet_generator_forward.37} parent=50 // loop_exit
                  _
              $region51: #{resnet_generator_forward.37} parent=35 // pred_fallthru
                _
            $region36: #{resnet_generator_forward.37} parent=31 // pred_fallthru
              _
            // Predicated region
            $region37: #{resnet_generator_forward.37} parent=31 // pred_check
              _
            $region38: #{resnet_generator_forward.37} parent=31 // pred_check_branch
              %142 = sbr.rel (0) target = $region40
            $region39: #{resnet_generator_forward.37} parent=31 // pred_region
              loop: start=0, step=1, limit=1
              $region41: #{resnet_generator_forward.37} parent=39 // loop_pre_header
                _
              $region42: #{resnet_generator_forward.37} parent=39 // loop_header
                %s145 = sphi 0, %s149
                %p146 = scmp.ge.s32.totalorder %s145, 1
                %s150 = sphi %s136, %s136
                %s151 = sphi %s134, %s134
              $region43: #{resnet_generator_forward.37} parent=39 // loop_header_branch
                %148 = sbr.rel (%p146) target = $region47
              $region44: #{resnet_generator_forward.37} parent=39 // loop_body
                %v152 = vld [vmem:[%s150] sm:$0xf]
                %153 = vst [vmem:[%s151] sm:$0xf] %v152
                %v154 = vld [vmem:[%s150 + $0x10] sm:$0xf]
                %155 = vst [vmem:[%s151 + $0x4] sm:$0xf] %v154
                %v156 = vld [vmem:[%s150 + $0x20] sm:$0xf]
                %157 = vst [vmem:[%s151 + $0x8] sm:$0xf] %v156
                %v158 = vld [vmem:[%s150 + $0x30] sm:$0xf]
                %159 = vst [vmem:[%s151 + $0xc] sm:$0xf] %v158
                %v160 = vld [vmem:[%s150 + $0x40] sm:$0xf]
                %161 = vst [vmem:[%s151 + $0x10] sm:$0xf] %v160
                %v162 = vld [vmem:[%s150 + $0x50] sm:$0xf]
                %163 = vst [vmem:[%s151 + $0x14] sm:$0xf] %v162
                %v164 = vld [vmem:[%s150 + $0x60] sm:$0xf]
                %165 = vst [vmem:[%s151 + $0x18] sm:$0xf] %v164
                %v166 = vld [vmem:[%s150 + $0x70] sm:$0xf]
                %167 = vst [vmem:[%s151 + $0x1c] sm:$0xf] %v166
                %v168 = vld [vmem:[%s150 + $0x80] sm:$0xf]
                %169 = vst [vmem:[%s151 + $0x20] sm:$0xf] %v168
                %v170 = vld [vmem:[%s150 + $0x90] sm:$0xf]
                %171 = vst [vmem:[%s151 + $0x24] sm:$0xf] %v170
                %v172 = vld [vmem:[%s150 + $0xa0] sm:$0xf]
                %173 = vst [vmem:[%s151 + $0x28] sm:$0xf] %v172
                %v174 = vld [vmem:[%s150 + $0xb0] sm:$0xf]
                %175 = vst [vmem:[%s151 + $0x2c] sm:$0xf] %v174
                %v176 = vld [vmem:[%s150 + $0xc0] sm:$0xf]
                %177 = vst [vmem:[%s151 + $0x30] sm:$0xf] %v176
                %v178 = vld [vmem:[%s150 + $0xd0] sm:$0xf]
                %179 = vst [vmem:[%s151 + $0x34] sm:$0xf] %v178
                %v180 = vld [vmem:[%s150 + $0xe0] sm:$0xf]
                %181 = vst [vmem:[%s151 + $0x38] sm:$0xf] %v180
                %v182 = vld [vmem:[%s150 + $0xf0] sm:$0xf]
                %183 = vst [vmem:[%s151 + $0x3c] sm:$0xf] %v182
                %v184 = vld [vmem:[%s150 + $0x100] sm:$0xf]
                %185 = vst [vmem:[%s151 + $0x40] sm:$0xf] %v184
                %v186 = vld [vmem:[%s150 + $0x110] sm:$0xf]
                %187 = vst [vmem:[%s151 + $0x44] sm:$0xf] %v186
                %v188 = vld [vmem:[%s150 + $0x120] sm:$0xf]
                %189 = vst [vmem:[%s151 + $0x48] sm:$0xf] %v188
                %v190 = vld [vmem:[%s150 + $0x130] sm:$0xf]
                %191 = vst [vmem:[%s151 + $0x4c] sm:$0xf] %v190
                %v192 = vld [vmem:[%s150 + $0x140] sm:$0xf]
                %193 = vst [vmem:[%s151 + $0x50] sm:$0xf] %v192
                %v194 = vld [vmem:[%s150 + $0x150] sm:$0xf]
                %195 = vst [vmem:[%s151 + $0x54] sm:$0xf] %v194
                %v196 = vld [vmem:[%s150 + $0x160] sm:$0xf]
                %197 = vst [vmem:[%s151 + $0x58] sm:$0xf] %v196
                %v198 = vld [vmem:[%s150 + $0x170] sm:$0xf]
                %199 = vst [vmem:[%s151 + $0x5c] sm:$0xf] %v198
                %v200 = vld [vmem:[%s150 + $0x180] sm:$0xf]
                %201 = vst [vmem:[%s151 + $0x60] sm:$0xf] %v200
                %v202 = vld [vmem:[%s150 + $0x190] sm:$0xf]
                %203 = vst [vmem:[%s151 + $0x64] sm:$0xf] %v202
                %v204 = vld [vmem:[%s150 + $0x1a0] sm:$0xf]
                %205 = vst [vmem:[%s151 + $0x68] sm:$0xf] %v204
                %v206 = vld [vmem:[%s150 + $0x1b0] sm:$0xf]
                %207 = vst [vmem:[%s151 + $0x6c] sm:$0xf] %v206
                %v208 = vld [vmem:[%s150 + $0x1c0] sm:$0xf]
                %209 = vst [vmem:[%s151 + $0x70] sm:$0xf] %v208
                %v210 = vld [vmem:[%s150 + $0x1d0] sm:$0xf]
                %211 = vst [vmem:[%s151 + $0x74] sm:$0xf] %v210
                %v212 = vld [vmem:[%s150 + $0x1e0] sm:$0xf]
                %213 = vst [vmem:[%s151 + $0x78] sm:$0xf] %v212
                %v214 = vld [vmem:[%s150 + $0x1f0] sm:$0xf]
                %215 = vst [vmem:[%s151 + $0x7c] sm:$0xf] %v214
                %v216 = vld [vmem:[%s150 + $0x200] sm:$0xf]
                %217 = vst [vmem:[%s151 + $0x80] sm:$0xf] %v216
                %v218 = vld [vmem:[%s150 + $0x210] sm:$0xf]
                %219 = vst [vmem:[%s151 + $0x84] sm:$0xf] %v218
                %v220 = vld [vmem:[%s150 + $0x220] sm:$0xf]
                %221 = vst [vmem:[%s151 + $0x88] sm:$0xf] %v220
                %v222 = vld [vmem:[%s150 + $0x230] sm:$0xf]
                %223 = vst [vmem:[%s151 + $0x8c] sm:$0xf] %v222
                %v224 = vld [vmem:[%s150 + $0x240] sm:$0xf]
                %225 = vst [vmem:[%s151 + $0x90] sm:$0xf] %v224
                %v226 = vld [vmem:[%s150 + $0x250] sm:$0xf]
                %227 = vst [vmem:[%s151 + $0x94] sm:$0xf] %v226
                %v228 = vld [vmem:[%s150 + $0x260] sm:$0xf]
                %229 = vst [vmem:[%s151 + $0x98] sm:$0xf] %v228
                %v230 = vld [vmem:[%s150 + $0x270] sm:$0xf]
                %231 = vst [vmem:[%s151 + $0x9c] sm:$0xf] %v230
                %v232 = vld [vmem:[%s150 + $0x280] sm:$0xf]
                %233 = vst [vmem:[%s151 + $0xa0] sm:$0xf] %v232
                %v234 = vld [vmem:[%s150 + $0x290] sm:$0xf]
                %235 = vst [vmem:[%s151 + $0xa4] sm:$0xf] %v234
                %v236 = vld [vmem:[%s150 + $0x2a0] sm:$0xf]
                %237 = vst [vmem:[%s151 + $0xa8] sm:$0xf] %v236
                %v238 = vld [vmem:[%s150 + $0x2b0] sm:$0xf]
                %239 = vst [vmem:[%s151 + $0xac] sm:$0xf] %v238
                %v240 = vld [vmem:[%s150 + $0x2c0] sm:$0xf]
                %241 = vst [vmem:[%s151 + $0xb0] sm:$0xf] %v240
                %v242 = vld [vmem:[%s150 + $0x2d0] sm:$0xf]
                %243 = vst [vmem:[%s151 + $0xb4] sm:$0xf] %v242
                %v244 = vld [vmem:[%s150 + $0x2e0] sm:$0xf]
                %245 = vst [vmem:[%s151 + $0xb8] sm:$0xf] %v244
                %v246 = vld [vmem:[%s150 + $0x2f0] sm:$0xf]
                %247 = vst [vmem:[%s151 + $0xbc] sm:$0xf] %v246
                %v248 = vld [vmem:[%s150 + $0x300] sm:$0xf]
                %249 = vst [vmem:[%s151 + $0xc0] sm:$0xf] %v248
                %v250 = vld [vmem:[%s150 + $0x310] sm:$0xf]
                %251 = vst [vmem:[%s151 + $0xc4] sm:$0xf] %v250
              $region45: #{resnet_generator_forward.37} parent=39 // loop_footer
                %s149 = sadd.s32 1, %s145
              $region46: #{resnet_generator_forward.37} parent=39 // loop_footer_branch
                %144 = sbr.rel target = $region42
              $region47: #{resnet_generator_forward.37} parent=39 // loop_exit
                _
            $region40: #{resnet_generator_forward.37} parent=31 // pred_fallthru
              _
          $region32: #{resnet_generator_forward.37} parent=27 // pred_fallthru
            _
          %371 = vnop
        $region28: #{resnet_generator_forward.37} parent=23 // pred_fallthru
          _
      $region24: #{resnet_generator_forward.37} parent=5 // pred_fallthru
        _
      %p372 = scmp.le.s32.totalorder 1, %s9
      %p373 = scmp.lt.s32.totalorder %s9, 5
      %p374 = pnand %p372, %p373
      %p375 = pneg %p374
      // Predicated region
      $region66: #{resnet_generator_forward.37} parent=5 // pred_check
        _
      $region67: #{resnet_generator_forward.37} parent=5 // pred_check_branch
        %377 = sbr.rel (%p374) target = $region69
      $region68: #{resnet_generator_forward.37} parent=5 // pred_region
        %s378 = ssub.s32 %s9, 1
        %s379 = sand.u32 %s43, 1
        %s380 = sand.u32 %s43, 1
        %s381 = smul.addr %s380, 200
        %s382 = scalar_lea.vmem [#allocation2], %s381
        // Predicated region
        $region70: #{resnet_generator_forward.37} parent=68 // pred_check
          %p383 = pneg %p56
        $region71: #{resnet_generator_forward.37} parent=68 // pred_check_branch
          %385 = sbr.rel (%p383) target = $region73
        $region72: #{resnet_generator_forward.37} parent=68 // pred_region
          _
        $region73: #{resnet_generator_forward.37} parent=68 // pred_fallthru
          _
        %p386 = pneg %p30
        %p387 = pneg %p27
        %s388 = sand.u32 %s43, 1
        %s389 = sand.u32 %s43, 1
        %s390 = smul.addr %s389, 200
        %s391 = scalar_lea.vmem [#allocation2], %s390
        %p392 = pneg %p56
        %p393 = pneg %p53
        %p394 = pneg %p77
        %p395 = pneg %p74
        %p396 = pneg %p103
        %p397 = pneg %p100
        %p398 = scmp.lt.s32.totalorder %s14, 3
        %s399 = scalar_select %p398, %s14, 3
        %s400 = smul.addr %s399, 8
        %s401 = scalar_lea.vmem %s3, %s400
        %p402 = scmp.lt.s32.totalorder %s14, 3
        %s403 = scalar_select %p402, %s14, 3
        %s404 = smul.addr %s403, 8
        %s405 = scalar_lea.vmem %s3, %s404
        %v407 = vld [vmem:[%s0] sm:$0xff]
        %v408 = vld [vmem:[%s0 + $0x8] sm:$0xff]
        %v409 = vld [vmem:[%s0 + $0x10] sm:$0xff]
        %v410 = vld [vmem:[%s0 + $0x18] sm:$0xff]
        %v411 = vld [vmem:[%s382] sm:$0xf]
        %v412 = vld [vmem:[%s382 + $0x4] sm:$0xf]
        %v413 = vld [vmem:[%s382 + $0x8] sm:$0xf]
        %v414 = vld [vmem:[%s382 + $0xc] sm:$0xf]
        %v415 = vld [vmem:[%s382 + $0x10] sm:$0xf]
        %v416 = vld [vmem:[%s382 + $0x14] sm:$0xf]
        %v417 = vld [vmem:[%s382 + $0x18] sm:$0xf]
        %v418 = vld [vmem:[%s382 + $0x1c] sm:$0xf]
        %v419 = vld [vmem:[%s382 + $0x20] sm:$0xf]
        %v420 = vld [vmem:[%s382 + $0x24] sm:$0xf]
        %v421 = vld [vmem:[%s382 + $0x28] sm:$0xf]
        %v422 = vld [vmem:[%s382 + $0x2c] sm:$0xf]
        %v423 = vld [vmem:[%s382 + $0x30] sm:$0xf]
        %v424 = vld [vmem:[%s382 + $0x34] sm:$0xf]
        %v425 = vld [vmem:[%s382 + $0x38] sm:$0xf]
        %v426 = vld [vmem:[%s382 + $0x3c] sm:$0xf]
        %v427 = vld [vmem:[%s382 + $0x40] sm:$0xf]
        %v428 = vld [vmem:[%s382 + $0x44] sm:$0xf]
        %v429 = vld [vmem:[%s382 + $0x48] sm:$0xf]
        %v430 = vld [vmem:[%s382 + $0x4c] sm:$0xf]
        %v431 = vld [vmem:[%s382 + $0x50] sm:$0xf]
        %v432 = vld [vmem:[%s382 + $0x54] sm:$0xf]
        %v433 = vld [vmem:[%s382 + $0x58] sm:$0xf]
        %v434 = vld [vmem:[%s382 + $0x5c] sm:$0xf]
        %v435 = vld [vmem:[%s382 + $0x60] sm:$0xf]
        %v436 = vld [vmem:[%s382 + $0x64] sm:$0xf]
        %v437 = vld [vmem:[%s382 + $0x68] sm:$0xf]
        %v438 = vld [vmem:[%s382 + $0x6c] sm:$0xf]
        %v439 = vld [vmem:[%s382 + $0x70] sm:$0xf]
        %v440 = vld [vmem:[%s382 + $0x74] sm:$0xf]
        %v441 = vld [vmem:[%s382 + $0x78] sm:$0xf]
        %v442 = vld [vmem:[%s382 + $0x7c] sm:$0xf]
        %v443 = vld [vmem:[%s382 + $0x80] sm:$0xf]
        %v444 = vld [vmem:[%s382 + $0x84] sm:$0xf]
        %v445 = vld [vmem:[%s382 + $0x88] sm:$0xf]
        %v446 = vld [vmem:[%s382 + $0x8c] sm:$0xf]
        %v447 = vld [vmem:[%s382 + $0x90] sm:$0xf]
        %v448 = vld [vmem:[%s382 + $0x94] sm:$0xf]
        %v449 = vld [vmem:[%s382 + $0x98] sm:$0xf]
        %v450 = vld [vmem:[%s382 + $0x9c] sm:$0xf]
        %v451 = vld [vmem:[%s382 + $0xa0] sm:$0xf]
        %v452 = vld [vmem:[%s382 + $0xa4] sm:$0xf]
        %v453 = vld [vmem:[%s382 + $0xa8] sm:$0xf]
        %v454 = vld [vmem:[%s382 + $0xac] sm:$0xf]
        %v455 = vld [vmem:[%s382 + $0xb0] sm:$0xf]
        %v456 = vld [vmem:[%s382 + $0xb4] sm:$0xf]
        %v457 = vld [vmem:[%s382 + $0xb8] sm:$0xf]
        %v458 = vld [vmem:[%s382 + $0xbc] sm:$0xf]
        %v459 = vld [vmem:[%s382 + $0xc0] sm:$0xf]
        %v460 = vld [vmem:[%s382 + $0xc4] sm:$0xf]
        %v465 = vunpack.c.l.b16 %v407
        %v466 = vunpack.c.h.b16 %v407
        %v467 = vunpack.c.l.b16 %v408
        %v468 = vunpack.c.h.b16 %v408
        %v469 = vunpack.c.l.b16 %v409
        %v470 = vunpack.c.h.b16 %v409
        %v471 = vunpack.c.l.b16 %v410
        %v472 = vunpack.c.h.b16 %v410
        %v473 = vpack.c.b16 %v469, %v465
        %v474 = vpack.c.b16 %v470, %v466
        %v475 = vpack.c.b16 %v471, %v467
        %v476 = vpack.c.b16 %v472, %v468
        %v530 = vunpack.c.l.b16 %v411
        %v531 = vunpack.c.l.b16 %v412
        %v532 = vunpack.c.l.b16 %v413
        %v533 = vunpack.c.l.b16 %v414
        %v534 = vunpack.c.l.b16 %v415
        %v535 = vunpack.c.l.b16 %v416
        %v536 = vunpack.c.l.b16 %v417
        %v537 = vunpack.c.l.b16 %v418
        %v538 = vunpack.c.l.b16 %v419
        %v539 = vunpack.c.l.b16 %v420
        %v540 = vunpack.c.l.b16 %v421
        %v541 = vunpack.c.l.b16 %v422
        %v542 = vunpack.c.l.b16 %v423
        %v543 = vunpack.c.l.b16 %v424
        %v544 = vunpack.c.l.b16 %v425
        %v545 = vunpack.c.l.b16 %v426
        %v546 = vunpack.c.l.b16 %v427
        %v547 = vunpack.c.l.b16 %v428
        %v548 = vunpack.c.l.b16 %v429
        %v549 = vunpack.c.l.b16 %v430
        %v550 = vunpack.c.l.b16 %v431
        %v551 = vunpack.c.l.b16 %v432
        %v552 = vunpack.c.l.b16 %v433
        %v553 = vunpack.c.l.b16 %v434
        %v554 = vunpack.c.l.b16 %v435
        %v555 = vunpack.c.l.b16 %v436
        %v556 = vunpack.c.l.b16 %v437
        %v557 = vunpack.c.l.b16 %v438
        %v558 = vunpack.c.l.b16 %v439
        %v559 = vunpack.c.l.b16 %v440
        %v560 = vunpack.c.l.b16 %v441
        %v561 = vunpack.c.l.b16 %v442
        %v562 = vunpack.c.l.b16 %v443
        %v563 = vunpack.c.l.b16 %v444
        %v564 = vunpack.c.l.b16 %v445
        %v565 = vunpack.c.l.b16 %v446
        %v566 = vunpack.c.l.b16 %v447
        %v567 = vunpack.c.l.b16 %v448
        %v568 = vunpack.c.l.b16 %v449
        %v569 = vunpack.c.l.b16 %v450
        %v570 = vunpack.c.l.b16 %v451
        %v571 = vunpack.c.l.b16 %v452
        %v572 = vunpack.c.l.b16 %v453
        %v573 = vunpack.c.l.b16 %v454
        %v574 = vunpack.c.l.b16 %v455
        %v575 = vunpack.c.l.b16 %v456
        %v576 = vunpack.c.l.b16 %v457
        %v577 = vunpack.c.l.b16 %v458
        %v578 = vunpack.c.l.b16 %v459
        %v579 = vunpack.c.l.b16 %v460
        %v580 = vpack.c.b16 %v531, %v530
        %v581 = vpack.c.b16 %v533, %v532
        %v582 = vpack.c.b16 %v535, %v534
        %v583 = vpack.c.b16 %v537, %v536
        %v584 = vpack.c.b16 %v539, %v538
        %v585 = vpack.c.b16 %v541, %v540
        %v586 = vpack.c.b16 %v543, %v542
        %v587 = vpack.c.b16 %v545, %v544
        %v588 = vpack.c.b16 %v547, %v546
        %v589 = vpack.c.b16 %v549, %v548
        %v590 = vpack.c.b16 %v551, %v550
        %v591 = vpack.c.b16 %v553, %v552
        %v592 = vpack.c.b16 %v555, %v554
        %v593 = vpack.c.b16 %v557, %v556
        %v594 = vpack.c.b16 %v559, %v558
        %v595 = vpack.c.b16 %v561, %v560
        %v596 = vpack.c.b16 %v563, %v562
        %v597 = vpack.c.b16 %v565, %v564
        %v598 = vpack.c.b16 %v567, %v566
        %v599 = vpack.c.b16 %v569, %v568
        %v600 = vpack.c.b16 %v571, %v570
        %v601 = vpack.c.b16 %v573, %v572
        %v602 = vpack.c.b16 %v575, %v574
        %v603 = vpack.c.b16 %v577, %v576
        %v604 = vpack.c.b16 %v579, %v578
        %vm630 = vcmask 130048
        %v632 = vsel %vm630, %v476, 0
        %634 = vmatprep.subr.bf16.mxu0 0
        %635 = vmatpush1.bf16.msra.mxu0 %v580
        %636 = vmatprep.subr.bf16.mxu0 0
        %637 = vmatpush1.bf16.msra.mxu0 %v581
        %638 = vmatprep.subr.bf16.mxu0 0
        %639 = vmatpush1.bf16.msra.mxu0 %v582
        %640 = vmatprep.subr.bf16.mxu0 0
        %641 = vmatpush1.bf16.msra.mxu0 %v583
        %642 = vmatprep.subr.bf16.mxu0 0
        %643 = vmatpush1.bf16.msra.mxu0 %v584
        %644 = vmatprep.subr.bf16.mxu0 0
        %645 = vmatpush1.bf16.msra.mxu0 %v585
        %646 = vmatprep.subr.bf16.mxu0 0
        %647 = vmatpush1.bf16.msra.mxu0 %v586
        %648 = vmatprep.subr.bf16.mxu0 0
        %649 = vmatpush1.bf16.msra.mxu0 %v587
        %650 = vmatprep.subr.bf16.mxu0 0
        %651 = vmatpush1.bf16.msra.mxu0 %v588
        %652 = vmatprep.subr.bf16.mxu0 0
        %653 = vmatpush1.bf16.msra.mxu0 %v589
        %654 = vmatprep.subr.bf16.mxu0 0
        %655 = vmatpush1.bf16.msra.mxu0 %v590
        %656 = vmatprep.subr.bf16.mxu0 0
        %657 = vmatpush1.bf16.msra.mxu0 %v591
        %658 = vmatprep.subr.bf16.mxu0 0
        %659 = vmatpush1.bf16.msra.mxu0 %v592
        %660 = vmatprep.subr.bf16.mxu0 0
        %661 = vmatpush1.bf16.msra.mxu0 %v593
        %662 = vmatprep.subr.bf16.mxu0 0
        %663 = vmatpush1.bf16.msra.mxu0 %v594
        %664 = vmatprep.subr.bf16.mxu0 0
        %665 = vmatpush1.bf16.msra.mxu0 %v595
        %666 = vmatprep.mubr.bf16.mxu0 %v474
        %667 = vmatmul.mubr.bf16.gmra.mrb[0].mxu0 %v473
        %v668 = vpop.f32.mrb[0].mxu0
        %v669 = vadd.f32 0.0, %v668
        %v670 = vpop.f32.mrb[0].mxu0
        %v671 = vpop.f32.mrb[0].mxu0
        %v672 = vpop.f32.mrb[0].mxu0
        %673 = vdwg.mxu0
        %674 = vmatprep.subr.bf16.mxu0 0
        %675 = vmatpush1.bf16.msra.mxu0 %v596
        %676 = vmatprep.subr.bf16.mxu0 0
        %677 = vmatpush1.bf16.msra.mxu0 %v597
        %678 = vmatprep.subr.bf16.mxu0 0
        %679 = vmatpush1.bf16.msra.mxu0 %v598
        %680 = vmatprep.subr.bf16.mxu0 0
        %681 = vmatpush1.bf16.msra.mxu0 %v599
        %682 = vmatprep.subr.bf16.mxu0 0
        %683 = vmatpush1.bf16.msra.mxu0 %v600
        %684 = vmatprep.subr.bf16.mxu0 0
        %685 = vmatpush1.bf16.msra.mxu0 %v601
        %686 = vmatprep.subr.bf16.mxu0 0
        %687 = vmatpush1.bf16.msra.mxu0 %v602
        %688 = vmatprep.subr.bf16.mxu0 0
        %689 = vmatpush1.bf16.msra.mxu0 %v603
        %690 = vmatprep.subr.bf16.mxu0 0
        %691 = vmatpush1.bf16.msra.mxu0 %v604
        %692 = vmatprep.subr.bf16.mxu0 0
        %693 = vmatpush1.bf16.msra.mxu0 0
        %694 = vmatprep.subr.bf16.mxu0 0
        %695 = vmatpush1.bf16.msra.mxu0 0
        %696 = vmatprep.subr.bf16.mxu0 0
        %697 = vmatpush1.bf16.msra.mxu0 0
        %698 = vmatprep.subr.bf16.mxu0 0
        %699 = vmatpush1.bf16.msra.mxu0 0
        %700 = vmatprep.subr.bf16.mxu0 0
        %701 = vmatpush1.bf16.msra.mxu0 0
        %702 = vmatprep.subr.bf16.mxu0 0
        %703 = vmatpush1.bf16.msra.mxu0 0
        %704 = vmatprep.subr.bf16.mxu0 0
        %705 = vmatpush1.bf16.msra.mxu0 0
        %706 = vmatprep.mubr.bf16.mxu0 %v632
        %707 = vmatmul.mubr.bf16.gmra.mrb[0].mxu0 %v475
        %v708 = vpop.f32.mrb[0].mxu0
        %v709 = vadd.f32 %v669, %v708
        %v710 = vpop.f32.mrb[0].mxu0
        %v711 = vpop.f32.mrb[0].mxu0
        %v712 = vpop.f32.mrb[0].mxu0
        %713 = vdwg.mxu0
        %v714 = vld [vmem:[%s2] sm:$0xff]
        %716 = vset.pattern.permute.xlu0 0
        %717 = vperm.xlu0 %716, %v714
        %v718 = vpop.permute.xlu0 %717
        %v720 = vadd.f32 %v709, %v718
        %v721 = vtanh.pop %v720
        %722 = vst [vmem:[%s405] sm:$0xff] %v721
        %p723 = scmp.lt.s32.totalorder %s14, 3
        %s724 = scalar_select %p723, %s14, 3
        %s725 = smul.addr %s724, 8
        %s726 = scalar_lea.vmem %s3, %s725
        // Predicated region
        $region74: #{resnet_generator_forward.37} parent=68 // pred_check
          %p727 = pneg %p100
        $region75: #{resnet_generator_forward.37} parent=68 // pred_check_branch
          %729 = sbr.rel (%p727) target = $region77
        $region76: #{resnet_generator_forward.37} parent=68 // pred_region
          _
        $region77: #{resnet_generator_forward.37} parent=68 // pred_fallthru
          _
      $region69: #{resnet_generator_forward.37} parent=5 // pred_fallthru
        _
      %p730 = scmp.le.s32.totalorder 2, %s9
      // Predicated region
      $region78: #{resnet_generator_forward.37} parent=5 // pred_check
        %p731 = pneg %p730
      $region79: #{resnet_generator_forward.37} parent=5 // pred_check_branch
        %733 = sbr.rel (%p731) target = $region81
      $region80: #{resnet_generator_forward.37} parent=5 // pred_region
        %s734 = ssub.s32 %s9, 2
        // Predicated region
        $region82: #{resnet_generator_forward.37} parent=80 // pred_check
          %p735 = pneg %p106
        $region83: #{resnet_generator_forward.37} parent=80 // pred_check_branch
          %737 = sbr.rel (%p735) target = $region85
        $region84: #{resnet_generator_forward.37} parent=80 // pred_region
          %p738 = scmp.lt.s32.totalorder %s15, 3
          %s739 = scalar_select %p738, %s15, 3
          %s740 = smul.addr %s739, 8
          %s741 = scalar_lea.vmem %s3, %s740
        $region85: #{resnet_generator_forward.37} parent=80 // pred_fallthru
          _
      $region81: #{resnet_generator_forward.37} parent=5 // pred_fallthru
        _
    $region6: #{resnet_generator_forward.37} parent=1 // loop_footer
      %s13 = sadd.s32 1, %s9
    $region7: #{resnet_generator_forward.37} parent=1 // loop_footer_branch
      %8 = sbr.rel target = $region3
    $region8: #{resnet_generator_forward.37} parent=1 // loop_exit
      _

</llo_original>
